<compile_context>
chip_gen: v6e
topology: v6e:2x2x1
jax: 0.10.0
libtpu: 0.0.40
codegen_flags: <defaults>
</compile_context>

<pallas_src>
import functools
import math

import jax
import jax.numpy as jnp
from jax.experimental import pallas as pl
from jax.experimental.pallas import tpu as pltpu


# ----------------------------------------------------------------------------
# helpers
# ----------------------------------------------------------------------------
def _layernorm(x, g, b, eps=1e-5):
    m = jnp.mean(x, axis=-1, keepdims=True)
    v = jnp.mean((x - m) ** 2, axis=-1, keepdims=True)
    return (x - m) * jax.lax.rsqrt(v + eps) * g + b


# ----------------------------------------------------------------------------
# Fused generator kernel (one grid step = `bt` batch elements = bt*N rows)
# ----------------------------------------------------------------------------
def _generator_kernel(label_ref, bbox_ref, z_ref,
                      wlf_ref, wbf_ref, wzf_ref, bin_ref,
                      wq_ref, bq_ref, wk_ref, bk_ref, wv_ref, bv_ref,
                      woh_ref, bo_ref,
                      g1_ref, be1_ref, w1_ref, b1_ref, w2_ref, b2_ref,
                      g2_ref, be2_ref,
                      wout_ref, bout_ref,
                      out_ref,
                      *, bt, N, nhead, num_layers, label_size):
    D = wq_ref.shape[-1]
    hd = D // nhead
    M = bt * N
    f32, bf16 = jnp.float32, jnp.bfloat16

    # ---- fused input projection: relu(label@W_lf + bbox@W_bf + z@W_zf + b) --
    x = (jnp.dot(label_ref[...].astype(bf16), wlf_ref[...], preferred_element_type=f32)
         + jnp.dot(bbox_ref[...].astype(bf16), wbf_ref[...], preferred_element_type=f32)
         + jnp.dot(z_ref[...].astype(bf16), wzf_ref[...], preferred_element_type=f32)
         + bin_ref[...])
    x = jnp.maximum(x, 0.0)                                   # (M, D) f32

    # ---- transformer encoder stack (post-norm), static loop over layers -----
    for li in range(num_layers):
        xb = x.astype(bf16)
        # 1/sqrt(hd) is already folded into wq/bq (wrapper)
        q = jnp.dot(xb, wq_ref[li], preferred_element_type=f32) + bq_ref[li]
        k = jnp.dot(xb, wk_ref[li], preferred_element_type=f32) + bk_ref[li]
        v = jnp.dot(xb, wv_ref[li], preferred_element_type=f32) + bv_ref[li]
        q3 = q.reshape(bt, N, D).astype(bf16)
        k3 = k.reshape(bt, N, D).astype(bf16)
        v3 = v.reshape(bt, N, D).astype(bf16)

        # attention output accumulated through per-head row blocks of W_o
        # (== concat(heads) @ W_o, no lane concatenate, no zeros init)
        attn = None
        for h in range(nhead):
            sl = slice(h * hd, (h + 1) * hd)
            s = jnp.einsum('bqd,bkd->bqk', q3[:, :, sl], k3[:, :, sl],
                           preferred_element_type=f32)
            s = s - jnp.max(s, axis=-1, keepdims=True)
            p = jnp.exp(s)
            p = p * pl.reciprocal(jnp.sum(p, axis=-1, keepdims=True),
                                  approx=True)
            oh = jnp.einsum('bqk,bkd->bqd', p.astype(bf16), v3[:, :, sl],
                            preferred_element_type=f32)
            contrib = jnp.dot(oh.reshape(M, hd).astype(bf16),
                              woh_ref[li * nhead + h],
                              preferred_element_type=f32)
            attn = contrib if attn is None else attn + contrib
        attn = attn + bo_ref[li]

        x = _layernorm(x + attn, g1_ref[li], be1_ref[li])

        h1 = jnp.dot(x.astype(bf16), w1_ref[li], preferred_element_type=f32) + b1_ref[li]
        h1 = jnp.maximum(h1, 0.0)
        ff = jnp.dot(h1.astype(bf16), w2_ref[li], preferred_element_type=f32) + b2_ref[li]

        x = _layernorm(x + ff, g2_ref[li], be2_ref[li])

    # ---- lane-dense output head: softmax over first label_size cols, sigmoid
    #      over the next 4; padding cols are garbage and sliced off outside ---
    y = jnp.dot(x.astype(bf16), wout_ref[...], preferred_element_type=f32) + bout_ref[...]
    col = jax.lax.broadcasted_iota(jnp.int32, y.shape, dimension=1)
    is_cls = col < label_size
    masked = jnp.where(is_cls, y, -jnp.inf)
    m = jnp.max(masked, axis=-1, keepdims=True)
    e = jnp.where(is_cls, jnp.exp(y - m), 0.0)
    # exact divide -> class probs sum to 1 within f32 rounding
    cls = e / jnp.sum(e, axis=-1, keepdims=True)
    box = jax.nn.sigmoid(y)
    out_ref[...] = jnp.where(is_cls, cls, box).astype(out_ref.dtype)


# ----------------------------------------------------------------------------
# Wrapper (mirrors Generator_rico25_ablation.forward)
# ----------------------------------------------------------------------------
def generator_forward(params, label, bbox, latent_z, padding_mask=None, *,
                      nhead, num_layers, block_b=None):
    # reference zeroes padding_mask before use -> no masking anywhere
    del padding_mask
    B, N, L = label.shape
    b_size = bbox.shape[-1]
    z_dim = latent_z.shape[-1]
    D = params["fc_in_w"].shape[1]
    dh = D // 2
    hd = D // nhead
    K_out = params["fc_out_w"].shape[1]                       # label_size + 4
    K_pad = max(128, -(-K_out // 128) * 128)
    dim_ff = params["w1"].shape[-1]
    M = B * N
    f32, bf16 = jnp.float32, jnp.bfloat16

    label2 = label.reshape(M, L)
    bbox2 = bbox.reshape(M, b_size)
    z2 = latent_z.reshape(M, z_dim)

    # --- algebraic fusion of emb_label / fc_b / fc_z into fc_in (exact) ------
    w_in = params["fc_in_w"]
    wil, wib, wiz = w_in[:dh], w_in[dh:2 * dh], w_in[2 * dh:]
    W_lf = (params["emb_label_w"] @ wil).astype(bf16)
    W_bf = (params["fc_b_w"] @ wib).astype(bf16)
    W_zf = (params["fc_z_w"] @ wiz).astype(bf16)
    b_fused = (params["emb_label_b"] @ wil + params["fc_b_b"] @ wib
               + params["fc_z_b"] @ wiz + params["fc_in_b"]).astype(f32)

    # --- pre-split qkv; fold 1/sqrt(hd) into Q weights & bias ----------------
    scale = 1.0 / math.sqrt(hd)
    wqkv, bqkv = params["wqkv"], params["bqkv"]
    wq = (wqkv[:, :, :D] * scale).astype(bf16)
    wk = wqkv[:, :, D:2 * D].astype(bf16)
    wv = wqkv[:, :, 2 * D:].astype(bf16)
    bq = (bqkv[:, :, :D] * scale).astype(f32)
    bk = bqkv[:, :, D:2 * D].astype(f32)
    bv = bqkv[:, :, 2 * D:].astype(f32)

    # per-head row blocks of W_o stacked on the leading axis
    woh = params["wo"].reshape(num_layers, nhead, hd, D) \
                      .reshape(num_layers * nhead, hd, D).astype(bf16)
    bo = params["bo"].astype(f32)
    w1 = params["w1"].astype(bf16)
    w2 = params["w2"].astype(bf16)
    b1 = params["b1"].astype(f32)
    b2 = params["b2"].astype(f32)
    g1, be1 = params["ln1_g"].astype(f32), params["ln1_b"].astype(f32)
    g2, be2 = params["ln2_g"].astype(f32), params["ln2_b"].astype(f32)

    # --- lane-dense (128-wide, zero padded) output head ----------------------
    wout_p = jnp.zeros((D, K_pad), f32).at[:, :K_out].set(params["fc_out_w"]).astype(bf16)
    bout_p = jnp.zeros((1, K_pad), f32).at[:, :K_out].set(params["fc_out_b"])

    # --- batch-tiled 1-D grid ("parallel" -> megacore / 2 TCs on v7x) --------
    if block_b is None:
        block_b = 1
    if B % block_b != 0 or ((block_b * N) % 8 != 0 and block_b * N != M):
        block_b = B                                           # single block fallback
    rows = block_b * N
    grid = (B // block_b,)

    def row_spec(cols):
        return pl.BlockSpec((rows, cols), lambda i: (i, 0))

    def resident(a):                                          # weights: stay in VMEM
        zeros = (0,) * a.ndim
        return pl.BlockSpec(a.shape, lambda i, _z=zeros: _z)

    weights = [W_lf, W_bf, W_zf, b_fused, wq, bq, wk, bk, wv, bv, woh, bo,
               g1, be1, w1, b1, w2, b2, g2, be2, wout_p, bout_p]

    # explicit VMEM sizing: weights + double-buffered row blocks + activations
    weight_bytes = sum(int(a.size) * a.dtype.itemsize for a in weights)
    io_bytes = 2 * rows * (L + b_size + z_dim + K_pad) * 4
    act_bytes = 4 * rows * (8 * D + 2 * dim_ff) + 4 * block_b * N * N * 4
    vmem_bytes = int(min(weight_bytes + 2 * io_bytes + 4 * act_bytes + (4 << 20),
                         128 * 1024 * 1024))

    kernel = functools.partial(_generator_kernel, bt=block_b, N=N, nhead=nhead,
                               num_layers=num_layers, label_size=L)
    out = pl.pallas_call(
        kernel,
        grid=grid,
        in_specs=[row_spec(L), row_spec(b_size), row_spec(z_dim)]
                 + [resident(a) for a in weights],
        out_specs=pl.BlockSpec((rows, K_pad), lambda i: (i, 0)),
        out_shape=jax.ShapeDtypeStruct((M, K_pad), jnp.float32),
        compiler_params=pltpu.CompilerParams(
            dimension_semantics=("parallel",),
            vmem_limit_bytes=vmem_bytes),
    )(label2, bbox2, z2, *weights)
    return out[:, :K_out].reshape(B, N, K_out)


# ----------------------------------------------------------------------------
# Parameter initialization (deterministic, synthetic)
# ----------------------------------------------------------------------------
def _init_linear(key, fan_in, fan_out, scale=0.05):
    kw, kb = jax.random.split(key)
    w = jax.random.normal(kw, (fan_in, fan_out), jnp.float32) * scale
    b = jax.random.normal(kb, (fan_out,), jnp.float32) * scale
    return w, b.reshape(1, fan_out)


def init_params(key, b_size, label_size, d_model, nhead, num_layers, z_dim,
                dim_ff):
    ks = jax.random.split(key, 6)
    p = {}
    p["emb_label_w"], p["emb_label_b"] = _init_linear(ks[0], label_size, d_model // 2)
    p["fc_b_w"], p["fc_b_b"] = _init_linear(ks[1], b_size, d_model // 2)
    p["fc_z_w"], p["fc_z_b"] = _init_linear(ks[2], z_dim, 32)
    p["fc_in_w"], p["fc_in_b"] = _init_linear(ks[3], d_model + 32, d_model)
    p["fc_out_w"], p["fc_out_b"] = _init_linear(ks[4], d_model, label_size + 4)

    wqkv, bqkv, wo, bo, w1, b1, w2, b2 = ([] for _ in range(8))
    for lk in jax.random.split(ks[5], num_layers):
        k1, k2, k3, k4 = jax.random.split(lk, 4)
        w, b_ = _init_linear(k1, d_model, 3 * d_model); wqkv.append(w); bqkv.append(b_)
        w, b_ = _init_linear(k2, d_model, d_model);     wo.append(w);   bo.append(b_)
        w, b_ = _init_linear(k3, d_model, dim_ff);      w1.append(w);   b1.append(b_)
        w, b_ = _init_linear(k4, dim_ff, d_model);      w2.append(w);   b2.append(b_)
    p["wqkv"] = jnp.stack(wqkv); p["bqkv"] = jnp.stack(bqkv)
    p["wo"] = jnp.stack(wo);     p["bo"] = jnp.stack(bo)
    p["w1"] = jnp.stack(w1);     p["b1"] = jnp.stack(b1)
    p["w2"] = jnp.stack(w2);     p["b2"] = jnp.stack(b2)
    p["ln1_g"] = jnp.ones((num_layers, 1, d_model), jnp.float32)
    p["ln1_b"] = jnp.zeros((num_layers, 1, d_model), jnp.float32)
    p["ln2_g"] = jnp.ones((num_layers, 1, d_model), jnp.float32)
    p["ln2_b"] = jnp.zeros((num_layers, 1, d_model), jnp.float32)
    return p


# ----------------------------------------------------------------------------
# Pure-JAX reference (f32, for a numerical sanity check)
# ----------------------------------------------------------------------------
def _reference_forward(params, label, bbox, latent_z, *, nhead, num_layers):
    B, N, L = label.shape
    D = params["fc_in_w"].shape[1]
    hd = D // nhead
    l = label @ params["emb_label_w"] + params["emb_label_b"][0]
    b = bbox @ params["fc_b_w"] + params["fc_b_b"][0]
    z = latent_z @ params["fc_z_w"] + params["fc_z_b"][0]
    x = jnp.concatenate([l, b, z], axis=-1)
    x = jax.nn.relu(x @ params["fc_in_w"] + params["fc_in_b"][0])
    for li in range(num_layers):
        qkv = x @ params["wqkv"][li] + params["bqkv"][li][0]
        q, k, v = jnp.split(qkv, 3, axis=-1)
        q = q.reshape(B, N, nhead, hd).transpose(0, 2, 1, 3)
        k = k.reshape(B, N, nhead, hd).transpose(0, 2, 1, 3)
        v = v.reshape(B, N, nhead, hd).transpose(0, 2, 1, 3)
        s = jnp.einsum('bhqd,bhkd->bhqk', q, k) / jnp.sqrt(hd)
        p = jax.nn.softmax(s, axis=-1)
        o = jnp.einsum('bhqk,bhkd->bhqd', p, v).transpose(0, 2, 1, 3).reshape(B, N, D)
        attn = o @ params["wo"][li] + params["bo"][li][0]
        x = _layernorm(x + attn, params["ln1_g"][li][0], params["ln1_b"][li][0])
        ff = (jax.nn.relu(x @ params["w1"][li] + params["b1"][li][0])
              @ params["w2"][li] + params["b2"][li][0])
        x = _layernorm(x + ff, params["ln2_g"][li][0], params["ln2_b"][li][0])
    y = x @ params["fc_out_w"] + params["fc_out_b"][0]
    cls = jax.nn.softmax(y[..., :L], axis=-1)
    box = jax.nn.sigmoid(y[..., L:])
    return jnp.concatenate([cls, box], axis=-1)


# ----------------------------------------------------------------------------
if __name__ == "__main__":
    b_size, label_size, z_dim = 4, 5, 4
    d_model, nhead, num_layers, dim_ff = 32, 4, 2, 64
    B, N = 2, 8

    key = jax.random.PRNGKey(0)
    kp, kl, kb, kz = jax.random.split(key, 4)
    params = init_params(kp, b_size, label_size, d_model, nhead, num_layers,
                         z_dim, dim_ff)

    label = jax.nn.one_hot(jax.random.randint(kl, (B, N), 0, label_size),
                           label_size, dtype=jnp.float32)
    bbox = jax.random.uniform(kb, (B, N, b_size), dtype=jnp.float32)
    latent_z = jax.random.normal(kz, (B, N, z_dim), dtype=jnp.float32)
    padding_mask = jnp.zeros((B, N), dtype=bool)

    run = jax.jit(functools.partial(generator_forward, nhead=nhead,
                                    num_layers=num_layers))
    out = run(params, label, bbox, latent_z, padding_mask)
    out = jax.block_until_ready(out)

    assert out.shape == (B, N, label_size + 4)
    assert bool(jnp.all(jnp.isfinite(out)))
    cls = out[..., :label_size]
    box = out[..., label_size:]
    assert bool(jnp.all(jnp.abs(jnp.sum(cls, axis=-1) - 1.0) < 1e-4))
    assert bool(jnp.all((box >= 0.0) & (box <= 1.0)))

    ref = _reference_forward(params, label, bbox, latent_z,
                             nhead=nhead, num_layers=num_layers)
    # bf16 MXU operands + approx softmax reciprocal are intentional -> loose tol
    err = float(jnp.max(jnp.abs(out - ref)))
    assert bool(jnp.allclose(out, ref, atol=1e-2, rtol=1e-2)), err

    print("KERNEL_OK")
</pallas_src>

<mosaic_0001>
module attributes {stable_mosaic.version = 11 : i64} {
  func.func @_generator_kernel(%arg0: i32, %arg1: memref<8x5xf32, #tpu.memory_space<vmem>>, %arg2: memref<8x4xf32, #tpu.memory_space<vmem>>, %arg3: memref<8x4xf32, #tpu.memory_space<vmem>>, %arg4: memref<5x32xbf16, #tpu.memory_space<vmem>>, %arg5: memref<4x32xbf16, #tpu.memory_space<vmem>>, %arg6: memref<4x32xbf16, #tpu.memory_space<vmem>>, %arg7: memref<1x32xf32, #tpu.memory_space<vmem>>, %arg8: memref<2x32x32xbf16, #tpu.memory_space<vmem>>, %arg9: memref<2x1x32xf32, #tpu.memory_space<vmem>>, %arg10: memref<2x32x32xbf16, #tpu.memory_space<vmem>>, %arg11: memref<2x1x32xf32, #tpu.memory_space<vmem>>, %arg12: memref<2x32x32xbf16, #tpu.memory_space<vmem>>, %arg13: memref<2x1x32xf32, #tpu.memory_space<vmem>>, %arg14: memref<8x8x32xbf16, #tpu.memory_space<vmem>>, %arg15: memref<2x1x32xf32, #tpu.memory_space<vmem>>, %arg16: memref<2x1x32xf32, #tpu.memory_space<vmem>>, %arg17: memref<2x1x32xf32, #tpu.memory_space<vmem>>, %arg18: memref<2x32x64xbf16, #tpu.memory_space<vmem>>, %arg19: memref<2x1x64xf32, #tpu.memory_space<vmem>>, %arg20: memref<2x64x32xbf16, #tpu.memory_space<vmem>>, %arg21: memref<2x1x32xf32, #tpu.memory_space<vmem>>, %arg22: memref<2x1x32xf32, #tpu.memory_space<vmem>>, %arg23: memref<2x1x32xf32, #tpu.memory_space<vmem>>, %arg24: memref<32x128xbf16, #tpu.memory_space<vmem>>, %arg25: memref<1x128xf32, #tpu.memory_space<vmem>>, %arg26: memref<8x128xf32, #tpu.memory_space<vmem>>) attributes {dimension_semantics = [#tpu.dimension_semantics<parallel>], iteration_bounds = array<i64: 2>, scalar_prefetch = 0 : i64, scratch_operands = 0 : i64, tpu.core_type = #tpu.core_type<tc>, window_params = [{transform_indices = @transform_0, window_bounds = array<i64: 8, 5>}, {transform_indices = @transform_1, window_bounds = array<i64: 8, 4>}, {transform_indices = @transform_2, window_bounds = array<i64: 8, 4>}, {pipeline_mode = #tpu.pipeline_mode<synchronous>, transform_indices = @transform_3, window_bounds = array<i64: 5, 32>}, {pipeline_mode = #tpu.pipeline_mode<synchronous>, transform_indices = @transform_4, window_bounds = array<i64: 4, 32>}, {pipeline_mode = #tpu.pipeline_mode<synchronous>, transform_indices = @transform_5, window_bounds = array<i64: 4, 32>}, {pipeline_mode = #tpu.pipeline_mode<synchronous>, transform_indices = @transform_6, window_bounds = array<i64: 1, 32>}, {pipeline_mode = #tpu.pipeline_mode<synchronous>, transform_indices = @transform_7, window_bounds = array<i64: 2, 32, 32>}, {pipeline_mode = #tpu.pipeline_mode<synchronous>, transform_indices = @transform_8, window_bounds = array<i64: 2, 1, 32>}, {pipeline_mode = #tpu.pipeline_mode<synchronous>, transform_indices = @transform_9, window_bounds = array<i64: 2, 32, 32>}, {pipeline_mode = #tpu.pipeline_mode<synchronous>, transform_indices = @transform_10, window_bounds = array<i64: 2, 1, 32>}, {pipeline_mode = #tpu.pipeline_mode<synchronous>, transform_indices = @transform_11, window_bounds = array<i64: 2, 32, 32>}, {pipeline_mode = #tpu.pipeline_mode<synchronous>, transform_indices = @transform_12, window_bounds = array<i64: 2, 1, 32>}, {pipeline_mode = #tpu.pipeline_mode<synchronous>, transform_indices = @transform_13, window_bounds = array<i64: 8, 8, 32>}, {pipeline_mode = #tpu.pipeline_mode<synchronous>, transform_indices = @transform_14, window_bounds = array<i64: 2, 1, 32>}, {pipeline_mode = #tpu.pipeline_mode<synchronous>, transform_indices = @transform_15, window_bounds = array<i64: 2, 1, 32>}, {pipeline_mode = #tpu.pipeline_mode<synchronous>, transform_indices = @transform_16, window_bounds = array<i64: 2, 1, 32>}, {pipeline_mode = #tpu.pipeline_mode<synchronous>, transform_indices = @transform_17, window_bounds = array<i64: 2, 32, 64>}, {pipeline_mode = #tpu.pipeline_mode<synchronous>, transform_indices = @transform_18, window_bounds = array<i64: 2, 1, 64>}, {pipeline_mode = #tpu.pipeline_mode<synchronous>, transform_indices = @transform_19, window_bounds = array<i64: 2, 64, 32>}, {pipeline_mode = #tpu.pipeline_mode<synchronous>, transform_indices = @transform_20, window_bounds = array<i64: 2, 1, 32>}, {pipeline_mode = #tpu.pipeline_mode<synchronous>, transform_indices = @transform_21, window_bounds = array<i64: 2, 1, 32>}, {pipeline_mode = #tpu.pipeline_mode<synchronous>, transform_indices = @transform_22, window_bounds = array<i64: 2, 1, 32>}, {pipeline_mode = #tpu.pipeline_mode<synchronous>, transform_indices = @transform_23, window_bounds = array<i64: 32, 128>}, {pipeline_mode = #tpu.pipeline_mode<synchronous>, transform_indices = @transform_24, window_bounds = array<i64: 1, 128>}, {transform_indices = @transform_25, window_bounds = array<i64: 8, 128>}]} {
    %c0 = arith.constant 0 : index
    %c0_0 = arith.constant 0 : index
    %0 = vector.load %arg1[%c0, %c0_0] : memref<8x5xf32, #tpu.memory_space<vmem>>, vector<8x5xf32>
    %1 = arith.truncf %0 : vector<8x5xf32> to vector<8x5xbf16>
    %c0_1 = arith.constant 0 : index
    %c0_2 = arith.constant 0 : index
    %2 = vector.load %arg4[%c0_1, %c0_2] : memref<5x32xbf16, #tpu.memory_space<vmem>>, vector<5x32xbf16>
    %cst = arith.constant dense<0.000000e+00> : vector<8x32xf32>
    %3 = tpu.matmul %1, %2, %cst {dimension_numbers = #tpu.dot_dimension_numbers<[1], [0], [0], [1], [0, 0, 1, 1], [], []>} : vector<8x5xbf16>, vector<5x32xbf16>, vector<8x32xf32> -> vector<8x32xf32>
    %c0_3 = arith.constant 0 : index
    %c0_4 = arith.constant 0 : index
    %4 = vector.load %arg2[%c0_3, %c0_4] : memref<8x4xf32, #tpu.memory_space<vmem>>, vector<8x4xf32>
    %5 = arith.truncf %4 : vector<8x4xf32> to vector<8x4xbf16>
    %c0_5 = arith.constant 0 : index
    %c0_6 = arith.constant 0 : index
    %6 = vector.load %arg5[%c0_5, %c0_6] : memref<4x32xbf16, #tpu.memory_space<vmem>>, vector<4x32xbf16>
    %cst_7 = arith.constant dense<0.000000e+00> : vector<8x32xf32>
    %7 = tpu.matmul %5, %6, %cst_7 {dimension_numbers = #tpu.dot_dimension_numbers<[1], [0], [0], [1], [0, 0, 1, 1], [], []>} : vector<8x4xbf16>, vector<4x32xbf16>, vector<8x32xf32> -> vector<8x32xf32>
    %8 = arith.addf %3, %7 : vector<8x32xf32>
    %c0_8 = arith.constant 0 : index
    %c0_9 = arith.constant 0 : index
    %9 = vector.load %arg3[%c0_8, %c0_9] : memref<8x4xf32, #tpu.memory_space<vmem>>, vector<8x4xf32>
    %10 = arith.truncf %9 : vector<8x4xf32> to vector<8x4xbf16>
    %c0_10 = arith.constant 0 : index
    %c0_11 = arith.constant 0 : index
    %11 = vector.load %arg6[%c0_10, %c0_11] : memref<4x32xbf16, #tpu.memory_space<vmem>>, vector<4x32xbf16>
    %cst_12 = arith.constant dense<0.000000e+00> : vector<8x32xf32>
    %12 = tpu.matmul %10, %11, %cst_12 {dimension_numbers = #tpu.dot_dimension_numbers<[1], [0], [0], [1], [0, 0, 1, 1], [], []>} : vector<8x4xbf16>, vector<4x32xbf16>, vector<8x32xf32> -> vector<8x32xf32>
    %13 = arith.addf %8, %12 : vector<8x32xf32>
    %c0_13 = arith.constant 0 : index
    %c0_14 = arith.constant 0 : index
    %14 = vector.load %arg7[%c0_13, %c0_14] : memref<1x32xf32, #tpu.memory_space<vmem>>, vector<1x32xf32>
    %15 = vector.broadcast %14 : vector<1x32xf32> to vector<8x32xf32>
    %16 = arith.addf %13, %15 : vector<8x32xf32>
    %cst_15 = arith.constant 0.000000e+00 : f32
    %17 = vector.broadcast %cst_15 : f32 to vector<8x32xf32>
    %18 = arith.maximumf %16, %17 : vector<8x32xf32>
    %19 = arith.truncf %18 : vector<8x32xf32> to vector<8x32xbf16>
    %c0_16 = arith.constant 0 : index
    %c0_17 = arith.constant 0 : index
    %c0_18 = arith.constant 0 : index
    %20 = vector.load %arg8[%c0_16, %c0_17, %c0_18] : memref<2x32x32xbf16, #tpu.memory_space<vmem>>, vector<1x32x32xbf16>
    %21 = vector.shape_cast %20 : vector<1x32x32xbf16> to vector<32x32xbf16>
    %cst_19 = arith.constant dense<0.000000e+00> : vector<8x32xf32>
    %22 = tpu.matmul %19, %21, %cst_19 {dimension_numbers = #tpu.dot_dimension_numbers<[1], [0], [0], [1], [0, 0, 1, 1], [], []>} : vector<8x32xbf16>, vector<32x32xbf16>, vector<8x32xf32> -> vector<8x32xf32>
    %c0_20 = arith.constant 0 : index
    %c0_21 = arith.constant 0 : index
    %c0_22 = arith.constant 0 : index
    %23 = vector.load %arg9[%c0_20, %c0_21, %c0_22] : memref<2x1x32xf32, #tpu.memory_space<vmem>>, vector<1x1x32xf32>
    %24 = vector.shape_cast %23 : vector<1x1x32xf32> to vector<1x32xf32>
    %25 = vector.broadcast %24 : vector<1x32xf32> to vector<8x32xf32>
    %26 = arith.addf %22, %25 : vector<8x32xf32>
    %c0_23 = arith.constant 0 : index
    %c0_24 = arith.constant 0 : index
    %c0_25 = arith.constant 0 : index
    %27 = vector.load %arg10[%c0_23, %c0_24, %c0_25] : memref<2x32x32xbf16, #tpu.memory_space<vmem>>, vector<1x32x32xbf16>
    %28 = vector.shape_cast %27 : vector<1x32x32xbf16> to vector<32x32xbf16>
    %cst_26 = arith.constant dense<0.000000e+00> : vector<8x32xf32>
    %29 = tpu.matmul %19, %28, %cst_26 {dimension_numbers = #tpu.dot_dimension_numbers<[1], [0], [0], [1], [0, 0, 1, 1], [], []>} : vector<8x32xbf16>, vector<32x32xbf16>, vector<8x32xf32> -> vector<8x32xf32>
    %c0_27 = arith.constant 0 : index
    %c0_28 = arith.constant 0 : index
    %c0_29 = arith.constant 0 : index
    %30 = vector.load %arg11[%c0_27, %c0_28, %c0_29] : memref<2x1x32xf32, #tpu.memory_space<vmem>>, vector<1x1x32xf32>
    %31 = vector.shape_cast %30 : vector<1x1x32xf32> to vector<1x32xf32>
    %32 = vector.broadcast %31 : vector<1x32xf32> to vector<8x32xf32>
    %33 = arith.addf %29, %32 : vector<8x32xf32>
    %c0_30 = arith.constant 0 : index
    %c0_31 = arith.constant 0 : index
    %c0_32 = arith.constant 0 : index
    %34 = vector.load %arg12[%c0_30, %c0_31, %c0_32] : memref<2x32x32xbf16, #tpu.memory_space<vmem>>, vector<1x32x32xbf16>
    %35 = vector.shape_cast %34 : vector<1x32x32xbf16> to vector<32x32xbf16>
    %cst_33 = arith.constant dense<0.000000e+00> : vector<8x32xf32>
    %36 = tpu.matmul %19, %35, %cst_33 {dimension_numbers = #tpu.dot_dimension_numbers<[1], [0], [0], [1], [0, 0, 1, 1], [], []>} : vector<8x32xbf16>, vector<32x32xbf16>, vector<8x32xf32> -> vector<8x32xf32>
    %c0_34 = arith.constant 0 : index
    %c0_35 = arith.constant 0 : index
    %c0_36 = arith.constant 0 : index
    %37 = vector.load %arg13[%c0_34, %c0_35, %c0_36] : memref<2x1x32xf32, #tpu.memory_space<vmem>>, vector<1x1x32xf32>
    %38 = vector.shape_cast %37 : vector<1x1x32xf32> to vector<1x32xf32>
    %39 = vector.broadcast %38 : vector<1x32xf32> to vector<8x32xf32>
    %40 = arith.addf %36, %39 : vector<8x32xf32>
    %41 = vector.shape_cast %26 : vector<8x32xf32> to vector<1x8x32xf32>
    %42 = arith.truncf %41 : vector<1x8x32xf32> to vector<1x8x32xbf16>
    %43 = vector.shape_cast %33 : vector<8x32xf32> to vector<1x8x32xf32>
    %44 = arith.truncf %43 : vector<1x8x32xf32> to vector<1x8x32xbf16>
    %45 = vector.shape_cast %40 : vector<8x32xf32> to vector<1x8x32xf32>
    %46 = arith.truncf %45 : vector<1x8x32xf32> to vector<1x8x32xbf16>
    %47 = vector.extract_strided_slice %42 {offsets = [0, 0, 0], sizes = [1, 8, 8], strides = [1, 1, 1]} : vector<1x8x32xbf16> to vector<1x8x8xbf16>
    %48 = vector.extract_strided_slice %44 {offsets = [0, 0, 0], sizes = [1, 8, 8], strides = [1, 1, 1]} : vector<1x8x32xbf16> to vector<1x8x8xbf16>
    "tpu.trace_start"() <{level = 10 : i32, message = "bqd,bkd->bqk"}> : () -> ()
    %cst_37 = arith.constant dense<0.000000e+00> : vector<1x8x8xf32>
    %49 = tpu.matmul %47, %48, %cst_37 {dimension_numbers = #tpu.dot_dimension_numbers<[2], [2], [1], [1], [0, 0, 0, 1, 1, 1], [0], [0]>} : vector<1x8x8xbf16>, vector<1x8x8xbf16>, vector<1x8x8xf32> -> vector<1x8x8xf32>
    "tpu.trace_stop"() : () -> ()
    %cst_38 = arith.constant dense<0xFF800000> : vector<1x8xf32>
    %50 = vector.multi_reduction <maximumf>, %49, %cst_38 [2] : vector<1x8x8xf32> to vector<1x8xf32>
    %51 = vector.shape_cast %50 : vector<1x8xf32> to vector<1x8x1xf32>
    %52 = vector.broadcast %51 : vector<1x8x1xf32> to vector<1x8x8xf32>
    %53 = arith.subf %49, %52 : vector<1x8x8xf32>
    %54 = math.exp %53 : vector<1x8x8xf32>
    %cst_39 = arith.constant dense<0.000000e+00> : vector<1x8xf32>
    %55 = vector.multi_reduction <add>, %54, %cst_39 [2] : vector<1x8x8xf32> to vector<1x8xf32>
    %56 = vector.shape_cast %55 : vector<1x8xf32> to vector<1x8x1xf32>
    %57 = tpu.reciprocal %56 {approx = true} : vector<1x8x1xf32> -> vector<1x8x1xf32>
    %58 = vector.broadcast %57 : vector<1x8x1xf32> to vector<1x8x8xf32>
    %59 = arith.mulf %54, %58 : vector<1x8x8xf32>
    %60 = arith.truncf %59 : vector<1x8x8xf32> to vector<1x8x8xbf16>
    %61 = vector.extract_strided_slice %46 {offsets = [0, 0, 0], sizes = [1, 8, 8], strides = [1, 1, 1]} : vector<1x8x32xbf16> to vector<1x8x8xbf16>
    "tpu.trace_start"() <{level = 10 : i32, message = "bqk,bkd->bqd"}> : () -> ()
    %cst_40 = arith.constant dense<0.000000e+00> : vector<1x8x8xf32>
    %62 = tpu.matmul %60, %61, %cst_40 {dimension_numbers = #tpu.dot_dimension_numbers<[2], [1], [1], [2], [0, 0, 0, 1, 1, 2], [0], [0]>} : vector<1x8x8xbf16>, vector<1x8x8xbf16>, vector<1x8x8xf32> -> vector<1x8x8xf32>
    "tpu.trace_stop"() : () -> ()
    %63 = vector.shape_cast %62 : vector<1x8x8xf32> to vector<8x8xf32>
    %64 = arith.truncf %63 : vector<8x8xf32> to vector<8x8xbf16>
    %c0_41 = arith.constant 0 : index
    %c0_42 = arith.constant 0 : index
    %c0_43 = arith.constant 0 : index
    %65 = vector.load %arg14[%c0_41, %c0_42, %c0_43] : memref<8x8x32xbf16, #tpu.memory_space<vmem>>, vector<1x8x32xbf16>
    %66 = vector.shape_cast %65 : vector<1x8x32xbf16> to vector<8x32xbf16>
    %cst_44 = arith.constant dense<0.000000e+00> : vector<8x32xf32>
    %67 = tpu.matmul %64, %66, %cst_44 {dimension_numbers = #tpu.dot_dimension_numbers<[1], [0], [0], [1], [0, 0, 1, 1], [], []>} : vector<8x8xbf16>, vector<8x32xbf16>, vector<8x32xf32> -> vector<8x32xf32>
    %68 = vector.extract_strided_slice %42 {offsets = [0, 0, 8], sizes = [1, 8, 8], strides = [1, 1, 1]} : vector<1x8x32xbf16> to vector<1x8x8xbf16>
    %69 = vector.extract_strided_slice %44 {offsets = [0, 0, 8], sizes = [1, 8, 8], strides = [1, 1, 1]} : vector<1x8x32xbf16> to vector<1x8x8xbf16>
    "tpu.trace_start"() <{level = 10 : i32, message = "bqd,bkd->bqk"}> : () -> ()
    %cst_45 = arith.constant dense<0.000000e+00> : vector<1x8x8xf32>
    %70 = tpu.matmul %68, %69, %cst_45 {dimension_numbers = #tpu.dot_dimension_numbers<[2], [2], [1], [1], [0, 0, 0, 1, 1, 1], [0], [0]>} : vector<1x8x8xbf16>, vector<1x8x8xbf16>, vector<1x8x8xf32> -> vector<1x8x8xf32>
    "tpu.trace_stop"() : () -> ()
    %cst_46 = arith.constant dense<0xFF800000> : vector<1x8xf32>
    %71 = vector.multi_reduction <maximumf>, %70, %cst_46 [2] : vector<1x8x8xf32> to vector<1x8xf32>
    %72 = vector.shape_cast %71 : vector<1x8xf32> to vector<1x8x1xf32>
    %73 = vector.broadcast %72 : vector<1x8x1xf32> to vector<1x8x8xf32>
    %74 = arith.subf %70, %73 : vector<1x8x8xf32>
    %75 = math.exp %74 : vector<1x8x8xf32>
    %cst_47 = arith.constant dense<0.000000e+00> : vector<1x8xf32>
    %76 = vector.multi_reduction <add>, %75, %cst_47 [2] : vector<1x8x8xf32> to vector<1x8xf32>
    %77 = vector.shape_cast %76 : vector<1x8xf32> to vector<1x8x1xf32>
    %78 = tpu.reciprocal %77 {approx = true} : vector<1x8x1xf32> -> vector<1x8x1xf32>
    %79 = vector.broadcast %78 : vector<1x8x1xf32> to vector<1x8x8xf32>
    %80 = arith.mulf %75, %79 : vector<1x8x8xf32>
    %81 = arith.truncf %80 : vector<1x8x8xf32> to vector<1x8x8xbf16>
    %82 = vector.extract_strided_slice %46 {offsets = [0, 0, 8], sizes = [1, 8, 8], strides = [1, 1, 1]} : vector<1x8x32xbf16> to vector<1x8x8xbf16>
    "tpu.trace_start"() <{level = 10 : i32, message = "bqk,bkd->bqd"}> : () -> ()
    %cst_48 = arith.constant dense<0.000000e+00> : vector<1x8x8xf32>
    %83 = tpu.matmul %81, %82, %cst_48 {dimension_numbers = #tpu.dot_dimension_numbers<[2], [1], [1], [2], [0, 0, 0, 1, 1, 2], [0], [0]>} : vector<1x8x8xbf16>, vector<1x8x8xbf16>, vector<1x8x8xf32> -> vector<1x8x8xf32>
    "tpu.trace_stop"() : () -> ()
    %84 = vector.shape_cast %83 : vector<1x8x8xf32> to vector<8x8xf32>
    %85 = arith.truncf %84 : vector<8x8xf32> to vector<8x8xbf16>
    %c1 = arith.constant 1 : index
    %c0_49 = arith.constant 0 : index
    %c0_50 = arith.constant 0 : index
    %86 = vector.load %arg14[%c1, %c0_49, %c0_50] : memref<8x8x32xbf16, #tpu.memory_space<vmem>>, vector<1x8x32xbf16>
    %87 = vector.shape_cast %86 : vector<1x8x32xbf16> to vector<8x32xbf16>
    %cst_51 = arith.constant dense<0.000000e+00> : vector<8x32xf32>
    %88 = tpu.matmul %85, %87, %cst_51 {dimension_numbers = #tpu.dot_dimension_numbers<[1], [0], [0], [1], [0, 0, 1, 1], [], []>} : vector<8x8xbf16>, vector<8x32xbf16>, vector<8x32xf32> -> vector<8x32xf32>
    %89 = arith.addf %67, %88 : vector<8x32xf32>
    %90 = vector.extract_strided_slice %42 {offsets = [0, 0, 16], sizes = [1, 8, 8], strides = [1, 1, 1]} : vector<1x8x32xbf16> to vector<1x8x8xbf16>
    %91 = vector.extract_strided_slice %44 {offsets = [0, 0, 16], sizes = [1, 8, 8], strides = [1, 1, 1]} : vector<1x8x32xbf16> to vector<1x8x8xbf16>
    "tpu.trace_start"() <{level = 10 : i32, message = "bqd,bkd->bqk"}> : () -> ()
    %cst_52 = arith.constant dense<0.000000e+00> : vector<1x8x8xf32>
    %92 = tpu.matmul %90, %91, %cst_52 {dimension_numbers = #tpu.dot_dimension_numbers<[2], [2], [1], [1], [0, 0, 0, 1, 1, 1], [0], [0]>} : vector<1x8x8xbf16>, vector<1x8x8xbf16>, vector<1x8x8xf32> -> vector<1x8x8xf32>
    "tpu.trace_stop"() : () -> ()
    %cst_53 = arith.constant dense<0xFF800000> : vector<1x8xf32>
    %93 = vector.multi_reduction <maximumf>, %92, %cst_53 [2] : vector<1x8x8xf32> to vector<1x8xf32>
    %94 = vector.shape_cast %93 : vector<1x8xf32> to vector<1x8x1xf32>
    %95 = vector.broadcast %94 : vector<1x8x1xf32> to vector<1x8x8xf32>
    %96 = arith.subf %92, %95 : vector<1x8x8xf32>
    %97 = math.exp %96 : vector<1x8x8xf32>
    %cst_54 = arith.constant dense<0.000000e+00> : vector<1x8xf32>
    %98 = vector.multi_reduction <add>, %97, %cst_54 [2] : vector<1x8x8xf32> to vector<1x8xf32>
    %99 = vector.shape_cast %98 : vector<1x8xf32> to vector<1x8x1xf32>
    %100 = tpu.reciprocal %99 {approx = true} : vector<1x8x1xf32> -> vector<1x8x1xf32>
    %101 = vector.broadcast %100 : vector<1x8x1xf32> to vector<1x8x8xf32>
    %102 = arith.mulf %97, %101 : vector<1x8x8xf32>
    %103 = arith.truncf %102 : vector<1x8x8xf32> to vector<1x8x8xbf16>
    %104 = vector.extract_strided_slice %46 {offsets = [0, 0, 16], sizes = [1, 8, 8], strides = [1, 1, 1]} : vector<1x8x32xbf16> to vector<1x8x8xbf16>
    "tpu.trace_start"() <{level = 10 : i32, message = "bqk,bkd->bqd"}> : () -> ()
    %cst_55 = arith.constant dense<0.000000e+00> : vector<1x8x8xf32>
    %105 = tpu.matmul %103, %104, %cst_55 {dimension_numbers = #tpu.dot_dimension_numbers<[2], [1], [1], [2], [0, 0, 0, 1, 1, 2], [0], [0]>} : vector<1x8x8xbf16>, vector<1x8x8xbf16>, vector<1x8x8xf32> -> vector<1x8x8xf32>
    "tpu.trace_stop"() : () -> ()
    %106 = vector.shape_cast %105 : vector<1x8x8xf32> to vector<8x8xf32>
    %107 = arith.truncf %106 : vector<8x8xf32> to vector<8x8xbf16>
    %c2 = arith.constant 2 : index
    %c0_56 = arith.constant 0 : index
    %c0_57 = arith.constant 0 : index
    %108 = vector.load %arg14[%c2, %c0_56, %c0_57] : memref<8x8x32xbf16, #tpu.memory_space<vmem>>, vector<1x8x32xbf16>
    %109 = vector.shape_cast %108 : vector<1x8x32xbf16> to vector<8x32xbf16>
    %cst_58 = arith.constant dense<0.000000e+00> : vector<8x32xf32>
    %110 = tpu.matmul %107, %109, %cst_58 {dimension_numbers = #tpu.dot_dimension_numbers<[1], [0], [0], [1], [0, 0, 1, 1], [], []>} : vector<8x8xbf16>, vector<8x32xbf16>, vector<8x32xf32> -> vector<8x32xf32>
    %111 = arith.addf %89, %110 : vector<8x32xf32>
    %112 = vector.extract_strided_slice %42 {offsets = [0, 0, 24], sizes = [1, 8, 8], strides = [1, 1, 1]} : vector<1x8x32xbf16> to vector<1x8x8xbf16>
    %113 = vector.extract_strided_slice %44 {offsets = [0, 0, 24], sizes = [1, 8, 8], strides = [1, 1, 1]} : vector<1x8x32xbf16> to vector<1x8x8xbf16>
    "tpu.trace_start"() <{level = 10 : i32, message = "bqd,bkd->bqk"}> : () -> ()
    %cst_59 = arith.constant dense<0.000000e+00> : vector<1x8x8xf32>
    %114 = tpu.matmul %112, %113, %cst_59 {dimension_numbers = #tpu.dot_dimension_numbers<[2], [2], [1], [1], [0, 0, 0, 1, 1, 1], [0], [0]>} : vector<1x8x8xbf16>, vector<1x8x8xbf16>, vector<1x8x8xf32> -> vector<1x8x8xf32>
    "tpu.trace_stop"() : () -> ()
    %cst_60 = arith.constant dense<0xFF800000> : vector<1x8xf32>
    %115 = vector.multi_reduction <maximumf>, %114, %cst_60 [2] : vector<1x8x8xf32> to vector<1x8xf32>
    %116 = vector.shape_cast %115 : vector<1x8xf32> to vector<1x8x1xf32>
    %117 = vector.broadcast %116 : vector<1x8x1xf32> to vector<1x8x8xf32>
    %118 = arith.subf %114, %117 : vector<1x8x8xf32>
    %119 = math.exp %118 : vector<1x8x8xf32>
    %cst_61 = arith.constant dense<0.000000e+00> : vector<1x8xf32>
    %120 = vector.multi_reduction <add>, %119, %cst_61 [2] : vector<1x8x8xf32> to vector<1x8xf32>
    %121 = vector.shape_cast %120 : vector<1x8xf32> to vector<1x8x1xf32>
    %122 = tpu.reciprocal %121 {approx = true} : vector<1x8x1xf32> -> vector<1x8x1xf32>
    %123 = vector.broadcast %122 : vector<1x8x1xf32> to vector<1x8x8xf32>
    %124 = arith.mulf %119, %123 : vector<1x8x8xf32>
    %125 = arith.truncf %124 : vector<1x8x8xf32> to vector<1x8x8xbf16>
    %126 = vector.extract_strided_slice %46 {offsets = [0, 0, 24], sizes = [1, 8, 8], strides = [1, 1, 1]} : vector<1x8x32xbf16> to vector<1x8x8xbf16>
    "tpu.trace_start"() <{level = 10 : i32, message = "bqk,bkd->bqd"}> : () -> ()
    %cst_62 = arith.constant dense<0.000000e+00> : vector<1x8x8xf32>
    %127 = tpu.matmul %125, %126, %cst_62 {dimension_numbers = #tpu.dot_dimension_numbers<[2], [1], [1], [2], [0, 0, 0, 1, 1, 2], [0], [0]>} : vector<1x8x8xbf16>, vector<1x8x8xbf16>, vector<1x8x8xf32> -> vector<1x8x8xf32>
    "tpu.trace_stop"() : () -> ()
    %128 = vector.shape_cast %127 : vector<1x8x8xf32> to vector<8x8xf32>
    %129 = arith.truncf %128 : vector<8x8xf32> to vector<8x8xbf16>
    %c3 = arith.constant 3 : index
    %c0_63 = arith.constant 0 : index
    %c0_64 = arith.constant 0 : index
    %130 = vector.load %arg14[%c3, %c0_63, %c0_64] : memref<8x8x32xbf16, #tpu.memory_space<vmem>>, vector<1x8x32xbf16>
    %131 = vector.shape_cast %130 : vector<1x8x32xbf16> to vector<8x32xbf16>
    %cst_65 = arith.constant dense<0.000000e+00> : vector<8x32xf32>
    %132 = tpu.matmul %129, %131, %cst_65 {dimension_numbers = #tpu.dot_dimension_numbers<[1], [0], [0], [1], [0, 0, 1, 1], [], []>} : vector<8x8xbf16>, vector<8x32xbf16>, vector<8x32xf32> -> vector<8x32xf32>
    %133 = arith.addf %111, %132 : vector<8x32xf32>
    %c0_66 = arith.constant 0 : index
    %c0_67 = arith.constant 0 : index
    %c0_68 = arith.constant 0 : index
    %134 = vector.load %arg15[%c0_66, %c0_67, %c0_68] : memref<2x1x32xf32, #tpu.memory_space<vmem>>, vector<1x1x32xf32>
    %135 = vector.shape_cast %134 : vector<1x1x32xf32> to vector<1x32xf32>
    %136 = vector.broadcast %135 : vector<1x32xf32> to vector<8x32xf32>
    %137 = arith.addf %133, %136 : vector<8x32xf32>
    %138 = arith.addf %18, %137 : vector<8x32xf32>
    %c0_69 = arith.constant 0 : index
    %c0_70 = arith.constant 0 : index
    %c0_71 = arith.constant 0 : index
    %139 = vector.load %arg16[%c0_69, %c0_70, %c0_71] : memref<2x1x32xf32, #tpu.memory_space<vmem>>, vector<1x1x32xf32>
    %140 = vector.shape_cast %139 : vector<1x1x32xf32> to vector<1x32xf32>
    %c0_72 = arith.constant 0 : index
    %c0_73 = arith.constant 0 : index
    %c0_74 = arith.constant 0 : index
    %141 = vector.load %arg17[%c0_72, %c0_73, %c0_74] : memref<2x1x32xf32, #tpu.memory_space<vmem>>, vector<1x1x32xf32>
    %142 = vector.shape_cast %141 : vector<1x1x32xf32> to vector<1x32xf32>
    %cst_75 = arith.constant dense<0.000000e+00> : vector<8xf32>
    %143 = vector.multi_reduction <add>, %138, %cst_75 [1] : vector<8x32xf32> to vector<8xf32>
    %144 = vector.shape_cast %143 : vector<8xf32> to vector<8x1xf32>
    %cst_76 = arith.constant 3.200000e+01 : f32
    %145 = vector.broadcast %cst_76 : f32 to vector<8x1xf32>
    %146 = arith.divf %144, %145 : vector<8x1xf32>
    %147 = vector.broadcast %146 : vector<8x1xf32> to vector<8x32xf32>
    %148 = arith.subf %138, %147 : vector<8x32xf32>
    %149 = arith.mulf %148, %148 : vector<8x32xf32>
    %cst_77 = arith.constant dense<0.000000e+00> : vector<8xf32>
    %150 = vector.multi_reduction <add>, %149, %cst_77 [1] : vector<8x32xf32> to vector<8xf32>
    %151 = vector.shape_cast %150 : vector<8xf32> to vector<8x1xf32>
    %cst_78 = arith.constant 3.200000e+01 : f32
    %152 = vector.broadcast %cst_78 : f32 to vector<8x1xf32>
    %153 = arith.divf %151, %152 : vector<8x1xf32>
    %154 = vector.broadcast %146 : vector<8x1xf32> to vector<8x32xf32>
    %155 = arith.subf %138, %154 : vector<8x32xf32>
    %cst_79 = arith.constant 9.99999974E-6 : f32
    %156 = vector.broadcast %cst_79 : f32 to vector<8x1xf32>
    %157 = arith.addf %153, %156 : vector<8x1xf32>
    %158 = math.rsqrt %157 : vector<8x1xf32>
    %159 = vector.broadcast %158 : vector<8x1xf32> to vector<8x32xf32>
    %160 = arith.mulf %155, %159 : vector<8x32xf32>
    %161 = vector.broadcast %140 : vector<1x32xf32> to vector<8x32xf32>
    %162 = arith.mulf %160, %161 : vector<8x32xf32>
    %163 = vector.broadcast %142 : vector<1x32xf32> to vector<8x32xf32>
    %164 = arith.addf %162, %163 : vector<8x32xf32>
    %165 = arith.truncf %164 : vector<8x32xf32> to vector<8x32xbf16>
    %c0_80 = arith.constant 0 : index
    %c0_81 = arith.constant 0 : index
    %c0_82 = arith.constant 0 : index
    %166 = vector.load %arg18[%c0_80, %c0_81, %c0_82] : memref<2x32x64xbf16, #tpu.memory_space<vmem>>, vector<1x32x64xbf16>
    %167 = vector.shape_cast %166 : vector<1x32x64xbf16> to vector<32x64xbf16>
    %cst_83 = arith.constant dense<0.000000e+00> : vector<8x64xf32>
    %168 = tpu.matmul %165, %167, %cst_83 {dimension_numbers = #tpu.dot_dimension_numbers<[1], [0], [0], [1], [0, 0, 1, 1], [], []>} : vector<8x32xbf16>, vector<32x64xbf16>, vector<8x64xf32> -> vector<8x64xf32>
    %c0_84 = arith.constant 0 : index
    %c0_85 = arith.constant 0 : index
    %c0_86 = arith.constant 0 : index
    %169 = vector.load %arg19[%c0_84, %c0_85, %c0_86] : memref<2x1x64xf32, #tpu.memory_space<vmem>>, vector<1x1x64xf32>
    %170 = vector.shape_cast %169 : vector<1x1x64xf32> to vector<1x64xf32>
    %171 = vector.broadcast %170 : vector<1x64xf32> to vector<8x64xf32>
    %172 = arith.addf %168, %171 : vector<8x64xf32>
    %cst_87 = arith.constant 0.000000e+00 : f32
    %173 = vector.broadcast %cst_87 : f32 to vector<8x64xf32>
    %174 = arith.maximumf %172, %173 : vector<8x64xf32>
    %175 = arith.truncf %174 : vector<8x64xf32> to vector<8x64xbf16>
    %c0_88 = arith.constant 0 : index
    %c0_89 = arith.constant 0 : index
    %c0_90 = arith.constant 0 : index
    %176 = vector.load %arg20[%c0_88, %c0_89, %c0_90] : memref<2x64x32xbf16, #tpu.memory_space<vmem>>, vector<1x64x32xbf16>
    %177 = vector.shape_cast %176 : vector<1x64x32xbf16> to vector<64x32xbf16>
    %cst_91 = arith.constant dense<0.000000e+00> : vector<8x32xf32>
    %178 = tpu.matmul %175, %177, %cst_91 {dimension_numbers = #tpu.dot_dimension_numbers<[1], [0], [0], [1], [0, 0, 1, 1], [], []>} : vector<8x64xbf16>, vector<64x32xbf16>, vector<8x32xf32> -> vector<8x32xf32>
    %c0_92 = arith.constant 0 : index
    %c0_93 = arith.constant 0 : index
    %c0_94 = arith.constant 0 : index
    %179 = vector.load %arg21[%c0_92, %c0_93, %c0_94] : memref<2x1x32xf32, #tpu.memory_space<vmem>>, vector<1x1x32xf32>
    %180 = vector.shape_cast %179 : vector<1x1x32xf32> to vector<1x32xf32>
    %181 = vector.broadcast %180 : vector<1x32xf32> to vector<8x32xf32>
    %182 = arith.addf %178, %181 : vector<8x32xf32>
    %183 = arith.addf %164, %182 : vector<8x32xf32>
    %c0_95 = arith.constant 0 : index
    %c0_96 = arith.constant 0 : index
    %c0_97 = arith.constant 0 : index
    %184 = vector.load %arg22[%c0_95, %c0_96, %c0_97] : memref<2x1x32xf32, #tpu.memory_space<vmem>>, vector<1x1x32xf32>
    %185 = vector.shape_cast %184 : vector<1x1x32xf32> to vector<1x32xf32>
    %c0_98 = arith.constant 0 : index
    %c0_99 = arith.constant 0 : index
    %c0_100 = arith.constant 0 : index
    %186 = vector.load %arg23[%c0_98, %c0_99, %c0_100] : memref<2x1x32xf32, #tpu.memory_space<vmem>>, vector<1x1x32xf32>
    %187 = vector.shape_cast %186 : vector<1x1x32xf32> to vector<1x32xf32>
    %cst_101 = arith.constant dense<0.000000e+00> : vector<8xf32>
    %188 = vector.multi_reduction <add>, %183, %cst_101 [1] : vector<8x32xf32> to vector<8xf32>
    %189 = vector.shape_cast %188 : vector<8xf32> to vector<8x1xf32>
    %cst_102 = arith.constant 3.200000e+01 : f32
    %190 = vector.broadcast %cst_102 : f32 to vector<8x1xf32>
    %191 = arith.divf %189, %190 : vector<8x1xf32>
    %192 = vector.broadcast %191 : vector<8x1xf32> to vector<8x32xf32>
    %193 = arith.subf %183, %192 : vector<8x32xf32>
    %194 = arith.mulf %193, %193 : vector<8x32xf32>
    %cst_103 = arith.constant dense<0.000000e+00> : vector<8xf32>
    %195 = vector.multi_reduction <add>, %194, %cst_103 [1] : vector<8x32xf32> to vector<8xf32>
    %196 = vector.shape_cast %195 : vector<8xf32> to vector<8x1xf32>
    %cst_104 = arith.constant 3.200000e+01 : f32
    %197 = vector.broadcast %cst_104 : f32 to vector<8x1xf32>
    %198 = arith.divf %196, %197 : vector<8x1xf32>
    %199 = vector.broadcast %191 : vector<8x1xf32> to vector<8x32xf32>
    %200 = arith.subf %183, %199 : vector<8x32xf32>
    %cst_105 = arith.constant 9.99999974E-6 : f32
    %201 = vector.broadcast %cst_105 : f32 to vector<8x1xf32>
    %202 = arith.addf %198, %201 : vector<8x1xf32>
    %203 = math.rsqrt %202 : vector<8x1xf32>
    %204 = vector.broadcast %203 : vector<8x1xf32> to vector<8x32xf32>
    %205 = arith.mulf %200, %204 : vector<8x32xf32>
    %206 = vector.broadcast %185 : vector<1x32xf32> to vector<8x32xf32>
    %207 = arith.mulf %205, %206 : vector<8x32xf32>
    %208 = vector.broadcast %187 : vector<1x32xf32> to vector<8x32xf32>
    %209 = arith.addf %207, %208 : vector<8x32xf32>
    %210 = arith.truncf %209 : vector<8x32xf32> to vector<8x32xbf16>
    %c1_106 = arith.constant 1 : index
    %c0_107 = arith.constant 0 : index
    %c0_108 = arith.constant 0 : index
    %211 = vector.load %arg8[%c1_106, %c0_107, %c0_108] : memref<2x32x32xbf16, #tpu.memory_space<vmem>>, vector<1x32x32xbf16>
    %212 = vector.shape_cast %211 : vector<1x32x32xbf16> to vector<32x32xbf16>
    %cst_109 = arith.constant dense<0.000000e+00> : vector<8x32xf32>
    %213 = tpu.matmul %210, %212, %cst_109 {dimension_numbers = #tpu.dot_dimension_numbers<[1], [0], [0], [1], [0, 0, 1, 1], [], []>} : vector<8x32xbf16>, vector<32x32xbf16>, vector<8x32xf32> -> vector<8x32xf32>
    %c1_110 = arith.constant 1 : index
    %c0_111 = arith.constant 0 : index
    %c0_112 = arith.constant 0 : index
    %214 = vector.load %arg9[%c1_110, %c0_111, %c0_112] : memref<2x1x32xf32, #tpu.memory_space<vmem>>, vector<1x1x32xf32>
    %215 = vector.shape_cast %214 : vector<1x1x32xf32> to vector<1x32xf32>
    %216 = vector.broadcast %215 : vector<1x32xf32> to vector<8x32xf32>
    %217 = arith.addf %213, %216 : vector<8x32xf32>
    %c1_113 = arith.constant 1 : index
    %c0_114 = arith.constant 0 : index
    %c0_115 = arith.constant 0 : index
    %218 = vector.load %arg10[%c1_113, %c0_114, %c0_115] : memref<2x32x32xbf16, #tpu.memory_space<vmem>>, vector<1x32x32xbf16>
    %219 = vector.shape_cast %218 : vector<1x32x32xbf16> to vector<32x32xbf16>
    %cst_116 = arith.constant dense<0.000000e+00> : vector<8x32xf32>
    %220 = tpu.matmul %210, %219, %cst_116 {dimension_numbers = #tpu.dot_dimension_numbers<[1], [0], [0], [1], [0, 0, 1, 1], [], []>} : vector<8x32xbf16>, vector<32x32xbf16>, vector<8x32xf32> -> vector<8x32xf32>
    %c1_117 = arith.constant 1 : index
    %c0_118 = arith.constant 0 : index
    %c0_119 = arith.constant 0 : index
    %221 = vector.load %arg11[%c1_117, %c0_118, %c0_119] : memref<2x1x32xf32, #tpu.memory_space<vmem>>, vector<1x1x32xf32>
    %222 = vector.shape_cast %221 : vector<1x1x32xf32> to vector<1x32xf32>
    %223 = vector.broadcast %222 : vector<1x32xf32> to vector<8x32xf32>
    %224 = arith.addf %220, %223 : vector<8x32xf32>
    %c1_120 = arith.constant 1 : index
    %c0_121 = arith.constant 0 : index
    %c0_122 = arith.constant 0 : index
    %225 = vector.load %arg12[%c1_120, %c0_121, %c0_122] : memref<2x32x32xbf16, #tpu.memory_space<vmem>>, vector<1x32x32xbf16>
    %226 = vector.shape_cast %225 : vector<1x32x32xbf16> to vector<32x32xbf16>
    %cst_123 = arith.constant dense<0.000000e+00> : vector<8x32xf32>
    %227 = tpu.matmul %210, %226, %cst_123 {dimension_numbers = #tpu.dot_dimension_numbers<[1], [0], [0], [1], [0, 0, 1, 1], [], []>} : vector<8x32xbf16>, vector<32x32xbf16>, vector<8x32xf32> -> vector<8x32xf32>
    %c1_124 = arith.constant 1 : index
    %c0_125 = arith.constant 0 : index
    %c0_126 = arith.constant 0 : index
    %228 = vector.load %arg13[%c1_124, %c0_125, %c0_126] : memref<2x1x32xf32, #tpu.memory_space<vmem>>, vector<1x1x32xf32>
    %229 = vector.shape_cast %228 : vector<1x1x32xf32> to vector<1x32xf32>
    %230 = vector.broadcast %229 : vector<1x32xf32> to vector<8x32xf32>
    %231 = arith.addf %227, %230 : vector<8x32xf32>
    %232 = vector.shape_cast %217 : vector<8x32xf32> to vector<1x8x32xf32>
    %233 = arith.truncf %232 : vector<1x8x32xf32> to vector<1x8x32xbf16>
    %234 = vector.shape_cast %224 : vector<8x32xf32> to vector<1x8x32xf32>
    %235 = arith.truncf %234 : vector<1x8x32xf32> to vector<1x8x32xbf16>
    %236 = vector.shape_cast %231 : vector<8x32xf32> to vector<1x8x32xf32>
    %237 = arith.truncf %236 : vector<1x8x32xf32> to vector<1x8x32xbf16>
    %238 = vector.extract_strided_slice %233 {offsets = [0, 0, 0], sizes = [1, 8, 8], strides = [1, 1, 1]} : vector<1x8x32xbf16> to vector<1x8x8xbf16>
    %239 = vector.extract_strided_slice %235 {offsets = [0, 0, 0], sizes = [1, 8, 8], strides = [1, 1, 1]} : vector<1x8x32xbf16> to vector<1x8x8xbf16>
    "tpu.trace_start"() <{level = 10 : i32, message = "bqd,bkd->bqk"}> : () -> ()
    %cst_127 = arith.constant dense<0.000000e+00> : vector<1x8x8xf32>
    %240 = tpu.matmul %238, %239, %cst_127 {dimension_numbers = #tpu.dot_dimension_numbers<[2], [2], [1], [1], [0, 0, 0, 1, 1, 1], [0], [0]>} : vector<1x8x8xbf16>, vector<1x8x8xbf16>, vector<1x8x8xf32> -> vector<1x8x8xf32>
    "tpu.trace_stop"() : () -> ()
    %cst_128 = arith.constant dense<0xFF800000> : vector<1x8xf32>
    %241 = vector.multi_reduction <maximumf>, %240, %cst_128 [2] : vector<1x8x8xf32> to vector<1x8xf32>
    %242 = vector.shape_cast %241 : vector<1x8xf32> to vector<1x8x1xf32>
    %243 = vector.broadcast %242 : vector<1x8x1xf32> to vector<1x8x8xf32>
    %244 = arith.subf %240, %243 : vector<1x8x8xf32>
    %245 = math.exp %244 : vector<1x8x8xf32>
    %cst_129 = arith.constant dense<0.000000e+00> : vector<1x8xf32>
    %246 = vector.multi_reduction <add>, %245, %cst_129 [2] : vector<1x8x8xf32> to vector<1x8xf32>
    %247 = vector.shape_cast %246 : vector<1x8xf32> to vector<1x8x1xf32>
    %248 = tpu.reciprocal %247 {approx = true} : vector<1x8x1xf32> -> vector<1x8x1xf32>
    %249 = vector.broadcast %248 : vector<1x8x1xf32> to vector<1x8x8xf32>
    %250 = arith.mulf %245, %249 : vector<1x8x8xf32>
    %251 = arith.truncf %250 : vector<1x8x8xf32> to vector<1x8x8xbf16>
    %252 = vector.extract_strided_slice %237 {offsets = [0, 0, 0], sizes = [1, 8, 8], strides = [1, 1, 1]} : vector<1x8x32xbf16> to vector<1x8x8xbf16>
    "tpu.trace_start"() <{level = 10 : i32, message = "bqk,bkd->bqd"}> : () -> ()
    %cst_130 = arith.constant dense<0.000000e+00> : vector<1x8x8xf32>
    %253 = tpu.matmul %251, %252, %cst_130 {dimension_numbers = #tpu.dot_dimension_numbers<[2], [1], [1], [2], [0, 0, 0, 1, 1, 2], [0], [0]>} : vector<1x8x8xbf16>, vector<1x8x8xbf16>, vector<1x8x8xf32> -> vector<1x8x8xf32>
    "tpu.trace_stop"() : () -> ()
    %254 = vector.shape_cast %253 : vector<1x8x8xf32> to vector<8x8xf32>
    %255 = arith.truncf %254 : vector<8x8xf32> to vector<8x8xbf16>
    %c4 = arith.constant 4 : index
    %c0_131 = arith.constant 0 : index
    %c0_132 = arith.constant 0 : index
    %256 = vector.load %arg14[%c4, %c0_131, %c0_132] : memref<8x8x32xbf16, #tpu.memory_space<vmem>>, vector<1x8x32xbf16>
    %257 = vector.shape_cast %256 : vector<1x8x32xbf16> to vector<8x32xbf16>
    %cst_133 = arith.constant dense<0.000000e+00> : vector<8x32xf32>
    %258 = tpu.matmul %255, %257, %cst_133 {dimension_numbers = #tpu.dot_dimension_numbers<[1], [0], [0], [1], [0, 0, 1, 1], [], []>} : vector<8x8xbf16>, vector<8x32xbf16>, vector<8x32xf32> -> vector<8x32xf32>
    %259 = vector.extract_strided_slice %233 {offsets = [0, 0, 8], sizes = [1, 8, 8], strides = [1, 1, 1]} : vector<1x8x32xbf16> to vector<1x8x8xbf16>
    %260 = vector.extract_strided_slice %235 {offsets = [0, 0, 8], sizes = [1, 8, 8], strides = [1, 1, 1]} : vector<1x8x32xbf16> to vector<1x8x8xbf16>
    "tpu.trace_start"() <{level = 10 : i32, message = "bqd,bkd->bqk"}> : () -> ()
    %cst_134 = arith.constant dense<0.000000e+00> : vector<1x8x8xf32>
    %261 = tpu.matmul %259, %260, %cst_134 {dimension_numbers = #tpu.dot_dimension_numbers<[2], [2], [1], [1], [0, 0, 0, 1, 1, 1], [0], [0]>} : vector<1x8x8xbf16>, vector<1x8x8xbf16>, vector<1x8x8xf32> -> vector<1x8x8xf32>
    "tpu.trace_stop"() : () -> ()
    %cst_135 = arith.constant dense<0xFF800000> : vector<1x8xf32>
    %262 = vector.multi_reduction <maximumf>, %261, %cst_135 [2] : vector<1x8x8xf32> to vector<1x8xf32>
    %263 = vector.shape_cast %262 : vector<1x8xf32> to vector<1x8x1xf32>
    %264 = vector.broadcast %263 : vector<1x8x1xf32> to vector<1x8x8xf32>
    %265 = arith.subf %261, %264 : vector<1x8x8xf32>
    %266 = math.exp %265 : vector<1x8x8xf32>
    %cst_136 = arith.constant dense<0.000000e+00> : vector<1x8xf32>
    %267 = vector.multi_reduction <add>, %266, %cst_136 [2] : vector<1x8x8xf32> to vector<1x8xf32>
    %268 = vector.shape_cast %267 : vector<1x8xf32> to vector<1x8x1xf32>
    %269 = tpu.reciprocal %268 {approx = true} : vector<1x8x1xf32> -> vector<1x8x1xf32>
    %270 = vector.broadcast %269 : vector<1x8x1xf32> to vector<1x8x8xf32>
    %271 = arith.mulf %266, %270 : vector<1x8x8xf32>
    %272 = arith.truncf %271 : vector<1x8x8xf32> to vector<1x8x8xbf16>
    %273 = vector.extract_strided_slice %237 {offsets = [0, 0, 8], sizes = [1, 8, 8], strides = [1, 1, 1]} : vector<1x8x32xbf16> to vector<1x8x8xbf16>
    "tpu.trace_start"() <{level = 10 : i32, message = "bqk,bkd->bqd"}> : () -> ()
    %cst_137 = arith.constant dense<0.000000e+00> : vector<1x8x8xf32>
    %274 = tpu.matmul %272, %273, %cst_137 {dimension_numbers = #tpu.dot_dimension_numbers<[2], [1], [1], [2], [0, 0, 0, 1, 1, 2], [0], [0]>} : vector<1x8x8xbf16>, vector<1x8x8xbf16>, vector<1x8x8xf32> -> vector<1x8x8xf32>
    "tpu.trace_stop"() : () -> ()
    %275 = vector.shape_cast %274 : vector<1x8x8xf32> to vector<8x8xf32>
    %276 = arith.truncf %275 : vector<8x8xf32> to vector<8x8xbf16>
    %c5 = arith.constant 5 : index
    %c0_138 = arith.constant 0 : index
    %c0_139 = arith.constant 0 : index
    %277 = vector.load %arg14[%c5, %c0_138, %c0_139] : memref<8x8x32xbf16, #tpu.memory_space<vmem>>, vector<1x8x32xbf16>
    %278 = vector.shape_cast %277 : vector<1x8x32xbf16> to vector<8x32xbf16>
    %cst_140 = arith.constant dense<0.000000e+00> : vector<8x32xf32>
    %279 = tpu.matmul %276, %278, %cst_140 {dimension_numbers = #tpu.dot_dimension_numbers<[1], [0], [0], [1], [0, 0, 1, 1], [], []>} : vector<8x8xbf16>, vector<8x32xbf16>, vector<8x32xf32> -> vector<8x32xf32>
    %280 = arith.addf %258, %279 : vector<8x32xf32>
    %281 = vector.extract_strided_slice %233 {offsets = [0, 0, 16], sizes = [1, 8, 8], strides = [1, 1, 1]} : vector<1x8x32xbf16> to vector<1x8x8xbf16>
    %282 = vector.extract_strided_slice %235 {offsets = [0, 0, 16], sizes = [1, 8, 8], strides = [1, 1, 1]} : vector<1x8x32xbf16> to vector<1x8x8xbf16>
    "tpu.trace_start"() <{level = 10 : i32, message = "bqd,bkd->bqk"}> : () -> ()
    %cst_141 = arith.constant dense<0.000000e+00> : vector<1x8x8xf32>
    %283 = tpu.matmul %281, %282, %cst_141 {dimension_numbers = #tpu.dot_dimension_numbers<[2], [2], [1], [1], [0, 0, 0, 1, 1, 1], [0], [0]>} : vector<1x8x8xbf16>, vector<1x8x8xbf16>, vector<1x8x8xf32> -> vector<1x8x8xf32>
    "tpu.trace_stop"() : () -> ()
    %cst_142 = arith.constant dense<0xFF800000> : vector<1x8xf32>
    %284 = vector.multi_reduction <maximumf>, %283, %cst_142 [2] : vector<1x8x8xf32> to vector<1x8xf32>
    %285 = vector.shape_cast %284 : vector<1x8xf32> to vector<1x8x1xf32>
    %286 = vector.broadcast %285 : vector<1x8x1xf32> to vector<1x8x8xf32>
    %287 = arith.subf %283, %286 : vector<1x8x8xf32>
    %288 = math.exp %287 : vector<1x8x8xf32>
    %cst_143 = arith.constant dense<0.000000e+00> : vector<1x8xf32>
    %289 = vector.multi_reduction <add>, %288, %cst_143 [2] : vector<1x8x8xf32> to vector<1x8xf32>
    %290 = vector.shape_cast %289 : vector<1x8xf32> to vector<1x8x1xf32>
    %291 = tpu.reciprocal %290 {approx = true} : vector<1x8x1xf32> -> vector<1x8x1xf32>
    %292 = vector.broadcast %291 : vector<1x8x1xf32> to vector<1x8x8xf32>
    %293 = arith.mulf %288, %292 : vector<1x8x8xf32>
    %294 = arith.truncf %293 : vector<1x8x8xf32> to vector<1x8x8xbf16>
    %295 = vector.extract_strided_slice %237 {offsets = [0, 0, 16], sizes = [1, 8, 8], strides = [1, 1, 1]} : vector<1x8x32xbf16> to vector<1x8x8xbf16>
    "tpu.trace_start"() <{level = 10 : i32, message = "bqk,bkd->bqd"}> : () -> ()
    %cst_144 = arith.constant dense<0.000000e+00> : vector<1x8x8xf32>
    %296 = tpu.matmul %294, %295, %cst_144 {dimension_numbers = #tpu.dot_dimension_numbers<[2], [1], [1], [2], [0, 0, 0, 1, 1, 2], [0], [0]>} : vector<1x8x8xbf16>, vector<1x8x8xbf16>, vector<1x8x8xf32> -> vector<1x8x8xf32>
    "tpu.trace_stop"() : () -> ()
    %297 = vector.shape_cast %296 : vector<1x8x8xf32> to vector<8x8xf32>
    %298 = arith.truncf %297 : vector<8x8xf32> to vector<8x8xbf16>
    %c6 = arith.constant 6 : index
    %c0_145 = arith.constant 0 : index
    %c0_146 = arith.constant 0 : index
    %299 = vector.load %arg14[%c6, %c0_145, %c0_146] : memref<8x8x32xbf16, #tpu.memory_space<vmem>>, vector<1x8x32xbf16>
    %300 = vector.shape_cast %299 : vector<1x8x32xbf16> to vector<8x32xbf16>
    %cst_147 = arith.constant dense<0.000000e+00> : vector<8x32xf32>
    %301 = tpu.matmul %298, %300, %cst_147 {dimension_numbers = #tpu.dot_dimension_numbers<[1], [0], [0], [1], [0, 0, 1, 1], [], []>} : vector<8x8xbf16>, vector<8x32xbf16>, vector<8x32xf32> -> vector<8x32xf32>
    %302 = arith.addf %280, %301 : vector<8x32xf32>
    %303 = vector.extract_strided_slice %233 {offsets = [0, 0, 24], sizes = [1, 8, 8], strides = [1, 1, 1]} : vector<1x8x32xbf16> to vector<1x8x8xbf16>
    %304 = vector.extract_strided_slice %235 {offsets = [0, 0, 24], sizes = [1, 8, 8], strides = [1, 1, 1]} : vector<1x8x32xbf16> to vector<1x8x8xbf16>
    "tpu.trace_start"() <{level = 10 : i32, message = "bqd,bkd->bqk"}> : () -> ()
    %cst_148 = arith.constant dense<0.000000e+00> : vector<1x8x8xf32>
    %305 = tpu.matmul %303, %304, %cst_148 {dimension_numbers = #tpu.dot_dimension_numbers<[2], [2], [1], [1], [0, 0, 0, 1, 1, 1], [0], [0]>} : vector<1x8x8xbf16>, vector<1x8x8xbf16>, vector<1x8x8xf32> -> vector<1x8x8xf32>
    "tpu.trace_stop"() : () -> ()
    %cst_149 = arith.constant dense<0xFF800000> : vector<1x8xf32>
    %306 = vector.multi_reduction <maximumf>, %305, %cst_149 [2] : vector<1x8x8xf32> to vector<1x8xf32>
    %307 = vector.shape_cast %306 : vector<1x8xf32> to vector<1x8x1xf32>
    %308 = vector.broadcast %307 : vector<1x8x1xf32> to vector<1x8x8xf32>
    %309 = arith.subf %305, %308 : vector<1x8x8xf32>
    %310 = math.exp %309 : vector<1x8x8xf32>
    %cst_150 = arith.constant dense<0.000000e+00> : vector<1x8xf32>
    %311 = vector.multi_reduction <add>, %310, %cst_150 [2] : vector<1x8x8xf32> to vector<1x8xf32>
    %312 = vector.shape_cast %311 : vector<1x8xf32> to vector<1x8x1xf32>
    %313 = tpu.reciprocal %312 {approx = true} : vector<1x8x1xf32> -> vector<1x8x1xf32>
    %314 = vector.broadcast %313 : vector<1x8x1xf32> to vector<1x8x8xf32>
    %315 = arith.mulf %310, %314 : vector<1x8x8xf32>
    %316 = arith.truncf %315 : vector<1x8x8xf32> to vector<1x8x8xbf16>
    %317 = vector.extract_strided_slice %237 {offsets = [0, 0, 24], sizes = [1, 8, 8], strides = [1, 1, 1]} : vector<1x8x32xbf16> to vector<1x8x8xbf16>
    "tpu.trace_start"() <{level = 10 : i32, message = "bqk,bkd->bqd"}> : () -> ()
    %cst_151 = arith.constant dense<0.000000e+00> : vector<1x8x8xf32>
    %318 = tpu.matmul %316, %317, %cst_151 {dimension_numbers = #tpu.dot_dimension_numbers<[2], [1], [1], [2], [0, 0, 0, 1, 1, 2], [0], [0]>} : vector<1x8x8xbf16>, vector<1x8x8xbf16>, vector<1x8x8xf32> -> vector<1x8x8xf32>
    "tpu.trace_stop"() : () -> ()
    %319 = vector.shape_cast %318 : vector<1x8x8xf32> to vector<8x8xf32>
    %320 = arith.truncf %319 : vector<8x8xf32> to vector<8x8xbf16>
    %c7 = arith.constant 7 : index
    %c0_152 = arith.constant 0 : index
    %c0_153 = arith.constant 0 : index
    %321 = vector.load %arg14[%c7, %c0_152, %c0_153] : memref<8x8x32xbf16, #tpu.memory_space<vmem>>, vector<1x8x32xbf16>
    %322 = vector.shape_cast %321 : vector<1x8x32xbf16> to vector<8x32xbf16>
    %cst_154 = arith.constant dense<0.000000e+00> : vector<8x32xf32>
    %323 = tpu.matmul %320, %322, %cst_154 {dimension_numbers = #tpu.dot_dimension_numbers<[1], [0], [0], [1], [0, 0, 1, 1], [], []>} : vector<8x8xbf16>, vector<8x32xbf16>, vector<8x32xf32> -> vector<8x32xf32>
    %324 = arith.addf %302, %323 : vector<8x32xf32>
    %c1_155 = arith.constant 1 : index
    %c0_156 = arith.constant 0 : index
    %c0_157 = arith.constant 0 : index
    %325 = vector.load %arg15[%c1_155, %c0_156, %c0_157] : memref<2x1x32xf32, #tpu.memory_space<vmem>>, vector<1x1x32xf32>
    %326 = vector.shape_cast %325 : vector<1x1x32xf32> to vector<1x32xf32>
    %327 = vector.broadcast %326 : vector<1x32xf32> to vector<8x32xf32>
    %328 = arith.addf %324, %327 : vector<8x32xf32>
    %329 = arith.addf %209, %328 : vector<8x32xf32>
    %c1_158 = arith.constant 1 : index
    %c0_159 = arith.constant 0 : index
    %c0_160 = arith.constant 0 : index
    %330 = vector.load %arg16[%c1_158, %c0_159, %c0_160] : memref<2x1x32xf32, #tpu.memory_space<vmem>>, vector<1x1x32xf32>
    %331 = vector.shape_cast %330 : vector<1x1x32xf32> to vector<1x32xf32>
    %c1_161 = arith.constant 1 : index
    %c0_162 = arith.constant 0 : index
    %c0_163 = arith.constant 0 : index
    %332 = vector.load %arg17[%c1_161, %c0_162, %c0_163] : memref<2x1x32xf32, #tpu.memory_space<vmem>>, vector<1x1x32xf32>
    %333 = vector.shape_cast %332 : vector<1x1x32xf32> to vector<1x32xf32>
    %cst_164 = arith.constant dense<0.000000e+00> : vector<8xf32>
    %334 = vector.multi_reduction <add>, %329, %cst_164 [1] : vector<8x32xf32> to vector<8xf32>
    %335 = vector.shape_cast %334 : vector<8xf32> to vector<8x1xf32>
    %cst_165 = arith.constant 3.200000e+01 : f32
    %336 = vector.broadcast %cst_165 : f32 to vector<8x1xf32>
    %337 = arith.divf %335, %336 : vector<8x1xf32>
    %338 = vector.broadcast %337 : vector<8x1xf32> to vector<8x32xf32>
    %339 = arith.subf %329, %338 : vector<8x32xf32>
    %340 = arith.mulf %339, %339 : vector<8x32xf32>
    %cst_166 = arith.constant dense<0.000000e+00> : vector<8xf32>
    %341 = vector.multi_reduction <add>, %340, %cst_166 [1] : vector<8x32xf32> to vector<8xf32>
    %342 = vector.shape_cast %341 : vector<8xf32> to vector<8x1xf32>
    %cst_167 = arith.constant 3.200000e+01 : f32
    %343 = vector.broadcast %cst_167 : f32 to vector<8x1xf32>
    %344 = arith.divf %342, %343 : vector<8x1xf32>
    %345 = vector.broadcast %337 : vector<8x1xf32> to vector<8x32xf32>
    %346 = arith.subf %329, %345 : vector<8x32xf32>
    %cst_168 = arith.constant 9.99999974E-6 : f32
    %347 = vector.broadcast %cst_168 : f32 to vector<8x1xf32>
    %348 = arith.addf %344, %347 : vector<8x1xf32>
    %349 = math.rsqrt %348 : vector<8x1xf32>
    %350 = vector.broadcast %349 : vector<8x1xf32> to vector<8x32xf32>
    %351 = arith.mulf %346, %350 : vector<8x32xf32>
    %352 = vector.broadcast %331 : vector<1x32xf32> to vector<8x32xf32>
    %353 = arith.mulf %351, %352 : vector<8x32xf32>
    %354 = vector.broadcast %333 : vector<1x32xf32> to vector<8x32xf32>
    %355 = arith.addf %353, %354 : vector<8x32xf32>
    %356 = arith.truncf %355 : vector<8x32xf32> to vector<8x32xbf16>
    %c1_169 = arith.constant 1 : index
    %c0_170 = arith.constant 0 : index
    %c0_171 = arith.constant 0 : index
    %357 = vector.load %arg18[%c1_169, %c0_170, %c0_171] : memref<2x32x64xbf16, #tpu.memory_space<vmem>>, vector<1x32x64xbf16>
    %358 = vector.shape_cast %357 : vector<1x32x64xbf16> to vector<32x64xbf16>
    %cst_172 = arith.constant dense<0.000000e+00> : vector<8x64xf32>
    %359 = tpu.matmul %356, %358, %cst_172 {dimension_numbers = #tpu.dot_dimension_numbers<[1], [0], [0], [1], [0, 0, 1, 1], [], []>} : vector<8x32xbf16>, vector<32x64xbf16>, vector<8x64xf32> -> vector<8x64xf32>
    %c1_173 = arith.constant 1 : index
    %c0_174 = arith.constant 0 : index
    %c0_175 = arith.constant 0 : index
    %360 = vector.load %arg19[%c1_173, %c0_174, %c0_175] : memref<2x1x64xf32, #tpu.memory_space<vmem>>, vector<1x1x64xf32>
    %361 = vector.shape_cast %360 : vector<1x1x64xf32> to vector<1x64xf32>
    %362 = vector.broadcast %361 : vector<1x64xf32> to vector<8x64xf32>
    %363 = arith.addf %359, %362 : vector<8x64xf32>
    %cst_176 = arith.constant 0.000000e+00 : f32
    %364 = vector.broadcast %cst_176 : f32 to vector<8x64xf32>
    %365 = arith.maximumf %363, %364 : vector<8x64xf32>
    %366 = arith.truncf %365 : vector<8x64xf32> to vector<8x64xbf16>
    %c1_177 = arith.constant 1 : index
    %c0_178 = arith.constant 0 : index
    %c0_179 = arith.constant 0 : index
    %367 = vector.load %arg20[%c1_177, %c0_178, %c0_179] : memref<2x64x32xbf16, #tpu.memory_space<vmem>>, vector<1x64x32xbf16>
    %368 = vector.shape_cast %367 : vector<1x64x32xbf16> to vector<64x32xbf16>
    %cst_180 = arith.constant dense<0.000000e+00> : vector<8x32xf32>
    %369 = tpu.matmul %366, %368, %cst_180 {dimension_numbers = #tpu.dot_dimension_numbers<[1], [0], [0], [1], [0, 0, 1, 1], [], []>} : vector<8x64xbf16>, vector<64x32xbf16>, vector<8x32xf32> -> vector<8x32xf32>
    %c1_181 = arith.constant 1 : index
    %c0_182 = arith.constant 0 : index
    %c0_183 = arith.constant 0 : index
    %370 = vector.load %arg21[%c1_181, %c0_182, %c0_183] : memref<2x1x32xf32, #tpu.memory_space<vmem>>, vector<1x1x32xf32>
    %371 = vector.shape_cast %370 : vector<1x1x32xf32> to vector<1x32xf32>
    %372 = vector.broadcast %371 : vector<1x32xf32> to vector<8x32xf32>
    %373 = arith.addf %369, %372 : vector<8x32xf32>
    %374 = arith.addf %355, %373 : vector<8x32xf32>
    %c1_184 = arith.constant 1 : index
    %c0_185 = arith.constant 0 : index
    %c0_186 = arith.constant 0 : index
    %375 = vector.load %arg22[%c1_184, %c0_185, %c0_186] : memref<2x1x32xf32, #tpu.memory_space<vmem>>, vector<1x1x32xf32>
    %376 = vector.shape_cast %375 : vector<1x1x32xf32> to vector<1x32xf32>
    %c1_187 = arith.constant 1 : index
    %c0_188 = arith.constant 0 : index
    %c0_189 = arith.constant 0 : index
    %377 = vector.load %arg23[%c1_187, %c0_188, %c0_189] : memref<2x1x32xf32, #tpu.memory_space<vmem>>, vector<1x1x32xf32>
    %378 = vector.shape_cast %377 : vector<1x1x32xf32> to vector<1x32xf32>
    %cst_190 = arith.constant dense<0.000000e+00> : vector<8xf32>
    %379 = vector.multi_reduction <add>, %374, %cst_190 [1] : vector<8x32xf32> to vector<8xf32>
    %380 = vector.shape_cast %379 : vector<8xf32> to vector<8x1xf32>
    %cst_191 = arith.constant 3.200000e+01 : f32
    %381 = vector.broadcast %cst_191 : f32 to vector<8x1xf32>
    %382 = arith.divf %380, %381 : vector<8x1xf32>
    %383 = vector.broadcast %382 : vector<8x1xf32> to vector<8x32xf32>
    %384 = arith.subf %374, %383 : vector<8x32xf32>
    %385 = arith.mulf %384, %384 : vector<8x32xf32>
    %cst_192 = arith.constant dense<0.000000e+00> : vector<8xf32>
    %386 = vector.multi_reduction <add>, %385, %cst_192 [1] : vector<8x32xf32> to vector<8xf32>
    %387 = vector.shape_cast %386 : vector<8xf32> to vector<8x1xf32>
    %cst_193 = arith.constant 3.200000e+01 : f32
    %388 = vector.broadcast %cst_193 : f32 to vector<8x1xf32>
    %389 = arith.divf %387, %388 : vector<8x1xf32>
    %390 = vector.broadcast %382 : vector<8x1xf32> to vector<8x32xf32>
    %391 = arith.subf %374, %390 : vector<8x32xf32>
    %cst_194 = arith.constant 9.99999974E-6 : f32
    %392 = vector.broadcast %cst_194 : f32 to vector<8x1xf32>
    %393 = arith.addf %389, %392 : vector<8x1xf32>
    %394 = math.rsqrt %393 : vector<8x1xf32>
    %395 = vector.broadcast %394 : vector<8x1xf32> to vector<8x32xf32>
    %396 = arith.mulf %391, %395 : vector<8x32xf32>
    %397 = vector.broadcast %376 : vector<1x32xf32> to vector<8x32xf32>
    %398 = arith.mulf %396, %397 : vector<8x32xf32>
    %399 = vector.broadcast %378 : vector<1x32xf32> to vector<8x32xf32>
    %400 = arith.addf %398, %399 : vector<8x32xf32>
    %401 = arith.truncf %400 : vector<8x32xf32> to vector<8x32xbf16>
    %c0_195 = arith.constant 0 : index
    %c0_196 = arith.constant 0 : index
    %402 = vector.load %arg24[%c0_195, %c0_196] : memref<32x128xbf16, #tpu.memory_space<vmem>>, vector<32x128xbf16>
    %cst_197 = arith.constant dense<0.000000e+00> : vector<8x128xf32>
    %403 = tpu.matmul %401, %402, %cst_197 {dimension_numbers = #tpu.dot_dimension_numbers<[1], [0], [0], [1], [0, 0, 1, 1], [], []>} : vector<8x32xbf16>, vector<32x128xbf16>, vector<8x128xf32> -> vector<8x128xf32>
    %c0_198 = arith.constant 0 : index
    %c0_199 = arith.constant 0 : index
    %404 = vector.load %arg25[%c0_198, %c0_199] : memref<1x128xf32, #tpu.memory_space<vmem>>, vector<1x128xf32>
    %405 = vector.broadcast %404 : vector<1x128xf32> to vector<8x128xf32>
    %406 = arith.addf %403, %405 : vector<8x128xf32>
    %407 = tpu.iota {dimensions = array<i32: 1>} : vector<8x128xi32>
    %c5_i32 = arith.constant 5 : i32
    %408 = vector.broadcast %c5_i32 : i32 to vector<8x128xi32>
    %409 = arith.cmpi slt, %407, %408 : vector<8x128xi32>
    %cst_200 = arith.constant 0xFF800000 : f32
    %410 = vector.broadcast %cst_200 : f32 to vector<8x128xf32>
    %411 = arith.select %409, %406, %410 : vector<8x128xi1>, vector<8x128xf32>
    %cst_201 = arith.constant dense<0xFF800000> : vector<8xf32>
    %412 = vector.multi_reduction <maximumf>, %411, %cst_201 [1] : vector<8x128xf32> to vector<8xf32>
    %413 = vector.shape_cast %412 : vector<8xf32> to vector<8x1xf32>
    %414 = vector.broadcast %413 : vector<8x1xf32> to vector<8x128xf32>
    %415 = arith.subf %406, %414 : vector<8x128xf32>
    %416 = math.exp %415 : vector<8x128xf32>
    %cst_202 = arith.constant 0.000000e+00 : f32
    %417 = vector.broadcast %cst_202 : f32 to vector<8x128xf32>
    %418 = arith.select %409, %416, %417 : vector<8x128xi1>, vector<8x128xf32>
    %cst_203 = arith.constant dense<0.000000e+00> : vector<8xf32>
    %419 = vector.multi_reduction <add>, %418, %cst_203 [1] : vector<8x128xf32> to vector<8xf32>
    %420 = vector.shape_cast %419 : vector<8xf32> to vector<8x1xf32>
    %421 = vector.broadcast %420 : vector<8x1xf32> to vector<8x128xf32>
    %422 = arith.divf %418, %421 : vector<8x128xf32>
    %423 = arith.negf %406 : vector<8x128xf32>
    %424 = math.exp %423 : vector<8x128xf32>
    %cst_204 = arith.constant 1.000000e+00 : f32
    %425 = vector.broadcast %cst_204 : f32 to vector<8x128xf32>
    %426 = arith.addf %425, %424 : vector<8x128xf32>
    %427 = arith.divf %425, %426 : vector<8x128xf32>
    %428 = arith.select %409, %422, %427 : vector<8x128xi1>, vector<8x128xf32>
    %c0_205 = arith.constant 0 : index
    %c0_206 = arith.constant 0 : index
    %429 = vector.load %arg26[%c0_205, %c0_206] : memref<8x128xf32, #tpu.memory_space<vmem>>, vector<8x128xf32>
    tpu.vector_store %arg26[%c0_205, %c0_206], %428 {strides = array<i32>} : memref<8x128xf32, #tpu.memory_space<vmem>>, vector<8x128xf32>,
    return
  }
  func.func @transform_0(%arg0: i32) -> (i32, i32) {
    %c0_i32 = arith.constant 0 : i32
    %c0_i32_0 = arith.constant 0 : i32
    return %arg0, %c0_i32 : i32, i32
  }
  func.func @transform_1(%arg0: i32) -> (i32, i32) {
    %c0_i32 = arith.constant 0 : i32
    %c0_i32_0 = arith.constant 0 : i32
    return %arg0, %c0_i32 : i32, i32
  }
  func.func @transform_2(%arg0: i32) -> (i32, i32) {
    %c0_i32 = arith.constant 0 : i32
    %c0_i32_0 = arith.constant 0 : i32
    return %arg0, %c0_i32 : i32, i32
  }
  func.func @transform_3(%arg0: i32) -> (i32, i32) {
    %c0_i32 = arith.constant 0 : i32
    %c0_i32_0 = arith.constant 0 : i32
    %c0_i32_1 = arith.constant 0 : i32
    return %c0_i32, %c0_i32_0 : i32, i32
  }
  func.func @transform_4(%arg0: i32) -> (i32, i32) {
    %c0_i32 = arith.constant 0 : i32
    %c0_i32_0 = arith.constant 0 : i32
    %c0_i32_1 = arith.constant 0 : i32
    return %c0_i32, %c0_i32_0 : i32, i32
  }
  func.func @transform_5(%arg0: i32) -> (i32, i32) {
    %c0_i32 = arith.constant 0 : i32
    %c0_i32_0 = arith.constant 0 : i32
    %c0_i32_1 = arith.constant 0 : i32
    return %c0_i32, %c0_i32_0 : i32, i32
  }
  func.func @transform_6(%arg0: i32) -> (i32, i32) {
    %c0_i32 = arith.constant 0 : i32
    %c0_i32_0 = arith.constant 0 : i32
    %c0_i32_1 = arith.constant 0 : i32
    return %c0_i32, %c0_i32_0 : i32, i32
  }
  func.func @transform_7(%arg0: i32) -> (i32, i32, i32) {
    %c0_i32 = arith.constant 0 : i32
    %c0_i32_0 = arith.constant 0 : i32
    %c0_i32_1 = arith.constant 0 : i32
    %c0_i32_2 = arith.constant 0 : i32
    return %c0_i32, %c0_i32_0, %c0_i32_1 : i32, i32, i32
  }
  func.func @transform_8(%arg0: i32) -> (i32, i32, i32) {
    %c0_i32 = arith.constant 0 : i32
    %c0_i32_0 = arith.constant 0 : i32
    %c0_i32_1 = arith.constant 0 : i32
    %c0_i32_2 = arith.constant 0 : i32
    return %c0_i32, %c0_i32_0, %c0_i32_1 : i32, i32, i32
  }
  func.func @transform_9(%arg0: i32) -> (i32, i32, i32) {
    %c0_i32 = arith.constant 0 : i32
    %c0_i32_0 = arith.constant 0 : i32
    %c0_i32_1 = arith.constant 0 : i32
    %c0_i32_2 = arith.constant 0 : i32
    return %c0_i32, %c0_i32_0, %c0_i32_1 : i32, i32, i32
  }
  func.func @transform_10(%arg0: i32) -> (i32, i32, i32) {
    %c0_i32 = arith.constant 0 : i32
    %c0_i32_0 = arith.constant 0 : i32
    %c0_i32_1 = arith.constant 0 : i32
    %c0_i32_2 = arith.constant 0 : i32
    return %c0_i32, %c0_i32_0, %c0_i32_1 : i32, i32, i32
  }
  func.func @transform_11(%arg0: i32) -> (i32, i32, i32) {
    %c0_i32 = arith.constant 0 : i32
    %c0_i32_0 = arith.constant 0 : i32
    %c0_i32_1 = arith.constant 0 : i32
    %c0_i32_2 = arith.constant 0 : i32
    return %c0_i32, %c0_i32_0, %c0_i32_1 : i32, i32, i32
  }
  func.func @transform_12(%arg0: i32) -> (i32, i32, i32) {
    %c0_i32 = arith.constant 0 : i32
    %c0_i32_0 = arith.constant 0 : i32
    %c0_i32_1 = arith.constant 0 : i32
    %c0_i32_2 = arith.constant 0 : i32
    return %c0_i32, %c0_i32_0, %c0_i32_1 : i32, i32, i32
  }
  func.func @transform_13(%arg0: i32) -> (i32, i32, i32) {
    %c0_i32 = arith.constant 0 : i32
    %c0_i32_0 = arith.constant 0 : i32
    %c0_i32_1 = arith.constant 0 : i32
    %c0_i32_2 = arith.constant 0 : i32
    return %c0_i32, %c0_i32_0, %c0_i32_1 : i32, i32, i32
  }
  func.func @transform_14(%arg0: i32) -> (i32, i32, i32) {
    %c0_i32 = arith.constant 0 : i32
    %c0_i32_0 = arith.constant 0 : i32
    %c0_i32_1 = arith.constant 0 : i32
    %c0_i32_2 = arith.constant 0 : i32
    return %c0_i32, %c0_i32_0, %c0_i32_1 : i32, i32, i32
  }
  func.func @transform_15(%arg0: i32) -> (i32, i32, i32) {
    %c0_i32 = arith.constant 0 : i32
    %c0_i32_0 = arith.constant 0 : i32
    %c0_i32_1 = arith.constant 0 : i32
    %c0_i32_2 = arith.constant 0 : i32
    return %c0_i32, %c0_i32_0, %c0_i32_1 : i32, i32, i32
  }
  func.func @transform_16(%arg0: i32) -> (i32, i32, i32) {
    %c0_i32 = arith.constant 0 : i32
    %c0_i32_0 = arith.constant 0 : i32
    %c0_i32_1 = arith.constant 0 : i32
    %c0_i32_2 = arith.constant 0 : i32
    return %c0_i32, %c0_i32_0, %c0_i32_1 : i32, i32, i32
  }
  func.func @transform_17(%arg0: i32) -> (i32, i32, i32) {
    %c0_i32 = arith.constant 0 : i32
    %c0_i32_0 = arith.constant 0 : i32
    %c0_i32_1 = arith.constant 0 : i32
    %c0_i32_2 = arith.constant 0 : i32
    return %c0_i32, %c0_i32_0, %c0_i32_1 : i32, i32, i32
  }
  func.func @transform_18(%arg0: i32) -> (i32, i32, i32) {
    %c0_i32 = arith.constant 0 : i32
    %c0_i32_0 = arith.constant 0 : i32
    %c0_i32_1 = arith.constant 0 : i32
    %c0_i32_2 = arith.constant 0 : i32
    return %c0_i32, %c0_i32_0, %c0_i32_1 : i32, i32, i32
  }
  func.func @transform_19(%arg0: i32) -> (i32, i32, i32) {
    %c0_i32 = arith.constant 0 : i32
    %c0_i32_0 = arith.constant 0 : i32
    %c0_i32_1 = arith.constant 0 : i32
    %c0_i32_2 = arith.constant 0 : i32
    return %c0_i32, %c0_i32_0, %c0_i32_1 : i32, i32, i32
  }
  func.func @transform_20(%arg0: i32) -> (i32, i32, i32) {
    %c0_i32 = arith.constant 0 : i32
    %c0_i32_0 = arith.constant 0 : i32
    %c0_i32_1 = arith.constant 0 : i32
    %c0_i32_2 = arith.constant 0 : i32
    return %c0_i32, %c0_i32_0, %c0_i32_1 : i32, i32, i32
  }
  func.func @transform_21(%arg0: i32) -> (i32, i32, i32) {
    %c0_i32 = arith.constant 0 : i32
    %c0_i32_0 = arith.constant 0 : i32
    %c0_i32_1 = arith.constant 0 : i32
    %c0_i32_2 = arith.constant 0 : i32
    return %c0_i32, %c0_i32_0, %c0_i32_1 : i32, i32, i32
  }
  func.func @transform_22(%arg0: i32) -> (i32, i32, i32) {
    %c0_i32 = arith.constant 0 : i32
    %c0_i32_0 = arith.constant 0 : i32
    %c0_i32_1 = arith.constant 0 : i32
    %c0_i32_2 = arith.constant 0 : i32
    return %c0_i32, %c0_i32_0, %c0_i32_1 : i32, i32, i32
  }
  func.func @transform_23(%arg0: i32) -> (i32, i32) {
    %c0_i32 = arith.constant 0 : i32
    %c0_i32_0 = arith.constant 0 : i32
    %c0_i32_1 = arith.constant 0 : i32
    return %c0_i32, %c0_i32_0 : i32, i32
  }
  func.func @transform_24(%arg0: i32) -> (i32, i32) {
    %c0_i32 = arith.constant 0 : i32
    %c0_i32_0 = arith.constant 0 : i32
    %c0_i32_1 = arith.constant 0 : i32
    return %c0_i32, %c0_i32_0 : i32, i32
  }
  func.func @transform_25(%arg0: i32) -> (i32, i32) {
    %c0_i32 = arith.constant 0 : i32
    %c0_i32_0 = arith.constant 0 : i32
    return %arg0, %c0_i32 : i32, i32
  }
}

</mosaic_0001>

<llo_original>
// kernel: generator_forward.1
$region0: #{generator_forward.1}
  #allocation0 [shape = 'u32[]', space=smem, size = 0x4, offset = 0x4, fixed_abs, tag = 'smem constant byte address 0x4 - core index']
  #allocation1 [shape = 'u32[144,128]{1,0:T(1,128)}', space=vmem, size = 0x12000, scoped, tag = 'internal scratch']
  %s0 = inlined_call_operand.vmem [shape: f32[16,5], index: 0, kind: input, shape index: {}]
  %s1 = inlined_call_operand.vmem [shape: f32[16,4], index: 1, kind: input, shape index: {}]
  %s2 = inlined_call_operand.vmem [shape: f32[16,4], index: 2, kind: input, shape index: {}]
  %s3 = inlined_call_operand.vmem [shape: bf16[5,32], index: 3, kind: input, shape index: {}]
  %s4 = inlined_call_operand.vmem [shape: bf16[4,32], index: 4, kind: input, shape index: {}]
  %s5 = inlined_call_operand.vmem [shape: bf16[4,32], index: 5, kind: input, shape index: {}]
  %s6 = inlined_call_operand.vmem [shape: f32[1,32], index: 6, kind: input, shape index: {}]
  %s7 = inlined_call_operand.vmem [shape: bf16[2,32,32], index: 7, kind: input, shape index: {}]
  %s8 = inlined_call_operand.vmem [shape: f32[2,1,32], index: 8, kind: input, shape index: {}]
  %s9 = inlined_call_operand.vmem [shape: bf16[2,32,32], index: 9, kind: input, shape index: {}]
  %s10 = inlined_call_operand.vmem [shape: f32[2,1,32], index: 10, kind: input, shape index: {}]
  %s11 = inlined_call_operand.vmem [shape: bf16[2,32,32], index: 11, kind: input, shape index: {}]
  %s12 = inlined_call_operand.vmem [shape: f32[2,1,32], index: 12, kind: input, shape index: {}]
  %s13 = inlined_call_operand.vmem [shape: bf16[8,8,32], index: 13, kind: input, shape index: {}]
  %s14 = inlined_call_operand.vmem [shape: f32[2,1,32], index: 14, kind: input, shape index: {}]
  %s15 = inlined_call_operand.vmem [shape: f32[2,1,32], index: 15, kind: input, shape index: {}]
  %s16 = inlined_call_operand.vmem [shape: f32[2,1,32], index: 16, kind: input, shape index: {}]
  %s17 = inlined_call_operand.vmem [shape: bf16[2,32,64], index: 17, kind: input, shape index: {}]
  %s18 = inlined_call_operand.vmem [shape: f32[2,1,64], index: 18, kind: input, shape index: {}]
  %s19 = inlined_call_operand.vmem [shape: bf16[2,64,32], index: 19, kind: input, shape index: {}]
  %s20 = inlined_call_operand.vmem [shape: f32[2,1,32], index: 20, kind: input, shape index: {}]
  %s21 = inlined_call_operand.vmem [shape: f32[2,1,32], index: 21, kind: input, shape index: {}]
  %s22 = inlined_call_operand.vmem [shape: f32[2,1,32], index: 22, kind: input, shape index: {}]
  %s23 = inlined_call_operand.vmem [shape: bf16[32,128], index: 23, kind: input, shape index: {}]
  %s24 = inlined_call_operand.vmem [shape: f32[1,128], index: 24, kind: input, shape index: {}]
  %s25 = inlined_call_operand.vmem [shape: f32[16,128], index: 25, kind: output, shape index: {}]
  %s26 = sld [smem:[#allocation0]]
  $region133: #{generator_forward.1} parent=0
    _
  %s28 = ssub.s32 1, %s26
  %s29 = scalar_select 0, %s28, %s26
  loop: start=0, step=1, limit=4
  $region2: #{generator_forward.1} parent=0 // loop_pre_header
    _
  $region3: #{generator_forward.1} parent=0 // loop_header
    %s31 = sphi 0, %s35
    %p32 = scmp.ge.s32.totalorder %s31, 4
    %s41 = sphi 0, %s43
    %s44 = sphi 0, %s41
    %s45 = sphi 0, %s44
    %s61 = sphi 0, %s45
    %s67 = sphi 0, %s69
    %s70 = sphi 0, %s67
    %s71 = sphi 0, %s70
    %s87 = sphi 0, %s71
    %s93 = sphi 0, %s95
    %s96 = sphi 0, %s93
    %s97 = sphi 0, %s96
    %s113 = sphi 0, %s97
    %s117 = sphi 0, %s117
    %s119 = sphi 0, %s117
    %s120 = sphi 0, %s119
    %s134 = sphi 0, %s120
    %s138 = sphi 0, %s138
    %s140 = sphi 0, %s138
    %s141 = sphi 0, %s140
    %s155 = sphi 0, %s141
    %s159 = sphi 0, %s159
    %s161 = sphi 0, %s159
    %s162 = sphi 0, %s161
    %s176 = sphi 0, %s162
    %s180 = sphi 0, %s180
    %s182 = sphi 0, %s180
    %s183 = sphi 0, %s182
    %s197 = sphi 0, %s183
    %s201 = sphi 0, %s201
    %s203 = sphi 0, %s201
    %s204 = sphi 0, %s203
    %s218 = sphi 0, %s204
    %s222 = sphi 0, %s222
    %s224 = sphi 0, %s222
    %s225 = sphi 0, %s224
    %s239 = sphi 0, %s225
    %s243 = sphi 0, %s243
    %s245 = sphi 0, %s243
    %s246 = sphi 0, %s245
    %s260 = sphi 0, %s246
    %s264 = sphi 0, %s264
    %s266 = sphi 0, %s264
    %s267 = sphi 0, %s266
    %s281 = sphi 0, %s267
    %s285 = sphi 0, %s285
    %s287 = sphi 0, %s285
    %s288 = sphi 0, %s287
    %s302 = sphi 0, %s288
    %s306 = sphi 0, %s306
    %s308 = sphi 0, %s306
    %s309 = sphi 0, %s308
    %s323 = sphi 0, %s309
    %s327 = sphi 0, %s327
    %s329 = sphi 0, %s327
    %s330 = sphi 0, %s329
    %s344 = sphi 0, %s330
    %s348 = sphi 0, %s348
    %s350 = sphi 0, %s348
    %s351 = sphi 0, %s350
    %s365 = sphi 0, %s351
    %s369 = sphi 0, %s369
    %s371 = sphi 0, %s369
    %s372 = sphi 0, %s371
    %s386 = sphi 0, %s372
    %s390 = sphi 0, %s390
    %s392 = sphi 0, %s390
    %s393 = sphi 0, %s392
    %s407 = sphi 0, %s393
    %s411 = sphi 0, %s411
    %s413 = sphi 0, %s411
    %s414 = sphi 0, %s413
    %s428 = sphi 0, %s414
    %s432 = sphi 0, %s432
    %s434 = sphi 0, %s432
    %s435 = sphi 0, %s434
    %s449 = sphi 0, %s435
    %s453 = sphi 0, %s453
    %s455 = sphi 0, %s453
    %s456 = sphi 0, %s455
    %s470 = sphi 0, %s456
    %s474 = sphi 0, %s474
    %s476 = sphi 0, %s474
    %s477 = sphi 0, %s476
    %s491 = sphi 0, %s477
    %s495 = sphi 0, %s495
    %s497 = sphi 0, %s495
    %s498 = sphi 0, %s497
    %s512 = sphi 0, %s498
    %s516 = sphi 0, %s516
    %s518 = sphi 0, %s516
    %s519 = sphi 0, %s518
    %s533 = sphi 0, %s519
    %s537 = sphi 0, %s537
    %s539 = sphi 0, %s537
    %s540 = sphi 0, %s539
    %s554 = sphi 0, %s540
    %s558 = sphi 0, %s558
    %s560 = sphi 0, %s558
    %s561 = sphi 0, %s560
    %s575 = sphi 0, %s561
    %s581 = sphi 0, %s583
    %s584 = sphi 0, %s581
    %s585 = sphi 0, %s584
    %s601 = sphi 0, %s585
  $region4: #{generator_forward.1} parent=0 // loop_header_branch
    %34 = sbr.rel (%p32) target = $region8
  $region5: #{generator_forward.1} parent=0 // loop_body
    %s36 = ssub.s32 %s31, 1
    %s37 = ssub.s32 %s31, 2
    %s38 = sadd.s32 %s31, 1
    %s39 = ssub.s32 %s31, %s38
    %p40 = scmp.eq.s32.totalorder %s39, 0
    %s42 = sadd.s32 %s41, 1
    %s43 = scalar_select %p40, %s41, %s42
    %p46 = pneg %p40
    %p47 = scmp.eq.s32.totalorder %s31, 1
    %p48 = por %p46, %p47
    %p49 = scmp.ne.s32.totalorder %s41, %s44
    %p50 = scmp.eq.s32.totalorder %s31, 0
    %p51 = por %p49, %p50
    %p52 = scmp.ne.s32.totalorder %s41, %s44
    %p53 = scmp.eq.s32.totalorder %s36, 1
    %p54 = por %p52, %p53
    %p55 = scmp.ne.s32.totalorder %s44, %s45
    %p56 = scmp.eq.s32.totalorder %s36, 0
    %p57 = por %p55, %p56
    %p58 = scmp.ne.s32.totalorder %s44, %s45
    %p59 = scmp.eq.s32.totalorder %s37, 1
    %p60 = por %p58, %p59
    %p62 = scmp.ne.s32.totalorder %s45, %s61
    %p63 = scmp.eq.s32.totalorder %s37, 0
    %p64 = por %p62, %p63
    %s65 = ssub.s32 %s31, %s38
    %p66 = scmp.eq.s32.totalorder %s65, 0
    %s68 = sadd.s32 %s67, 1
    %s69 = scalar_select %p66, %s67, %s68
    %p72 = pneg %p66
    %p73 = scmp.eq.s32.totalorder %s31, 1
    %p74 = por %p72, %p73
    %p75 = scmp.ne.s32.totalorder %s67, %s70
    %p76 = scmp.eq.s32.totalorder %s31, 0
    %p77 = por %p75, %p76
    %p78 = scmp.ne.s32.totalorder %s67, %s70
    %p79 = scmp.eq.s32.totalorder %s36, 1
    %p80 = por %p78, %p79
    %p81 = scmp.ne.s32.totalorder %s70, %s71
    %p82 = scmp.eq.s32.totalorder %s36, 0
    %p83 = por %p81, %p82
    %p84 = scmp.ne.s32.totalorder %s70, %s71
    %p85 = scmp.eq.s32.totalorder %s37, 1
    %p86 = por %p84, %p85
    %p88 = scmp.ne.s32.totalorder %s71, %s87
    %p89 = scmp.eq.s32.totalorder %s37, 0
    %p90 = por %p88, %p89
    %s91 = ssub.s32 %s31, %s38
    %p92 = scmp.eq.s32.totalorder %s91, 0
    %s94 = sadd.s32 %s93, 1
    %s95 = scalar_select %p92, %s93, %s94
    %p98 = pneg %p92
    %p99 = scmp.eq.s32.totalorder %s31, 1
    %p100 = por %p98, %p99
    %p101 = scmp.ne.s32.totalorder %s93, %s96
    %p102 = scmp.eq.s32.totalorder %s31, 0
    %p103 = por %p101, %p102
    %p104 = scmp.ne.s32.totalorder %s93, %s96
    %p105 = scmp.eq.s32.totalorder %s36, 1
    %p106 = por %p104, %p105
    %p107 = scmp.ne.s32.totalorder %s96, %s97
    %p108 = scmp.eq.s32.totalorder %s36, 0
    %p109 = por %p107, %p108
    %p110 = scmp.ne.s32.totalorder %s96, %s97
    %p111 = scmp.eq.s32.totalorder %s37, 1
    %p112 = por %p110, %p111
    %p114 = scmp.ne.s32.totalorder %s97, %s113
    %p115 = scmp.eq.s32.totalorder %s37, 0
    %p116 = por %p114, %p115
    %s118 = sadd.s32 %s117, 1
    %p121 = scmp.eq.s32.totalorder %s31, 1
    %p122 = scmp.ne.s32.totalorder %s117, %s119
    %p123 = scmp.eq.s32.totalorder %s31, 0
    %p124 = por %p122, %p123
    %p125 = scmp.ne.s32.totalorder %s117, %s119
    %p126 = scmp.eq.s32.totalorder %s36, 1
    %p127 = por %p125, %p126
    %p128 = scmp.ne.s32.totalorder %s119, %s120
    %p129 = scmp.eq.s32.totalorder %s36, 0
    %p130 = por %p128, %p129
    %p131 = scmp.ne.s32.totalorder %s119, %s120
    %p132 = scmp.eq.s32.totalorder %s37, 1
    %p133 = por %p131, %p132
    %p135 = scmp.ne.s32.totalorder %s120, %s134
    %p136 = scmp.eq.s32.totalorder %s37, 0
    %p137 = por %p135, %p136
    %s139 = sadd.s32 %s138, 1
    %p142 = scmp.eq.s32.totalorder %s31, 1
    %p143 = scmp.ne.s32.totalorder %s138, %s140
    %p144 = scmp.eq.s32.totalorder %s31, 0
    %p145 = por %p143, %p144
    %p146 = scmp.ne.s32.totalorder %s138, %s140
    %p147 = scmp.eq.s32.totalorder %s36, 1
    %p148 = por %p146, %p147
    %p149 = scmp.ne.s32.totalorder %s140, %s141
    %p150 = scmp.eq.s32.totalorder %s36, 0
    %p151 = por %p149, %p150
    %p152 = scmp.ne.s32.totalorder %s140, %s141
    %p153 = scmp.eq.s32.totalorder %s37, 1
    %p154 = por %p152, %p153
    %p156 = scmp.ne.s32.totalorder %s141, %s155
    %p157 = scmp.eq.s32.totalorder %s37, 0
    %p158 = por %p156, %p157
    %s160 = sadd.s32 %s159, 1
    %p163 = scmp.eq.s32.totalorder %s31, 1
    %p164 = scmp.ne.s32.totalorder %s159, %s161
    %p165 = scmp.eq.s32.totalorder %s31, 0
    %p166 = por %p164, %p165
    %p167 = scmp.ne.s32.totalorder %s159, %s161
    %p168 = scmp.eq.s32.totalorder %s36, 1
    %p169 = por %p167, %p168
    %p170 = scmp.ne.s32.totalorder %s161, %s162
    %p171 = scmp.eq.s32.totalorder %s36, 0
    %p172 = por %p170, %p171
    %p173 = scmp.ne.s32.totalorder %s161, %s162
    %p174 = scmp.eq.s32.totalorder %s37, 1
    %p175 = por %p173, %p174
    %p177 = scmp.ne.s32.totalorder %s162, %s176
    %p178 = scmp.eq.s32.totalorder %s37, 0
    %p179 = por %p177, %p178
    %s181 = sadd.s32 %s180, 1
    %p184 = scmp.eq.s32.totalorder %s31, 1
    %p185 = scmp.ne.s32.totalorder %s180, %s182
    %p186 = scmp.eq.s32.totalorder %s31, 0
    %p187 = por %p185, %p186
    %p188 = scmp.ne.s32.totalorder %s180, %s182
    %p189 = scmp.eq.s32.totalorder %s36, 1
    %p190 = por %p188, %p189
    %p191 = scmp.ne.s32.totalorder %s182, %s183
    %p192 = scmp.eq.s32.totalorder %s36, 0
    %p193 = por %p191, %p192
    %p194 = scmp.ne.s32.totalorder %s182, %s183
    %p195 = scmp.eq.s32.totalorder %s37, 1
    %p196 = por %p194, %p195
    %p198 = scmp.ne.s32.totalorder %s183, %s197
    %p199 = scmp.eq.s32.totalorder %s37, 0
    %p200 = por %p198, %p199
    %s202 = sadd.s32 %s201, 1
    %p205 = scmp.eq.s32.totalorder %s31, 1
    %p206 = scmp.ne.s32.totalorder %s201, %s203
    %p207 = scmp.eq.s32.totalorder %s31, 0
    %p208 = por %p206, %p207
    %p209 = scmp.ne.s32.totalorder %s201, %s203
    %p210 = scmp.eq.s32.totalorder %s36, 1
    %p211 = por %p209, %p210
    %p212 = scmp.ne.s32.totalorder %s203, %s204
    %p213 = scmp.eq.s32.totalorder %s36, 0
    %p214 = por %p212, %p213
    %p215 = scmp.ne.s32.totalorder %s203, %s204
    %p216 = scmp.eq.s32.totalorder %s37, 1
    %p217 = por %p215, %p216
    %p219 = scmp.ne.s32.totalorder %s204, %s218
    %p220 = scmp.eq.s32.totalorder %s37, 0
    %p221 = por %p219, %p220
    %s223 = sadd.s32 %s222, 1
    %p226 = scmp.eq.s32.totalorder %s31, 1
    %p227 = scmp.ne.s32.totalorder %s222, %s224
    %p228 = scmp.eq.s32.totalorder %s31, 0
    %p229 = por %p227, %p228
    %p230 = scmp.ne.s32.totalorder %s222, %s224
    %p231 = scmp.eq.s32.totalorder %s36, 1
    %p232 = por %p230, %p231
    %p233 = scmp.ne.s32.totalorder %s224, %s225
    %p234 = scmp.eq.s32.totalorder %s36, 0
    %p235 = por %p233, %p234
    %p236 = scmp.ne.s32.totalorder %s224, %s225
    %p237 = scmp.eq.s32.totalorder %s37, 1
    %p238 = por %p236, %p237
    %p240 = scmp.ne.s32.totalorder %s225, %s239
    %p241 = scmp.eq.s32.totalorder %s37, 0
    %p242 = por %p240, %p241
    %s244 = sadd.s32 %s243, 1
    %p247 = scmp.eq.s32.totalorder %s31, 1
    %p248 = scmp.ne.s32.totalorder %s243, %s245
    %p249 = scmp.eq.s32.totalorder %s31, 0
    %p250 = por %p248, %p249
    %p251 = scmp.ne.s32.totalorder %s243, %s245
    %p252 = scmp.eq.s32.totalorder %s36, 1
    %p253 = por %p251, %p252
    %p254 = scmp.ne.s32.totalorder %s245, %s246
    %p255 = scmp.eq.s32.totalorder %s36, 0
    %p256 = por %p254, %p255
    %p257 = scmp.ne.s32.totalorder %s245, %s246
    %p258 = scmp.eq.s32.totalorder %s37, 1
    %p259 = por %p257, %p258
    %p261 = scmp.ne.s32.totalorder %s246, %s260
    %p262 = scmp.eq.s32.totalorder %s37, 0
    %p263 = por %p261, %p262
    %s265 = sadd.s32 %s264, 1
    %p268 = scmp.eq.s32.totalorder %s31, 1
    %p269 = scmp.ne.s32.totalorder %s264, %s266
    %p270 = scmp.eq.s32.totalorder %s31, 0
    %p271 = por %p269, %p270
    %p272 = scmp.ne.s32.totalorder %s264, %s266
    %p273 = scmp.eq.s32.totalorder %s36, 1
    %p274 = por %p272, %p273
    %p275 = scmp.ne.s32.totalorder %s266, %s267
    %p276 = scmp.eq.s32.totalorder %s36, 0
    %p277 = por %p275, %p276
    %p278 = scmp.ne.s32.totalorder %s266, %s267
    %p279 = scmp.eq.s32.totalorder %s37, 1
    %p280 = por %p278, %p279
    %p282 = scmp.ne.s32.totalorder %s267, %s281
    %p283 = scmp.eq.s32.totalorder %s37, 0
    %p284 = por %p282, %p283
    %s286 = sadd.s32 %s285, 1
    %p289 = scmp.eq.s32.totalorder %s31, 1
    %p290 = scmp.ne.s32.totalorder %s285, %s287
    %p291 = scmp.eq.s32.totalorder %s31, 0
    %p292 = por %p290, %p291
    %p293 = scmp.ne.s32.totalorder %s285, %s287
    %p294 = scmp.eq.s32.totalorder %s36, 1
    %p295 = por %p293, %p294
    %p296 = scmp.ne.s32.totalorder %s287, %s288
    %p297 = scmp.eq.s32.totalorder %s36, 0
    %p298 = por %p296, %p297
    %p299 = scmp.ne.s32.totalorder %s287, %s288
    %p300 = scmp.eq.s32.totalorder %s37, 1
    %p301 = por %p299, %p300
    %p303 = scmp.ne.s32.totalorder %s288, %s302
    %p304 = scmp.eq.s32.totalorder %s37, 0
    %p305 = por %p303, %p304
    %s307 = sadd.s32 %s306, 1
    %p310 = scmp.eq.s32.totalorder %s31, 1
    %p311 = scmp.ne.s32.totalorder %s306, %s308
    %p312 = scmp.eq.s32.totalorder %s31, 0
    %p313 = por %p311, %p312
    %p314 = scmp.ne.s32.totalorder %s306, %s308
    %p315 = scmp.eq.s32.totalorder %s36, 1
    %p316 = por %p314, %p315
    %p317 = scmp.ne.s32.totalorder %s308, %s309
    %p318 = scmp.eq.s32.totalorder %s36, 0
    %p319 = por %p317, %p318
    %p320 = scmp.ne.s32.totalorder %s308, %s309
    %p321 = scmp.eq.s32.totalorder %s37, 1
    %p322 = por %p320, %p321
    %p324 = scmp.ne.s32.totalorder %s309, %s323
    %p325 = scmp.eq.s32.totalorder %s37, 0
    %p326 = por %p324, %p325
    %s328 = sadd.s32 %s327, 1
    %p331 = scmp.eq.s32.totalorder %s31, 1
    %p332 = scmp.ne.s32.totalorder %s327, %s329
    %p333 = scmp.eq.s32.totalorder %s31, 0
    %p334 = por %p332, %p333
    %p335 = scmp.ne.s32.totalorder %s327, %s329
    %p336 = scmp.eq.s32.totalorder %s36, 1
    %p337 = por %p335, %p336
    %p338 = scmp.ne.s32.totalorder %s329, %s330
    %p339 = scmp.eq.s32.totalorder %s36, 0
    %p340 = por %p338, %p339
    %p341 = scmp.ne.s32.totalorder %s329, %s330
    %p342 = scmp.eq.s32.totalorder %s37, 1
    %p343 = por %p341, %p342
    %p345 = scmp.ne.s32.totalorder %s330, %s344
    %p346 = scmp.eq.s32.totalorder %s37, 0
    %p347 = por %p345, %p346
    %s349 = sadd.s32 %s348, 1
    %p352 = scmp.eq.s32.totalorder %s31, 1
    %p353 = scmp.ne.s32.totalorder %s348, %s350
    %p354 = scmp.eq.s32.totalorder %s31, 0
    %p355 = por %p353, %p354
    %p356 = scmp.ne.s32.totalorder %s348, %s350
    %p357 = scmp.eq.s32.totalorder %s36, 1
    %p358 = por %p356, %p357
    %p359 = scmp.ne.s32.totalorder %s350, %s351
    %p360 = scmp.eq.s32.totalorder %s36, 0
    %p361 = por %p359, %p360
    %p362 = scmp.ne.s32.totalorder %s350, %s351
    %p363 = scmp.eq.s32.totalorder %s37, 1
    %p364 = por %p362, %p363
    %p366 = scmp.ne.s32.totalorder %s351, %s365
    %p367 = scmp.eq.s32.totalorder %s37, 0
    %p368 = por %p366, %p367
    %s370 = sadd.s32 %s369, 1
    %p373 = scmp.eq.s32.totalorder %s31, 1
    %p374 = scmp.ne.s32.totalorder %s369, %s371
    %p375 = scmp.eq.s32.totalorder %s31, 0
    %p376 = por %p374, %p375
    %p377 = scmp.ne.s32.totalorder %s369, %s371
    %p378 = scmp.eq.s32.totalorder %s36, 1
    %p379 = por %p377, %p378
    %p380 = scmp.ne.s32.totalorder %s371, %s372
    %p381 = scmp.eq.s32.totalorder %s36, 0
    %p382 = por %p380, %p381
    %p383 = scmp.ne.s32.totalorder %s371, %s372
    %p384 = scmp.eq.s32.totalorder %s37, 1
    %p385 = por %p383, %p384
    %p387 = scmp.ne.s32.totalorder %s372, %s386
    %p388 = scmp.eq.s32.totalorder %s37, 0
    %p389 = por %p387, %p388
    %s391 = sadd.s32 %s390, 1
    %p394 = scmp.eq.s32.totalorder %s31, 1
    %p395 = scmp.ne.s32.totalorder %s390, %s392
    %p396 = scmp.eq.s32.totalorder %s31, 0
    %p397 = por %p395, %p396
    %p398 = scmp.ne.s32.totalorder %s390, %s392
    %p399 = scmp.eq.s32.totalorder %s36, 1
    %p400 = por %p398, %p399
    %p401 = scmp.ne.s32.totalorder %s392, %s393
    %p402 = scmp.eq.s32.totalorder %s36, 0
    %p403 = por %p401, %p402
    %p404 = scmp.ne.s32.totalorder %s392, %s393
    %p405 = scmp.eq.s32.totalorder %s37, 1
    %p406 = por %p404, %p405
    %p408 = scmp.ne.s32.totalorder %s393, %s407
    %p409 = scmp.eq.s32.totalorder %s37, 0
    %p410 = por %p408, %p409
    %s412 = sadd.s32 %s411, 1
    %p415 = scmp.eq.s32.totalorder %s31, 1
    %p416 = scmp.ne.s32.totalorder %s411, %s413
    %p417 = scmp.eq.s32.totalorder %s31, 0
    %p418 = por %p416, %p417
    %p419 = scmp.ne.s32.totalorder %s411, %s413
    %p420 = scmp.eq.s32.totalorder %s36, 1
    %p421 = por %p419, %p420
    %p422 = scmp.ne.s32.totalorder %s413, %s414
    %p423 = scmp.eq.s32.totalorder %s36, 0
    %p424 = por %p422, %p423
    %p425 = scmp.ne.s32.totalorder %s413, %s414
    %p426 = scmp.eq.s32.totalorder %s37, 1
    %p427 = por %p425, %p426
    %p429 = scmp.ne.s32.totalorder %s414, %s428
    %p430 = scmp.eq.s32.totalorder %s37, 0
    %p431 = por %p429, %p430
    %s433 = sadd.s32 %s432, 1
    %p436 = scmp.eq.s32.totalorder %s31, 1
    %p437 = scmp.ne.s32.totalorder %s432, %s434
    %p438 = scmp.eq.s32.totalorder %s31, 0
    %p439 = por %p437, %p438
    %p440 = scmp.ne.s32.totalorder %s432, %s434
    %p441 = scmp.eq.s32.totalorder %s36, 1
    %p442 = por %p440, %p441
    %p443 = scmp.ne.s32.totalorder %s434, %s435
    %p444 = scmp.eq.s32.totalorder %s36, 0
    %p445 = por %p443, %p444
    %p446 = scmp.ne.s32.totalorder %s434, %s435
    %p447 = scmp.eq.s32.totalorder %s37, 1
    %p448 = por %p446, %p447
    %p450 = scmp.ne.s32.totalorder %s435, %s449
    %p451 = scmp.eq.s32.totalorder %s37, 0
    %p452 = por %p450, %p451
    %s454 = sadd.s32 %s453, 1
    %p457 = scmp.eq.s32.totalorder %s31, 1
    %p458 = scmp.ne.s32.totalorder %s453, %s455
    %p459 = scmp.eq.s32.totalorder %s31, 0
    %p460 = por %p458, %p459
    %p461 = scmp.ne.s32.totalorder %s453, %s455
    %p462 = scmp.eq.s32.totalorder %s36, 1
    %p463 = por %p461, %p462
    %p464 = scmp.ne.s32.totalorder %s455, %s456
    %p465 = scmp.eq.s32.totalorder %s36, 0
    %p466 = por %p464, %p465
    %p467 = scmp.ne.s32.totalorder %s455, %s456
    %p468 = scmp.eq.s32.totalorder %s37, 1
    %p469 = por %p467, %p468
    %p471 = scmp.ne.s32.totalorder %s456, %s470
    %p472 = scmp.eq.s32.totalorder %s37, 0
    %p473 = por %p471, %p472
    %s475 = sadd.s32 %s474, 1
    %p478 = scmp.eq.s32.totalorder %s31, 1
    %p479 = scmp.ne.s32.totalorder %s474, %s476
    %p480 = scmp.eq.s32.totalorder %s31, 0
    %p481 = por %p479, %p480
    %p482 = scmp.ne.s32.totalorder %s474, %s476
    %p483 = scmp.eq.s32.totalorder %s36, 1
    %p484 = por %p482, %p483
    %p485 = scmp.ne.s32.totalorder %s476, %s477
    %p486 = scmp.eq.s32.totalorder %s36, 0
    %p487 = por %p485, %p486
    %p488 = scmp.ne.s32.totalorder %s476, %s477
    %p489 = scmp.eq.s32.totalorder %s37, 1
    %p490 = por %p488, %p489
    %p492 = scmp.ne.s32.totalorder %s477, %s491
    %p493 = scmp.eq.s32.totalorder %s37, 0
    %p494 = por %p492, %p493
    %s496 = sadd.s32 %s495, 1
    %p499 = scmp.eq.s32.totalorder %s31, 1
    %p500 = scmp.ne.s32.totalorder %s495, %s497
    %p501 = scmp.eq.s32.totalorder %s31, 0
    %p502 = por %p500, %p501
    %p503 = scmp.ne.s32.totalorder %s495, %s497
    %p504 = scmp.eq.s32.totalorder %s36, 1
    %p505 = por %p503, %p504
    %p506 = scmp.ne.s32.totalorder %s497, %s498
    %p507 = scmp.eq.s32.totalorder %s36, 0
    %p508 = por %p506, %p507
    %p509 = scmp.ne.s32.totalorder %s497, %s498
    %p510 = scmp.eq.s32.totalorder %s37, 1
    %p511 = por %p509, %p510
    %p513 = scmp.ne.s32.totalorder %s498, %s512
    %p514 = scmp.eq.s32.totalorder %s37, 0
    %p515 = por %p513, %p514
    %s517 = sadd.s32 %s516, 1
    %p520 = scmp.eq.s32.totalorder %s31, 1
    %p521 = scmp.ne.s32.totalorder %s516, %s518
    %p522 = scmp.eq.s32.totalorder %s31, 0
    %p523 = por %p521, %p522
    %p524 = scmp.ne.s32.totalorder %s516, %s518
    %p525 = scmp.eq.s32.totalorder %s36, 1
    %p526 = por %p524, %p525
    %p527 = scmp.ne.s32.totalorder %s518, %s519
    %p528 = scmp.eq.s32.totalorder %s36, 0
    %p529 = por %p527, %p528
    %p530 = scmp.ne.s32.totalorder %s518, %s519
    %p531 = scmp.eq.s32.totalorder %s37, 1
    %p532 = por %p530, %p531
    %p534 = scmp.ne.s32.totalorder %s519, %s533
    %p535 = scmp.eq.s32.totalorder %s37, 0
    %p536 = por %p534, %p535
    %s538 = sadd.s32 %s537, 1
    %p541 = scmp.eq.s32.totalorder %s31, 1
    %p542 = scmp.ne.s32.totalorder %s537, %s539
    %p543 = scmp.eq.s32.totalorder %s31, 0
    %p544 = por %p542, %p543
    %p545 = scmp.ne.s32.totalorder %s537, %s539
    %p546 = scmp.eq.s32.totalorder %s36, 1
    %p547 = por %p545, %p546
    %p548 = scmp.ne.s32.totalorder %s539, %s540
    %p549 = scmp.eq.s32.totalorder %s36, 0
    %p550 = por %p548, %p549
    %p551 = scmp.ne.s32.totalorder %s539, %s540
    %p552 = scmp.eq.s32.totalorder %s37, 1
    %p553 = por %p551, %p552
    %p555 = scmp.ne.s32.totalorder %s540, %s554
    %p556 = scmp.eq.s32.totalorder %s37, 0
    %p557 = por %p555, %p556
    %s559 = sadd.s32 %s558, 1
    %p562 = scmp.eq.s32.totalorder %s31, 1
    %p563 = scmp.ne.s32.totalorder %s558, %s560
    %p564 = scmp.eq.s32.totalorder %s31, 0
    %p565 = por %p563, %p564
    %p566 = scmp.ne.s32.totalorder %s558, %s560
    %p567 = scmp.eq.s32.totalorder %s36, 1
    %p568 = por %p566, %p567
    %p569 = scmp.ne.s32.totalorder %s560, %s561
    %p570 = scmp.eq.s32.totalorder %s36, 0
    %p571 = por %p569, %p570
    %p572 = scmp.ne.s32.totalorder %s560, %s561
    %p573 = scmp.eq.s32.totalorder %s37, 1
    %p574 = por %p572, %p573
    %p576 = scmp.ne.s32.totalorder %s561, %s575
    %p577 = scmp.eq.s32.totalorder %s37, 0
    %p578 = por %p576, %p577
    %s579 = ssub.s32 %s31, %s38
    %p580 = scmp.eq.s32.totalorder %s579, 0
    %s582 = sadd.s32 %s581, 1
    %s583 = scalar_select %p580, %s581, %s582
    %p586 = pneg %p580
    %p587 = scmp.eq.s32.totalorder %s31, 1
    %p588 = por %p586, %p587
    %p589 = scmp.ne.s32.totalorder %s581, %s584
    %p590 = scmp.eq.s32.totalorder %s31, 0
    %p591 = por %p589, %p590
    %p592 = scmp.ne.s32.totalorder %s581, %s584
    %p593 = scmp.eq.s32.totalorder %s36, 1
    %p594 = por %p592, %p593
    %p595 = scmp.ne.s32.totalorder %s584, %s585
    %p596 = scmp.eq.s32.totalorder %s36, 0
    %p597 = por %p595, %p596
    %p598 = scmp.ne.s32.totalorder %s584, %s585
    %p599 = scmp.eq.s32.totalorder %s37, 1
    %p600 = por %p598, %p599
    %p602 = scmp.ne.s32.totalorder %s585, %s601
    %p603 = scmp.eq.s32.totalorder %s37, 0
    %p604 = por %p602, %p603
    %p605 = scmp.le.s32.totalorder 1, %s31
    %p606 = scmp.lt.s32.totalorder %s31, 3
    %p607 = pnand %p605, %p606
    %p608 = pneg %p607
    // Predicated region
    $region9: #{generator_forward.1} parent=5 // pred_check
      _
    $region10: #{generator_forward.1} parent=5 // pred_check_branch
      %610 = sbr.rel (%p607) target = $region12
    $region11: #{generator_forward.1} parent=5 // pred_region
      %s611 = ssub.s32 %s31, 1
      // Predicated region
      $region13: #{generator_forward.1} parent=11 // pred_check
        %p612 = pneg %p130
      $region14: #{generator_forward.1} parent=11 // pred_check_branch
        %614 = sbr.rel (%p612) target = $region16
      $region15: #{generator_forward.1} parent=11 // pred_region
        _
      $region16: #{generator_forward.1} parent=11 // pred_fallthru
        _
      // Predicated region
      $region17: #{generator_forward.1} parent=11 // pred_check
        %p615 = pneg %p151
      $region18: #{generator_forward.1} parent=11 // pred_check_branch
        %617 = sbr.rel (%p615) target = $region20
      $region19: #{generator_forward.1} parent=11 // pred_region
        _
      $region20: #{generator_forward.1} parent=11 // pred_fallthru
        _
      // Predicated region
      $region21: #{generator_forward.1} parent=11 // pred_check
        %p618 = pneg %p172
      $region22: #{generator_forward.1} parent=11 // pred_check_branch
        %620 = sbr.rel (%p618) target = $region24
      $region23: #{generator_forward.1} parent=11 // pred_region
        _
      $region24: #{generator_forward.1} parent=11 // pred_fallthru
        _
      // Predicated region
      $region25: #{generator_forward.1} parent=11 // pred_check
        %p621 = pneg %p193
      $region26: #{generator_forward.1} parent=11 // pred_check_branch
        %623 = sbr.rel (%p621) target = $region28
      $region27: #{generator_forward.1} parent=11 // pred_region
        _
      $region28: #{generator_forward.1} parent=11 // pred_fallthru
        _
      // Predicated region
      $region29: #{generator_forward.1} parent=11 // pred_check
        %p624 = pneg %p214
      $region30: #{generator_forward.1} parent=11 // pred_check_branch
        %626 = sbr.rel (%p624) target = $region32
      $region31: #{generator_forward.1} parent=11 // pred_region
        _
      $region32: #{generator_forward.1} parent=11 // pred_fallthru
        _
      // Predicated region
      $region33: #{generator_forward.1} parent=11 // pred_check
        %p627 = pneg %p235
      $region34: #{generator_forward.1} parent=11 // pred_check_branch
        %629 = sbr.rel (%p627) target = $region36
      $region35: #{generator_forward.1} parent=11 // pred_region
        _
      $region36: #{generator_forward.1} parent=11 // pred_fallthru
        _
      // Predicated region
      $region37: #{generator_forward.1} parent=11 // pred_check
        %p630 = pneg %p256
      $region38: #{generator_forward.1} parent=11 // pred_check_branch
        %632 = sbr.rel (%p630) target = $region40
      $region39: #{generator_forward.1} parent=11 // pred_region
        _
      $region40: #{generator_forward.1} parent=11 // pred_fallthru
        _
      // Predicated region
      $region41: #{generator_forward.1} parent=11 // pred_check
        %p633 = pneg %p277
      $region42: #{generator_forward.1} parent=11 // pred_check_branch
        %635 = sbr.rel (%p633) target = $region44
      $region43: #{generator_forward.1} parent=11 // pred_region
        _
      $region44: #{generator_forward.1} parent=11 // pred_fallthru
        _
      // Predicated region
      $region45: #{generator_forward.1} parent=11 // pred_check
        %p636 = pneg %p298
      $region46: #{generator_forward.1} parent=11 // pred_check_branch
        %638 = sbr.rel (%p636) target = $region48
      $region47: #{generator_forward.1} parent=11 // pred_region
        _
      $region48: #{generator_forward.1} parent=11 // pred_fallthru
        _
      // Predicated region
      $region49: #{generator_forward.1} parent=11 // pred_check
        %p639 = pneg %p319
      $region50: #{generator_forward.1} parent=11 // pred_check_branch
        %641 = sbr.rel (%p639) target = $region52
      $region51: #{generator_forward.1} parent=11 // pred_region
        _
      $region52: #{generator_forward.1} parent=11 // pred_fallthru
        _
      // Predicated region
      $region53: #{generator_forward.1} parent=11 // pred_check
        %p642 = pneg %p340
      $region54: #{generator_forward.1} parent=11 // pred_check_branch
        %644 = sbr.rel (%p642) target = $region56
      $region55: #{generator_forward.1} parent=11 // pred_region
        _
      $region56: #{generator_forward.1} parent=11 // pred_fallthru
        _
      // Predicated region
      $region57: #{generator_forward.1} parent=11 // pred_check
        %p645 = pneg %p361
      $region58: #{generator_forward.1} parent=11 // pred_check_branch
        %647 = sbr.rel (%p645) target = $region60
      $region59: #{generator_forward.1} parent=11 // pred_region
        _
      $region60: #{generator_forward.1} parent=11 // pred_fallthru
        _
      // Predicated region
      $region61: #{generator_forward.1} parent=11 // pred_check
        %p648 = pneg %p382
      $region62: #{generator_forward.1} parent=11 // pred_check_branch
        %650 = sbr.rel (%p648) target = $region64
      $region63: #{generator_forward.1} parent=11 // pred_region
        _
      $region64: #{generator_forward.1} parent=11 // pred_fallthru
        _
      // Predicated region
      $region65: #{generator_forward.1} parent=11 // pred_check
        %p651 = pneg %p403
      $region66: #{generator_forward.1} parent=11 // pred_check_branch
        %653 = sbr.rel (%p651) target = $region68
      $region67: #{generator_forward.1} parent=11 // pred_region
        _
      $region68: #{generator_forward.1} parent=11 // pred_fallthru
        _
      // Predicated region
      $region69: #{generator_forward.1} parent=11 // pred_check
        %p654 = pneg %p424
      $region70: #{generator_forward.1} parent=11 // pred_check_branch
        %656 = sbr.rel (%p654) target = $region72
      $region71: #{generator_forward.1} parent=11 // pred_region
        _
      $region72: #{generator_forward.1} parent=11 // pred_fallthru
        _
      // Predicated region
      $region73: #{generator_forward.1} parent=11 // pred_check
        %p657 = pneg %p445
      $region74: #{generator_forward.1} parent=11 // pred_check_branch
        %659 = sbr.rel (%p657) target = $region76
      $region75: #{generator_forward.1} parent=11 // pred_region
        _
      $region76: #{generator_forward.1} parent=11 // pred_fallthru
        _
      // Predicated region
      $region77: #{generator_forward.1} parent=11 // pred_check
        %p660 = pneg %p466
      $region78: #{generator_forward.1} parent=11 // pred_check_branch
        %662 = sbr.rel (%p660) target = $region80
      $region79: #{generator_forward.1} parent=11 // pred_region
        _
      $region80: #{generator_forward.1} parent=11 // pred_fallthru
        _
      // Predicated region
      $region81: #{generator_forward.1} parent=11 // pred_check
        %p663 = pneg %p487
      $region82: #{generator_forward.1} parent=11 // pred_check_branch
        %665 = sbr.rel (%p663) target = $region84
      $region83: #{generator_forward.1} parent=11 // pred_region
        _
      $region84: #{generator_forward.1} parent=11 // pred_fallthru
        _
      // Predicated region
      $region85: #{generator_forward.1} parent=11 // pred_check
        %p666 = pneg %p508
      $region86: #{generator_forward.1} parent=11 // pred_check_branch
        %668 = sbr.rel (%p666) target = $region88
      $region87: #{generator_forward.1} parent=11 // pred_region
        _
      $region88: #{generator_forward.1} parent=11 // pred_fallthru
        _
      // Predicated region
      $region89: #{generator_forward.1} parent=11 // pred_check
        %p669 = pneg %p529
      $region90: #{generator_forward.1} parent=11 // pred_check_branch
        %671 = sbr.rel (%p669) target = $region92
      $region91: #{generator_forward.1} parent=11 // pred_region
        _
      $region92: #{generator_forward.1} parent=11 // pred_fallthru
        _
      // Predicated region
      $region93: #{generator_forward.1} parent=11 // pred_check
        %p672 = pneg %p550
      $region94: #{generator_forward.1} parent=11 // pred_check_branch
        %674 = sbr.rel (%p672) target = $region96
      $region95: #{generator_forward.1} parent=11 // pred_region
        _
      $region96: #{generator_forward.1} parent=11 // pred_fallthru
        _
      // Predicated region
      $region97: #{generator_forward.1} parent=11 // pred_check
        %p675 = pneg %p571
      $region98: #{generator_forward.1} parent=11 // pred_check_branch
        %677 = sbr.rel (%p675) target = $region100
      $region99: #{generator_forward.1} parent=11 // pred_region
        _
      $region100: #{generator_forward.1} parent=11 // pred_fallthru
        _
    $region12: #{generator_forward.1} parent=5 // pred_fallthru
      _
    %p678 = scmp.lt.s32.totalorder %s31, 2
    // Predicated region
    $region101: #{generator_forward.1} parent=5 // pred_check
      %p679 = pneg %p678
    $region102: #{generator_forward.1} parent=5 // pred_check_branch
      %681 = sbr.rel (%p679) target = $region104
    $region103: #{generator_forward.1} parent=5 // pred_region
      // Predicated region
      $region105: #{generator_forward.1} parent=103 // pred_check
        %p682 = pneg %p51
      $region106: #{generator_forward.1} parent=103 // pred_check_branch
        %684 = sbr.rel (%p682) target = $region108
      $region107: #{generator_forward.1} parent=103 // pred_region
        %p685 = scmp.lt.s32.totalorder %s31, 1
        %s686 = scalar_select %p685, %s31, 1
        %s687 = smul.addr %s686, 8
        %s688 = scalar_lea.vmem %s0, %s687
      $region108: #{generator_forward.1} parent=103 // pred_fallthru
        _
      // Predicated region
      $region109: #{generator_forward.1} parent=103 // pred_check
        %p689 = pneg %p77
      $region110: #{generator_forward.1} parent=103 // pred_check_branch
        %691 = sbr.rel (%p689) target = $region112
      $region111: #{generator_forward.1} parent=103 // pred_region
        %p692 = scmp.lt.s32.totalorder %s31, 1
        %s693 = scalar_select %p692, %s31, 1
        %s694 = smul.addr %s693, 8
        %s695 = scalar_lea.vmem %s1, %s694
      $region112: #{generator_forward.1} parent=103 // pred_fallthru
        _
      // Predicated region
      $region113: #{generator_forward.1} parent=103 // pred_check
        %p696 = pneg %p103
      $region114: #{generator_forward.1} parent=103 // pred_check_branch
        %698 = sbr.rel (%p696) target = $region116
      $region115: #{generator_forward.1} parent=103 // pred_region
        %p699 = scmp.lt.s32.totalorder %s31, 1
        %s700 = scalar_select %p699, %s31, 1
        %s701 = smul.addr %s700, 8
        %s702 = scalar_lea.vmem %s2, %s701
      $region116: #{generator_forward.1} parent=103 // pred_fallthru
        _
    $region104: #{generator_forward.1} parent=5 // pred_fallthru
      _
    %p703 = scmp.le.s32.totalorder 1, %s31
    %p704 = scmp.lt.s32.totalorder %s31, 3
    %p705 = pnand %p703, %p704
    %p706 = pneg %p705
    // Predicated region
    $region117: #{generator_forward.1} parent=5 // pred_check
      _
    $region118: #{generator_forward.1} parent=5 // pred_check_branch
      %708 = sbr.rel (%p705) target = $region120
    $region119: #{generator_forward.1} parent=5 // pred_region
      %s709 = ssub.s32 %s31, 1
      %p710 = scmp.lt.s32.totalorder %s36, 1
      %s711 = scalar_select %p710, %s36, 1
      %s712 = smul.addr %s711, 8
      %s713 = scalar_lea.vmem %s0, %s712
      %p714 = pneg %p57
      %p715 = pneg %p54
      %p716 = scmp.lt.s32.totalorder %s36, 1
      %s717 = scalar_select %p716, %s36, 1
      %s718 = smul.addr %s717, 8
      %s719 = scalar_lea.vmem %s1, %s718
      %p720 = pneg %p83
      %p721 = pneg %p80
      %p722 = scmp.lt.s32.totalorder %s36, 1
      %s723 = scalar_select %p722, %s36, 1
      %s724 = smul.addr %s723, 8
      %s725 = scalar_lea.vmem %s2, %s724
      %p726 = pneg %p109
      %p727 = pneg %p106
      %p728 = pneg %p130
      %p729 = pneg %p127
      %p730 = pneg %p151
      %p731 = pneg %p148
      %p732 = pneg %p172
      %p733 = pneg %p169
      %p734 = pneg %p193
      %p735 = pneg %p190
      %p736 = pneg %p214
      %p737 = pneg %p211
      %p738 = pneg %p235
      %p739 = pneg %p232
      %p740 = pneg %p256
      %p741 = pneg %p253
      %p742 = pneg %p277
      %p743 = pneg %p274
      %p744 = pneg %p298
      %p745 = pneg %p295
      %p746 = pneg %p319
      %p747 = pneg %p316
      %p748 = pneg %p340
      %p749 = pneg %p337
      %p750 = pneg %p361
      %p751 = pneg %p358
      %p752 = pneg %p382
      %p753 = pneg %p379
      %p754 = pneg %p403
      %p755 = pneg %p400
      %p756 = pneg %p424
      %p757 = pneg %p421
      %p758 = pneg %p445
      %p759 = pneg %p442
      %p760 = pneg %p466
      %p761 = pneg %p463
      %p762 = pneg %p487
      %p763 = pneg %p484
      %p764 = pneg %p508
      %p765 = pneg %p505
      %p766 = pneg %p529
      %p767 = pneg %p526
      %p768 = pneg %p550
      %p769 = pneg %p547
      %p770 = pneg %p571
      %p771 = pneg %p568
      %p772 = pneg %p597
      %p773 = pneg %p594
      %p774 = scmp.lt.s32.totalorder %s36, 1
      %s775 = scalar_select %p774, %s36, 1
      %s776 = smul.addr %s775, 8
      %s777 = scalar_lea.vmem %s25, %s776
      %p778 = scmp.lt.s32.totalorder %s36, 1
      %s779 = scalar_select %p778, %s36, 1
      %s780 = smul.addr %s779, 8
      %s781 = scalar_lea.vmem %s0, %s780
      %p782 = scmp.lt.s32.totalorder %s36, 1
      %s783 = scalar_select %p782, %s36, 1
      %s784 = smul.addr %s783, 8
      %s785 = scalar_lea.vmem %s1, %s784
      %p786 = scmp.lt.s32.totalorder %s36, 1
      %s787 = scalar_select %p786, %s36, 1
      %s788 = smul.addr %s787, 8
      %s789 = scalar_lea.vmem %s2, %s788
      %p790 = scmp.lt.s32.totalorder %s36, 1
      %s791 = scalar_select %p790, %s36, 1
      %s792 = smul.addr %s791, 8
      %s793 = scalar_lea.vmem %s25, %s792
      %v795 = vld [vmem:[%s781] sm:$0xff]
      %v796 = vpack.c.bf16 %v795, %v795
      %v797 = vld [vmem:[%s3] sm:$0x7]
      %v798 = vld [vmem:[%s785] sm:$0xff]
      %v799 = vpack.c.bf16 %v798, %v798
      %v800 = vld [vmem:[%s4] sm:$0x3]
      %vm801 = vcmask 31744
      %v803 = vsel %vm801, %v799, 0
      %vm805 = vcmask 1041408
      %v807 = vsel %vm805, %v800, 0
      %809 = vmatprep.subr.bf16.mxu0 0
      %810 = vmatpush1.bf16.msra.mxu0 0
      %811 = vmatprep.subr.bf16.mxu0 0
      %812 = vmatpush1.bf16.msra.mxu0 0
      %813 = vmatprep.subr.bf16.mxu0 0
      %814 = vmatpush1.bf16.msra.mxu0 0
      %815 = vmatprep.subr.bf16.mxu0 0
      %816 = vmatpush1.bf16.msra.mxu0 0
      %817 = vmatprep.subr.bf16.mxu0 0
      %818 = vmatpush1.bf16.msra.mxu0 0
      %819 = vmatprep.subr.bf16.mxu0 0
      %820 = vmatpush1.bf16.msra.mxu0 0
      %821 = vmatprep.subr.bf16.mxu0 0
      %822 = vmatpush1.bf16.msra.mxu0 0
      %823 = vmatprep.subr.bf16.mxu0 0
      %824 = vmatpush1.bf16.msra.mxu0 %v807
      %825 = vmatprep.subr.bf16.mxu0 0
      %826 = vmatpush2.bf16.msra.mxu0 0
      %827 = vmatprep.subr.bf16.mxu0 0
      %828 = vmatpush2.bf16.msra.mxu0 0
      %829 = vmatprep.subr.bf16.mxu0 0
      %830 = vmatpush2.bf16.msra.mxu0 0
      %831 = vmatprep.subr.bf16.mxu0 0
      %832 = vmatpush2.bf16.msra.mxu0 0
      %833 = vmatprep.subr.bf16.mxu0 0
      %834 = vmatpush2.bf16.msra.mxu0 0
      %835 = vmatprep.subr.bf16.mxu0 0
      %836 = vmatpush2.bf16.msra.mxu0 0
      %837 = vmatprep.subr.bf16.mxu0 0
      %838 = vmatpush2.bf16.msra.mxu0 0
      %839 = vmatprep.subr.bf16.mxu0 0
      %840 = vmatpush2.bf16.msra.mxu0 0
      %841 = vmatprep.mubr.bf16.mxu0 0
      %842 = vmatmul.mubr.bf16.gmra.mxu0 %v803
      %v843 = vpop.f32.mrf.mxu0
      %v844 = vadd.f32 0.0, %v843
      %v845 = vpop.f32.mrf.mxu0
      %v846 = vpop.f32.mrf.mxu0
      %v847 = vpop.f32.mrf.mxu0
      %848 = vdwg.mxu0
      %vm849 = vcmask 39936
      %v851 = vsel %vm849, %v796, 0
      %vm853 = vcmask 1042432
      %v854 = vsel %vm805, 4294967295, 65535
      %v855 = vsel %vm853, %v854, 0
      %v857 = vand.u32 %v797, %v855
      %859 = vmatprep.subr.bf16.mxu0 0
      %860 = vmatpush1.bf16.msra.mxu0 0
      %861 = vmatprep.subr.bf16.mxu0 0
      %862 = vmatpush1.bf16.msra.mxu0 0
      %863 = vmatprep.subr.bf16.mxu0 0
      %864 = vmatpush1.bf16.msra.mxu0 0
      %865 = vmatprep.subr.bf16.mxu0 0
      %866 = vmatpush1.bf16.msra.mxu0 0
      %867 = vmatprep.subr.bf16.mxu0 0
      %868 = vmatpush1.bf16.msra.mxu0 0
      %869 = vmatprep.subr.bf16.mxu0 0
      %870 = vmatpush1.bf16.msra.mxu0 0
      %871 = vmatprep.subr.bf16.mxu0 0
      %872 = vmatpush1.bf16.msra.mxu0 0
      %873 = vmatprep.subr.bf16.mxu0 0
      %874 = vmatpush1.bf16.msra.mxu0 %v857
      %875 = vmatprep.subr.bf16.mxu0 0
      %876 = vmatpush2.bf16.msra.mxu0 0
      %877 = vmatprep.subr.bf16.mxu0 0
      %878 = vmatpush2.bf16.msra.mxu0 0
      %879 = vmatprep.subr.bf16.mxu0 0
      %880 = vmatpush2.bf16.msra.mxu0 0
      %881 = vmatprep.subr.bf16.mxu0 0
      %882 = vmatpush2.bf16.msra.mxu0 0
      %883 = vmatprep.subr.bf16.mxu0 0
      %884 = vmatpush2.bf16.msra.mxu0 0
      %885 = vmatprep.subr.bf16.mxu0 0
      %886 = vmatpush2.bf16.msra.mxu0 0
      %887 = vmatprep.subr.bf16.mxu0 0
      %888 = vmatpush2.bf16.msra.mxu0 0
      %889 = vmatprep.subr.bf16.mxu0 0
      %890 = vmatpush2.bf16.msra.mxu0 0
      %891 = vmatprep.mubr.bf16.mxu0 0
      %892 = vmatmul.mubr.bf16.gmra.mxu0 %v851
      %v893 = vpop.f32.mrf.mxu0
      %v894 = vadd.f32 %v844, %v893
      %v895 = vpop.f32.mrf.mxu0
      %v896 = vpop.f32.mrf.mxu0
      %v897 = vpop.f32.mrf.mxu0
      %898 = vdwg.mxu0
      %v899 = vld [vmem:[%s789] sm:$0xff]
      %v900 = vpack.c.bf16 %v899, %v899
      %v901 = vld [vmem:[%s5] sm:$0x3]
      %v903 = vsel %vm801, %v900, 0
      %v906 = vsel %vm805, %v901, 0
      %908 = vmatprep.subr.bf16.mxu0 0
      %909 = vmatpush1.bf16.msra.mxu0 0
      %910 = vmatprep.subr.bf16.mxu0 0
      %911 = vmatpush1.bf16.msra.mxu0 0
      %912 = vmatprep.subr.bf16.mxu0 0
      %913 = vmatpush1.bf16.msra.mxu0 0
      %914 = vmatprep.subr.bf16.mxu0 0
      %915 = vmatpush1.bf16.msra.mxu0 0
      %916 = vmatprep.subr.bf16.mxu0 0
      %917 = vmatpush1.bf16.msra.mxu0 0
      %918 = vmatprep.subr.bf16.mxu0 0
      %919 = vmatpush1.bf16.msra.mxu0 0
      %920 = vmatprep.subr.bf16.mxu0 0
      %921 = vmatpush1.bf16.msra.mxu0 0
      %922 = vmatprep.subr.bf16.mxu0 0
      %923 = vmatpush1.bf16.msra.mxu0 %v906
      %924 = vmatprep.subr.bf16.mxu0 0
      %925 = vmatpush2.bf16.msra.mxu0 0
      %926 = vmatprep.subr.bf16.mxu0 0
      %927 = vmatpush2.bf16.msra.mxu0 0
      %928 = vmatprep.subr.bf16.mxu0 0
      %929 = vmatpush2.bf16.msra.mxu0 0
      %930 = vmatprep.subr.bf16.mxu0 0
      %931 = vmatpush2.bf16.msra.mxu0 0
      %932 = vmatprep.subr.bf16.mxu0 0
      %933 = vmatpush2.bf16.msra.mxu0 0
      %934 = vmatprep.subr.bf16.mxu0 0
      %935 = vmatpush2.bf16.msra.mxu0 0
      %936 = vmatprep.subr.bf16.mxu0 0
      %937 = vmatpush2.bf16.msra.mxu0 0
      %938 = vmatprep.subr.bf16.mxu0 0
      %939 = vmatpush2.bf16.msra.mxu0 0
      %940 = vmatprep.mubr.bf16.mxu0 0
      %941 = vmatmul.mubr.bf16.gmra.mxu0 %v903
      %v942 = vpop.f32.mrf.mxu0
      %v943 = vadd.f32 0.0, %v942
      %v944 = vpop.f32.mrf.mxu0
      %v945 = vpop.f32.mrf.mxu0
      %v946 = vpop.f32.mrf.mxu0
      %947 = vdwg.mxu0
      %v948 = vadd.f32 %v894, %v943
      %v949 = vld [vmem:[%s6] sm:$0x1]
      %v951 = vlaneseq
      %v952 = vshrl.u32 %v951, 7
      %v953 = vsub.s32 0, %v952
      %v954 = vrot.slane %v949, %v953
      %v956 = vadd.f32 %v948, %v954
      %v957 = vmax.f32 %v956, 0.0
      %v958 = vpack.c.bf16 %v957, %v957
      %v959 = vld [vmem:[%s7] sm:$0xf]
      %v960 = vld [vmem:[%s7 + $0x4] sm:$0xf]
      %v961 = vld [vmem:[%s7 + $0x8] sm:$0xf]
      %v962 = vld [vmem:[%s7 + $0xc] sm:$0xf]
      %v963 = vld [vmem:[%s8] sm:$0x1]
      %v965 = vlaneseq
      %v966 = vshrl.u32 %v965, 7
      %v967 = vsub.s32 0, %v966
      %v968 = vrot.slane %v963, %v967
      %v974 = vunpack.c.l.b16 %v959
      %v975 = vunpack.c.l.b16 %v960
      %v976 = vunpack.c.l.b16 %v961
      %v977 = vunpack.c.l.b16 %v962
      %v978 = vpack.c.b16 %v975, %v974
      %v979 = vpack.c.b16 %v977, %v976
      %vm982 = vcmask 261120
      %v984 = vsel %vm982, %v958, 0
      %986 = vmatprep.subr.bf16.mxu0 0
      %987 = vmatpush1.bf16.msra.mxu0 0
      %988 = vmatprep.subr.bf16.mxu0 0
      %989 = vmatpush1.bf16.msra.mxu0 0
      %990 = vmatprep.subr.bf16.mxu0 0
      %991 = vmatpush1.bf16.msra.mxu0 0
      %992 = vmatprep.subr.bf16.mxu0 0
      %993 = vmatpush1.bf16.msra.mxu0 0
      %994 = vmatprep.subr.bf16.mxu0 0
      %995 = vmatpush1.bf16.msra.mxu0 0
      %996 = vmatprep.subr.bf16.mxu0 0
      %997 = vmatpush1.bf16.msra.mxu0 0
      %998 = vmatprep.subr.bf16.mxu0 0
      %999 = vmatpush1.bf16.msra.mxu0 %v979
      %1000 = vmatprep.subr.bf16.mxu0 0
      %1001 = vmatpush1.bf16.msra.mxu0 %v978
      %1002 = vmatprep.subr.bf16.mxu0 0
      %1003 = vmatpush2.bf16.msra.mxu0 0
      %1004 = vmatprep.subr.bf16.mxu0 0
      %1005 = vmatpush2.bf16.msra.mxu0 0
      %1006 = vmatprep.subr.bf16.mxu0 0
      %1007 = vmatpush2.bf16.msra.mxu0 0
      %1008 = vmatprep.subr.bf16.mxu0 0
      %1009 = vmatpush2.bf16.msra.mxu0 0
      %1010 = vmatprep.subr.bf16.mxu0 0
      %1011 = vmatpush2.bf16.msra.mxu0 0
      %1012 = vmatprep.subr.bf16.mxu0 0
      %1013 = vmatpush2.bf16.msra.mxu0 0
      %1014 = vmatprep.subr.bf16.mxu0 0
      %1015 = vmatpush2.bf16.msra.mxu0 0
      %1016 = vmatprep.subr.bf16.mxu0 0
      %1017 = vmatpush2.bf16.msra.mxu0 0
      %1018 = vmatprep.mubr.bf16.mxu0 0
      %1019 = vmatmul.mubr.bf16.gmra.mxu0 %v984
      %v1020 = vpop.f32.mrf.mxu0
      %v1021 = vadd.f32 %v968, %v1020
      %v1022 = vpop.f32.mrf.mxu0
      %v1023 = vpop.f32.mrf.mxu0
      %v1024 = vpop.f32.mrf.mxu0
      %1025 = vdwg.mxu0
      %v1026 = vld [vmem:[%s9] sm:$0xf]
      %v1027 = vld [vmem:[%s9 + $0x4] sm:$0xf]
      %v1028 = vld [vmem:[%s9 + $0x8] sm:$0xf]
      %v1029 = vld [vmem:[%s9 + $0xc] sm:$0xf]
      %v1030 = vld [vmem:[%s10] sm:$0x1]
      %v1032 = vlaneseq
      %v1033 = vshrl.u32 %v1032, 7
      %v1034 = vsub.s32 0, %v1033
      %v1035 = vrot.slane %v1030, %v1034
      %v1041 = vunpack.c.l.b16 %v1026
      %v1042 = vunpack.c.l.b16 %v1027
      %v1043 = vunpack.c.l.b16 %v1028
      %v1044 = vunpack.c.l.b16 %v1029
      %v1045 = vpack.c.b16 %v1042, %v1041
      %v1046 = vpack.c.b16 %v1044, %v1043
      %1049 = vmatprep.subr.bf16.mxu0 0
      %1050 = vmatpush1.bf16.msra.mxu0 0
      %1051 = vmatprep.subr.bf16.mxu0 0
      %1052 = vmatpush1.bf16.msra.mxu0 0
      %1053 = vmatprep.subr.bf16.mxu0 0
      %1054 = vmatpush1.bf16.msra.mxu0 0
      %1055 = vmatprep.subr.bf16.mxu0 0
      %1056 = vmatpush1.bf16.msra.mxu0 0
      %1057 = vmatprep.subr.bf16.mxu0 0
      %1058 = vmatpush1.bf16.msra.mxu0 0
      %1059 = vmatprep.subr.bf16.mxu0 0
      %1060 = vmatpush1.bf16.msra.mxu0 0
      %1061 = vmatprep.subr.bf16.mxu0 0
      %1062 = vmatpush1.bf16.msra.mxu0 %v1046
      %1063 = vmatprep.subr.bf16.mxu0 0
      %1064 = vmatpush1.bf16.msra.mxu0 %v1045
      %1065 = vmatprep.subr.bf16.mxu0 0
      %1066 = vmatpush2.bf16.msra.mxu0 0
      %1067 = vmatprep.subr.bf16.mxu0 0
      %1068 = vmatpush2.bf16.msra.mxu0 0
      %1069 = vmatprep.subr.bf16.mxu0 0
      %1070 = vmatpush2.bf16.msra.mxu0 0
      %1071 = vmatprep.subr.bf16.mxu0 0
      %1072 = vmatpush2.bf16.msra.mxu0 0
      %1073 = vmatprep.subr.bf16.mxu0 0
      %1074 = vmatpush2.bf16.msra.mxu0 0
      %1075 = vmatprep.subr.bf16.mxu0 0
      %1076 = vmatpush2.bf16.msra.mxu0 0
      %1077 = vmatprep.subr.bf16.mxu0 0
      %1078 = vmatpush2.bf16.msra.mxu0 0
      %1079 = vmatprep.subr.bf16.mxu0 0
      %1080 = vmatpush2.bf16.msra.mxu0 0
      %1081 = vmatprep.mubr.bf16.mxu0 0
      %1082 = vmatmul.mubr.bf16.gmra.mxu0 %v984
      %v1083 = vpop.f32.mrf.mxu0
      %v1084 = vadd.f32 %v1035, %v1083
      %v1085 = vpop.f32.mrf.mxu0
      %v1086 = vpop.f32.mrf.mxu0
      %v1087 = vpop.f32.mrf.mxu0
      %1088 = vdwg.mxu0
      %v1089 = vld [vmem:[%s11] sm:$0xf]
      %v1090 = vld [vmem:[%s11 + $0x4] sm:$0xf]
      %v1091 = vld [vmem:[%s11 + $0x8] sm:$0xf]
      %v1092 = vld [vmem:[%s11 + $0xc] sm:$0xf]
      %v1093 = vld [vmem:[%s12] sm:$0x1]
      %v1095 = vlaneseq
      %v1096 = vshrl.u32 %v1095, 7
      %v1097 = vsub.s32 0, %v1096
      %v1098 = vrot.slane %v1093, %v1097
      %v1104 = vunpack.c.l.b16 %v1089
      %v1105 = vunpack.c.l.b16 %v1090
      %v1106 = vunpack.c.l.b16 %v1091
      %v1107 = vunpack.c.l.b16 %v1092
      %v1108 = vpack.c.b16 %v1105, %v1104
      %v1109 = vpack.c.b16 %v1107, %v1106
      %1112 = vmatprep.subr.bf16.mxu0 0
      %1113 = vmatpush1.bf16.msra.mxu0 0
      %1114 = vmatprep.subr.bf16.mxu0 0
      %1115 = vmatpush1.bf16.msra.mxu0 0
      %1116 = vmatprep.subr.bf16.mxu0 0
      %1117 = vmatpush1.bf16.msra.mxu0 0
      %1118 = vmatprep.subr.bf16.mxu0 0
      %1119 = vmatpush1.bf16.msra.mxu0 0
      %1120 = vmatprep.subr.bf16.mxu0 0
      %1121 = vmatpush1.bf16.msra.mxu0 0
      %1122 = vmatprep.subr.bf16.mxu0 0
      %1123 = vmatpush1.bf16.msra.mxu0 0
      %1124 = vmatprep.subr.bf16.mxu0 0
      %1125 = vmatpush1.bf16.msra.mxu0 %v1109
      %1126 = vmatprep.subr.bf16.mxu0 0
      %1127 = vmatpush1.bf16.msra.mxu0 %v1108
      %1128 = vmatprep.subr.bf16.mxu0 0
      %1129 = vmatpush2.bf16.msra.mxu0 0
      %1130 = vmatprep.subr.bf16.mxu0 0
      %1131 = vmatpush2.bf16.msra.mxu0 0
      %1132 = vmatprep.subr.bf16.mxu0 0
      %1133 = vmatpush2.bf16.msra.mxu0 0
      %1134 = vmatprep.subr.bf16.mxu0 0
      %1135 = vmatpush2.bf16.msra.mxu0 0
      %1136 = vmatprep.subr.bf16.mxu0 0
      %1137 = vmatpush2.bf16.msra.mxu0 0
      %1138 = vmatprep.subr.bf16.mxu0 0
      %1139 = vmatpush2.bf16.msra.mxu0 0
      %1140 = vmatprep.subr.bf16.mxu0 0
      %1141 = vmatpush2.bf16.msra.mxu0 0
      %1142 = vmatprep.subr.bf16.mxu0 0
      %1143 = vmatpush2.bf16.msra.mxu0 0
      %1144 = vmatprep.mubr.bf16.mxu0 0
      %1145 = vmatmul.mubr.bf16.gmra.mxu0 %v984
      %v1146 = vpop.f32.mrf.mxu0
      %v1147 = vadd.f32 %v1098, %v1146
      %v1148 = vpop.f32.mrf.mxu0
      %v1149 = vpop.f32.mrf.mxu0
      %v1150 = vpop.f32.mrf.mxu0
      %1151 = vdwg.mxu0
      %v1152 = vpack.c.bf16 %v1021, %v1021
      %v1153 = vpack.c.bf16 %v1084, %v1084
      %v1154 = vpack.c.bf16 %v1147, %v1147
      %vm1155 = vcmask 64512
      %v1157 = vsel %vm1155, %v1152, 0
      %v1160 = vsel %vm1155, %v1153, 0
      %1162 = vmatprep.subr.bf16.mxu0 0
      %1163 = vmatpush1.bf16.xpose.msra.mxu0 0
      %1164 = vmatprep.subr.bf16.mxu0 0
      %1165 = vmatpush1.bf16.xpose.msra.mxu0 0
      %1166 = vmatprep.subr.bf16.mxu0 0
      %1167 = vmatpush1.bf16.xpose.msra.mxu0 0
      %1168 = vmatprep.subr.bf16.mxu0 0
      %1169 = vmatpush1.bf16.xpose.msra.mxu0 0
      %1170 = vmatprep.subr.bf16.mxu0 0
      %1171 = vmatpush1.bf16.xpose.msra.mxu0 0
      %1172 = vmatprep.subr.bf16.mxu0 0
      %1173 = vmatpush1.bf16.xpose.msra.mxu0 0
      %1174 = vmatprep.subr.bf16.mxu0 0
      %1175 = vmatpush1.bf16.xpose.msra.mxu0 0
      %1176 = vmatprep.subr.bf16.mxu0 0
      %1177 = vmatpush1.bf16.xpose.msra.mxu0 %v1160
      %1178 = vmatprep.subr.bf16.mxu0 0
      %1179 = vmatpush2.bf16.xpose.msra.mxu0 0
      %1180 = vmatprep.subr.bf16.mxu0 0
      %1181 = vmatpush2.bf16.xpose.msra.mxu0 0
      %1182 = vmatprep.subr.bf16.mxu0 0
      %1183 = vmatpush2.bf16.xpose.msra.mxu0 0
      %1184 = vmatprep.subr.bf16.mxu0 0
      %1185 = vmatpush2.bf16.xpose.msra.mxu0 0
      %1186 = vmatprep.subr.bf16.mxu0 0
      %1187 = vmatpush2.bf16.xpose.msra.mxu0 0
      %1188 = vmatprep.subr.bf16.mxu0 0
      %1189 = vmatpush2.bf16.xpose.msra.mxu0 0
      %1190 = vmatprep.subr.bf16.mxu0 0
      %1191 = vmatpush2.bf16.xpose.msra.mxu0 0
      %1192 = vmatprep.subr.bf16.mxu0 0
      %1193 = vmatpush2.bf16.xpose.msra.mxu0 0
      %1194 = vmatprep.mubr.bf16.mxu0 0
      %1195 = vmatmul.mubr.bf16.gmra.mxu0 %v1157
      %v1196 = vpop.f32.mrf.mxu0
      %v1197 = vadd.f32 0.0, %v1196
      %v1198 = vpop.f32.mrf.mxu0
      %v1199 = vpop.f32.mrf.mxu0
      %v1200 = vpop.f32.mrf.mxu0
      %1201 = vdwg.mxu0
      %v1202 = vsel %vm1155, %v1197, -inf
      %1203 = vmax.xlane.f32.xlu0 %v1202
      %v1204 = vpop.xlane.xlu0 %1203
      %v1205 = vsub.f32 %v1197, %v1204
      %v1206 = vmul.f32 %v1205, 1.442695
      %v1207 = vpow.pop %v1206
      %v1208 = vsel %vm1155, %v1207, 0.0
      %1209 = vadd.xlane.f32.xlu0 %v1208
      %v1210 = vpop.xlane.xlu0 %1209
      %v1211 = vrcp.pop %v1210
      %v1212 = vmul.f32 %v1207, %v1211
      %v1213 = vpack.c.bf16 %v1212, %v1212
      %v1215 = vsel %vm1155, %v1213, 0
      %vm1217 = vcmask 1043456
      %v1219 = vsel %vm1217, %v1154, 0
      %1221 = vmatprep.subr.bf16.mxu0 0
      %1222 = vmatpush1.bf16.msra.mxu0 0
      %1223 = vmatprep.subr.bf16.mxu0 0
      %1224 = vmatpush1.bf16.msra.mxu0 0
      %1225 = vmatprep.subr.bf16.mxu0 0
      %1226 = vmatpush1.bf16.msra.mxu0 0
      %1227 = vmatprep.subr.bf16.mxu0 0
      %1228 = vmatpush1.bf16.msra.mxu0 0
      %1229 = vmatprep.subr.bf16.mxu0 0
      %1230 = vmatpush1.bf16.msra.mxu0 0
      %1231 = vmatprep.subr.bf16.mxu0 0
      %1232 = vmatpush1.bf16.msra.mxu0 0
      %1233 = vmatprep.subr.bf16.mxu0 0
      %1234 = vmatpush1.bf16.msra.mxu0 0
      %1235 = vmatprep.subr.bf16.mxu0 0
      %1236 = vmatpush1.bf16.msra.mxu0 %v1219
      %1237 = vmatprep.subr.bf16.mxu0 0
      %1238 = vmatpush2.bf16.msra.mxu0 0
      %1239 = vmatprep.subr.bf16.mxu0 0
      %1240 = vmatpush2.bf16.msra.mxu0 0
      %1241 = vmatprep.subr.bf16.mxu0 0
      %1242 = vmatpush2.bf16.msra.mxu0 0
      %1243 = vmatprep.subr.bf16.mxu0 0
      %1244 = vmatpush2.bf16.msra.mxu0 0
      %1245 = vmatprep.subr.bf16.mxu0 0
      %1246 = vmatpush2.bf16.msra.mxu0 0
      %1247 = vmatprep.subr.bf16.mxu0 0
      %1248 = vmatpush2.bf16.msra.mxu0 0
      %1249 = vmatprep.subr.bf16.mxu0 0
      %1250 = vmatpush2.bf16.msra.mxu0 0
      %1251 = vmatprep.subr.bf16.mxu0 0
      %1252 = vmatpush2.bf16.msra.mxu0 0
      %1253 = vmatprep.mubr.bf16.mxu0 0
      %1254 = vmatmul.mubr.bf16.gmra.mxu0 %v1215
      %v1255 = vpop.f32.mrf.mxu0
      %v1256 = vadd.f32 0.0, %v1255
      %v1257 = vpop.f32.mrf.mxu0
      %v1258 = vpop.f32.mrf.mxu0
      %v1259 = vpop.f32.mrf.mxu0
      %1260 = vdwg.mxu0
      %v1261 = vpack.c.bf16 %v1256, %v1256
      %v1262 = vld [vmem:[%s13] sm:$0xf]
      %1264 = vrot.lane.b32.xlu0 %v1152, 120
      %v1265 = vpop.permute.xlu0 %1264
      %1267 = vrot.lane.b32.xlu0 %v1153, 120
      %v1268 = vpop.permute.xlu0 %1267
      %v1270 = vsel %vm1155, %v1265, 0
      %v1273 = vsel %vm1155, %v1268, 0
      %1275 = vmatprep.subr.bf16.mxu0 0
      %1276 = vmatpush1.bf16.xpose.msra.mxu0 0
      %1277 = vmatprep.subr.bf16.mxu0 0
      %1278 = vmatpush1.bf16.xpose.msra.mxu0 0
      %1279 = vmatprep.subr.bf16.mxu0 0
      %1280 = vmatpush1.bf16.xpose.msra.mxu0 0
      %1281 = vmatprep.subr.bf16.mxu0 0
      %1282 = vmatpush1.bf16.xpose.msra.mxu0 0
      %1283 = vmatprep.subr.bf16.mxu0 0
      %1284 = vmatpush1.bf16.xpose.msra.mxu0 0
      %1285 = vmatprep.subr.bf16.mxu0 0
      %1286 = vmatpush1.bf16.xpose.msra.mxu0 0
      %1287 = vmatprep.subr.bf16.mxu0 0
      %1288 = vmatpush1.bf16.xpose.msra.mxu0 0
      %1289 = vmatprep.subr.bf16.mxu0 0
      %1290 = vmatpush1.bf16.xpose.msra.mxu0 %v1273
      %1291 = vmatprep.subr.bf16.mxu0 0
      %1292 = vmatpush2.bf16.xpose.msra.mxu0 0
      %1293 = vmatprep.subr.bf16.mxu0 0
      %1294 = vmatpush2.bf16.xpose.msra.mxu0 0
      %1295 = vmatprep.subr.bf16.mxu0 0
      %1296 = vmatpush2.bf16.xpose.msra.mxu0 0
      %1297 = vmatprep.subr.bf16.mxu0 0
      %1298 = vmatpush2.bf16.xpose.msra.mxu0 0
      %1299 = vmatprep.subr.bf16.mxu0 0
      %1300 = vmatpush2.bf16.xpose.msra.mxu0 0
      %1301 = vmatprep.subr.bf16.mxu0 0
      %1302 = vmatpush2.bf16.xpose.msra.mxu0 0
      %1303 = vmatprep.subr.bf16.mxu0 0
      %1304 = vmatpush2.bf16.xpose.msra.mxu0 0
      %1305 = vmatprep.subr.bf16.mxu0 0
      %1306 = vmatpush2.bf16.xpose.msra.mxu0 0
      %1307 = vmatprep.mubr.bf16.mxu0 0
      %1308 = vmatmul.mubr.bf16.gmra.mxu0 %v1270
      %v1309 = vpop.f32.mrf.mxu0
      %v1310 = vadd.f32 0.0, %v1309
      %v1311 = vpop.f32.mrf.mxu0
      %v1312 = vpop.f32.mrf.mxu0
      %v1313 = vpop.f32.mrf.mxu0
      %1314 = vdwg.mxu0
      %v1315 = vsel %vm1155, %v1310, -inf
      %1316 = vmax.xlane.f32.xlu0 %v1315
      %v1317 = vpop.xlane.xlu0 %1316
      %v1318 = vsub.f32 %v1310, %v1317
      %v1319 = vmul.f32 %v1318, 1.442695
      %v1320 = vpow.pop %v1319
      %v1321 = vsel %vm1155, %v1320, 0.0
      %1322 = vadd.xlane.f32.xlu0 %v1321
      %v1323 = vpop.xlane.xlu0 %1322
      %v1324 = vrcp.pop %v1323
      %v1325 = vmul.f32 %v1320, %v1324
      %v1326 = vpack.c.bf16 %v1325, %v1325
      %1328 = vrot.lane.b32.xlu0 %v1154, 120
      %v1329 = vpop.permute.xlu0 %1328
      %v1331 = vsel %vm1155, %v1326, 0
      %v1334 = vsel %vm1217, %v1329, 0
      %1336 = vmatprep.subr.bf16.mxu0 0
      %1337 = vmatpush1.bf16.msra.mxu0 0
      %1338 = vmatprep.subr.bf16.mxu0 0
      %1339 = vmatpush1.bf16.msra.mxu0 0
      %1340 = vmatprep.subr.bf16.mxu0 0
      %1341 = vmatpush1.bf16.msra.mxu0 0
      %1342 = vmatprep.subr.bf16.mxu0 0
      %1343 = vmatpush1.bf16.msra.mxu0 0
      %1344 = vmatprep.subr.bf16.mxu0 0
      %1345 = vmatpush1.bf16.msra.mxu0 0
      %1346 = vmatprep.subr.bf16.mxu0 0
      %1347 = vmatpush1.bf16.msra.mxu0 0
      %1348 = vmatprep.subr.bf16.mxu0 0
      %1349 = vmatpush1.bf16.msra.mxu0 0
      %1350 = vmatprep.subr.bf16.mxu0 0
      %1351 = vmatpush1.bf16.msra.mxu0 %v1334
      %1352 = vmatprep.subr.bf16.mxu0 0
      %1353 = vmatpush2.bf16.msra.mxu0 0
      %1354 = vmatprep.subr.bf16.mxu0 0
      %1355 = vmatpush2.bf16.msra.mxu0 0
      %1356 = vmatprep.subr.bf16.mxu0 0
      %1357 = vmatpush2.bf16.msra.mxu0 0
      %1358 = vmatprep.subr.bf16.mxu0 0
      %1359 = vmatpush2.bf16.msra.mxu0 0
      %1360 = vmatprep.subr.bf16.mxu0 0
      %1361 = vmatpush2.bf16.msra.mxu0 0
      %1362 = vmatprep.subr.bf16.mxu0 0
      %1363 = vmatpush2.bf16.msra.mxu0 0
      %1364 = vmatprep.subr.bf16.mxu0 0
      %1365 = vmatpush2.bf16.msra.mxu0 0
      %1366 = vmatprep.subr.bf16.mxu0 0
      %1367 = vmatpush2.bf16.msra.mxu0 0
      %1368 = vmatprep.mubr.bf16.mxu0 0
      %1369 = vmatmul.mubr.bf16.gmra.mxu0 %v1331
      %v1370 = vpop.f32.mrf.mxu0
      %v1371 = vadd.f32 0.0, %v1370
      %v1372 = vpop.f32.mrf.mxu0
      %v1373 = vpop.f32.mrf.mxu0
      %v1374 = vpop.f32.mrf.mxu0
      %1375 = vdwg.mxu0
      %v1376 = vpack.c.bf16 %v1371, %v1371
      %s1377 = scalar_lea.vmem %s13, 4
      %v1378 = vld [vmem:[%s1377] sm:$0xf]
      %v1380 = vsel %vm1155, %v1376, 0
      %v1383 = vsel %vm1217, %v1378, 0
      %1385 = vmatprep.subr.bf16.mxu0 0
      %1386 = vmatpush1.bf16.msra.mxu0 0
      %1387 = vmatprep.subr.bf16.mxu0 0
      %1388 = vmatpush1.bf16.msra.mxu0 0
      %1389 = vmatprep.subr.bf16.mxu0 0
      %1390 = vmatpush1.bf16.msra.mxu0 0
      %1391 = vmatprep.subr.bf16.mxu0 0
      %1392 = vmatpush1.bf16.msra.mxu0 0
      %1393 = vmatprep.subr.bf16.mxu0 0
      %1394 = vmatpush1.bf16.msra.mxu0 0
      %1395 = vmatprep.subr.bf16.mxu0 0
      %1396 = vmatpush1.bf16.msra.mxu0 0
      %1397 = vmatprep.subr.bf16.mxu0 0
      %1398 = vmatpush1.bf16.msra.mxu0 0
      %1399 = vmatprep.subr.bf16.mxu0 0
      %1400 = vmatpush1.bf16.msra.mxu0 %v1383
      %1401 = vmatprep.subr.bf16.mxu0 0
      %1402 = vmatpush2.bf16.msra.mxu0 0
      %1403 = vmatprep.subr.bf16.mxu0 0
      %1404 = vmatpush2.bf16.msra.mxu0 0
      %1405 = vmatprep.subr.bf16.mxu0 0
      %1406 = vmatpush2.bf16.msra.mxu0 0
      %1407 = vmatprep.subr.bf16.mxu0 0
      %1408 = vmatpush2.bf16.msra.mxu0 0
      %1409 = vmatprep.subr.bf16.mxu0 0
      %1410 = vmatpush2.bf16.msra.mxu0 0
      %1411 = vmatprep.subr.bf16.mxu0 0
      %1412 = vmatpush2.bf16.msra.mxu0 0
      %1413 = vmatprep.subr.bf16.mxu0 0
      %1414 = vmatpush2.bf16.msra.mxu0 0
      %1415 = vmatprep.subr.bf16.mxu0 0
      %1416 = vmatpush2.bf16.msra.mxu0 0
      %1417 = vmatprep.mubr.bf16.mxu0 0
      %1418 = vmatmul.mubr.bf16.gmra.mxu0 %v1380
      %v1419 = vpop.f32.mrf.mxu0
      %v1420 = vadd.f32 0.0, %v1419
      %v1421 = vpop.f32.mrf.mxu0
      %v1422 = vpop.f32.mrf.mxu0
      %v1423 = vpop.f32.mrf.mxu0
      %1424 = vdwg.mxu0
      %v1426 = vsel %vm1155, %v1261, 0
      %v1429 = vsel %vm1217, %v1262, 0
      %1431 = vmatprep.subr.bf16.mxu0 0
      %1432 = vmatpush1.bf16.msra.mxu0 0
      %1433 = vmatprep.subr.bf16.mxu0 0
      %1434 = vmatpush1.bf16.msra.mxu0 0
      %1435 = vmatprep.subr.bf16.mxu0 0
      %1436 = vmatpush1.bf16.msra.mxu0 0
      %1437 = vmatprep.subr.bf16.mxu0 0
      %1438 = vmatpush1.bf16.msra.mxu0 0
      %1439 = vmatprep.subr.bf16.mxu0 0
      %1440 = vmatpush1.bf16.msra.mxu0 0
      %1441 = vmatprep.subr.bf16.mxu0 0
      %1442 = vmatpush1.bf16.msra.mxu0 0
      %1443 = vmatprep.subr.bf16.mxu0 0
      %1444 = vmatpush1.bf16.msra.mxu0 0
      %1445 = vmatprep.subr.bf16.mxu0 0
      %1446 = vmatpush1.bf16.msra.mxu0 %v1429
      %1447 = vmatprep.subr.bf16.mxu0 0
      %1448 = vmatpush2.bf16.msra.mxu0 0
      %1449 = vmatprep.subr.bf16.mxu0 0
      %1450 = vmatpush2.bf16.msra.mxu0 0
      %1451 = vmatprep.subr.bf16.mxu0 0
      %1452 = vmatpush2.bf16.msra.mxu0 0
      %1453 = vmatprep.subr.bf16.mxu0 0
      %1454 = vmatpush2.bf16.msra.mxu0 0
      %1455 = vmatprep.subr.bf16.mxu0 0
      %1456 = vmatpush2.bf16.msra.mxu0 0
      %1457 = vmatprep.subr.bf16.mxu0 0
      %1458 = vmatpush2.bf16.msra.mxu0 0
      %1459 = vmatprep.subr.bf16.mxu0 0
      %1460 = vmatpush2.bf16.msra.mxu0 0
      %1461 = vmatprep.subr.bf16.mxu0 0
      %1462 = vmatpush2.bf16.msra.mxu0 0
      %1463 = vmatprep.mubr.bf16.mxu0 0
      %1464 = vmatmul.mubr.bf16.gmra.mxu0 %v1426
      %v1465 = vpop.f32.mrf.mxu0
      %v1466 = vadd.f32 %v1420, %v1465
      %v1467 = vpop.f32.mrf.mxu0
      %v1468 = vpop.f32.mrf.mxu0
      %v1469 = vpop.f32.mrf.mxu0
      %1470 = vdwg.mxu0
      %1471 = vrot.lane.b32.xlu0 %v1152, 112
      %v1472 = vpop.permute.xlu0 %1471
      %1473 = vrot.lane.b32.xlu0 %v1153, 112
      %v1474 = vpop.permute.xlu0 %1473
      %v1476 = vsel %vm1155, %v1472, 0
      %v1479 = vsel %vm1155, %v1474, 0
      %1481 = vmatprep.subr.bf16.mxu0 0
      %1482 = vmatpush1.bf16.xpose.msra.mxu0 0
      %1483 = vmatprep.subr.bf16.mxu0 0
      %1484 = vmatpush1.bf16.xpose.msra.mxu0 0
      %1485 = vmatprep.subr.bf16.mxu0 0
      %1486 = vmatpush1.bf16.xpose.msra.mxu0 0
      %1487 = vmatprep.subr.bf16.mxu0 0
      %1488 = vmatpush1.bf16.xpose.msra.mxu0 0
      %1489 = vmatprep.subr.bf16.mxu0 0
      %1490 = vmatpush1.bf16.xpose.msra.mxu0 0
      %1491 = vmatprep.subr.bf16.mxu0 0
      %1492 = vmatpush1.bf16.xpose.msra.mxu0 0
      %1493 = vmatprep.subr.bf16.mxu0 0
      %1494 = vmatpush1.bf16.xpose.msra.mxu0 0
      %1495 = vmatprep.subr.bf16.mxu0 0
      %1496 = vmatpush1.bf16.xpose.msra.mxu0 %v1479
      %1497 = vmatprep.subr.bf16.mxu0 0
      %1498 = vmatpush2.bf16.xpose.msra.mxu0 0
      %1499 = vmatprep.subr.bf16.mxu0 0
      %1500 = vmatpush2.bf16.xpose.msra.mxu0 0
      %1501 = vmatprep.subr.bf16.mxu0 0
      %1502 = vmatpush2.bf16.xpose.msra.mxu0 0
      %1503 = vmatprep.subr.bf16.mxu0 0
      %1504 = vmatpush2.bf16.xpose.msra.mxu0 0
      %1505 = vmatprep.subr.bf16.mxu0 0
      %1506 = vmatpush2.bf16.xpose.msra.mxu0 0
      %1507 = vmatprep.subr.bf16.mxu0 0
      %1508 = vmatpush2.bf16.xpose.msra.mxu0 0
      %1509 = vmatprep.subr.bf16.mxu0 0
      %1510 = vmatpush2.bf16.xpose.msra.mxu0 0
      %1511 = vmatprep.subr.bf16.mxu0 0
      %1512 = vmatpush2.bf16.xpose.msra.mxu0 0
      %1513 = vmatprep.mubr.bf16.mxu0 0
      %1514 = vmatmul.mubr.bf16.gmra.mxu0 %v1476
      %v1515 = vpop.f32.mrf.mxu0
      %v1516 = vadd.f32 0.0, %v1515
      %v1517 = vpop.f32.mrf.mxu0
      %v1518 = vpop.f32.mrf.mxu0
      %v1519 = vpop.f32.mrf.mxu0
      %1520 = vdwg.mxu0
      %v1521 = vsel %vm1155, %v1516, -inf
      %1522 = vmax.xlane.f32.xlu0 %v1521
      %v1523 = vpop.xlane.xlu0 %1522
      %v1524 = vsub.f32 %v1516, %v1523
      %v1525 = vmul.f32 %v1524, 1.442695
      %v1526 = vpow.pop %v1525
      %v1527 = vsel %vm1155, %v1526, 0.0
      %1528 = vadd.xlane.f32.xlu0 %v1527
      %v1529 = vpop.xlane.xlu0 %1528
      %v1530 = vrcp.pop %v1529
      %v1531 = vmul.f32 %v1526, %v1530
      %v1532 = vpack.c.bf16 %v1531, %v1531
      %1533 = vrot.lane.b32.xlu0 %v1154, 112
      %v1534 = vpop.permute.xlu0 %1533
      %v1536 = vsel %vm1155, %v1532, 0
      %v1539 = vsel %vm1217, %v1534, 0
      %1541 = vmatprep.subr.bf16.mxu0 0
      %1542 = vmatpush1.bf16.msra.mxu0 0
      %1543 = vmatprep.subr.bf16.mxu0 0
      %1544 = vmatpush1.bf16.msra.mxu0 0
      %1545 = vmatprep.subr.bf16.mxu0 0
      %1546 = vmatpush1.bf16.msra.mxu0 0
      %1547 = vmatprep.subr.bf16.mxu0 0
      %1548 = vmatpush1.bf16.msra.mxu0 0
      %1549 = vmatprep.subr.bf16.mxu0 0
      %1550 = vmatpush1.bf16.msra.mxu0 0
      %1551 = vmatprep.subr.bf16.mxu0 0
      %1552 = vmatpush1.bf16.msra.mxu0 0
      %1553 = vmatprep.subr.bf16.mxu0 0
      %1554 = vmatpush1.bf16.msra.mxu0 0
      %1555 = vmatprep.subr.bf16.mxu0 0
      %1556 = vmatpush1.bf16.msra.mxu0 %v1539
      %1557 = vmatprep.subr.bf16.mxu0 0
      %1558 = vmatpush2.bf16.msra.mxu0 0
      %1559 = vmatprep.subr.bf16.mxu0 0
      %1560 = vmatpush2.bf16.msra.mxu0 0
      %1561 = vmatprep.subr.bf16.mxu0 0
      %1562 = vmatpush2.bf16.msra.mxu0 0
      %1563 = vmatprep.subr.bf16.mxu0 0
      %1564 = vmatpush2.bf16.msra.mxu0 0
      %1565 = vmatprep.subr.bf16.mxu0 0
      %1566 = vmatpush2.bf16.msra.mxu0 0
      %1567 = vmatprep.subr.bf16.mxu0 0
      %1568 = vmatpush2.bf16.msra.mxu0 0
      %1569 = vmatprep.subr.bf16.mxu0 0
      %1570 = vmatpush2.bf16.msra.mxu0 0
      %1571 = vmatprep.subr.bf16.mxu0 0
      %1572 = vmatpush2.bf16.msra.mxu0 0
      %1573 = vmatprep.mubr.bf16.mxu0 0
      %1574 = vmatmul.mubr.bf16.gmra.mxu0 %v1536
      %v1575 = vpop.f32.mrf.mxu0
      %v1576 = vadd.f32 0.0, %v1575
      %v1577 = vpop.f32.mrf.mxu0
      %v1578 = vpop.f32.mrf.mxu0
      %v1579 = vpop.f32.mrf.mxu0
      %1580 = vdwg.mxu0
      %v1581 = vpack.c.bf16 %v1576, %v1576
      %s1582 = scalar_lea.vmem %s13, 8
      %v1583 = vld [vmem:[%s1582] sm:$0xf]
      %v1585 = vsel %vm1155, %v1581, 0
      %v1588 = vsel %vm1217, %v1583, 0
      %1590 = vmatprep.subr.bf16.mxu0 0
      %1591 = vmatpush1.bf16.msra.mxu0 0
      %1592 = vmatprep.subr.bf16.mxu0 0
      %1593 = vmatpush1.bf16.msra.mxu0 0
      %1594 = vmatprep.subr.bf16.mxu0 0
      %1595 = vmatpush1.bf16.msra.mxu0 0
      %1596 = vmatprep.subr.bf16.mxu0 0
      %1597 = vmatpush1.bf16.msra.mxu0 0
      %1598 = vmatprep.subr.bf16.mxu0 0
      %1599 = vmatpush1.bf16.msra.mxu0 0
      %1600 = vmatprep.subr.bf16.mxu0 0
      %1601 = vmatpush1.bf16.msra.mxu0 0
      %1602 = vmatprep.subr.bf16.mxu0 0
      %1603 = vmatpush1.bf16.msra.mxu0 0
      %1604 = vmatprep.subr.bf16.mxu0 0
      %1605 = vmatpush1.bf16.msra.mxu0 %v1588
      %1606 = vmatprep.subr.bf16.mxu0 0
      %1607 = vmatpush2.bf16.msra.mxu0 0
      %1608 = vmatprep.subr.bf16.mxu0 0
      %1609 = vmatpush2.bf16.msra.mxu0 0
      %1610 = vmatprep.subr.bf16.mxu0 0
      %1611 = vmatpush2.bf16.msra.mxu0 0
      %1612 = vmatprep.subr.bf16.mxu0 0
      %1613 = vmatpush2.bf16.msra.mxu0 0
      %1614 = vmatprep.subr.bf16.mxu0 0
      %1615 = vmatpush2.bf16.msra.mxu0 0
      %1616 = vmatprep.subr.bf16.mxu0 0
      %1617 = vmatpush2.bf16.msra.mxu0 0
      %1618 = vmatprep.subr.bf16.mxu0 0
      %1619 = vmatpush2.bf16.msra.mxu0 0
      %1620 = vmatprep.subr.bf16.mxu0 0
      %1621 = vmatpush2.bf16.msra.mxu0 0
      %1622 = vmatprep.mubr.bf16.mxu0 0
      %1623 = vmatmul.mubr.bf16.gmra.mxu0 %v1585
      %v1624 = vpop.f32.mrf.mxu0
      %v1625 = vadd.f32 0.0, %v1624
      %v1626 = vpop.f32.mrf.mxu0
      %v1627 = vpop.f32.mrf.mxu0
      %v1628 = vpop.f32.mrf.mxu0
      %1629 = vdwg.mxu0
      %v1630 = vadd.f32 %v1466, %v1625
      %1631 = vrot.lane.b32.xlu0 %v1152, 104
      %v1632 = vpop.permute.xlu0 %1631
      %1633 = vrot.lane.b32.xlu0 %v1153, 104
      %v1634 = vpop.permute.xlu0 %1633
      %v1636 = vsel %vm1155, %v1632, 0
      %v1639 = vsel %vm1155, %v1634, 0
      %1641 = vmatprep.subr.bf16.mxu0 0
      %1642 = vmatpush1.bf16.xpose.msra.mxu0 0
      %1643 = vmatprep.subr.bf16.mxu0 0
      %1644 = vmatpush1.bf16.xpose.msra.mxu0 0
      %1645 = vmatprep.subr.bf16.mxu0 0
      %1646 = vmatpush1.bf16.xpose.msra.mxu0 0
      %1647 = vmatprep.subr.bf16.mxu0 0
      %1648 = vmatpush1.bf16.xpose.msra.mxu0 0
      %1649 = vmatprep.subr.bf16.mxu0 0
      %1650 = vmatpush1.bf16.xpose.msra.mxu0 0
      %1651 = vmatprep.subr.bf16.mxu0 0
      %1652 = vmatpush1.bf16.xpose.msra.mxu0 0
      %1653 = vmatprep.subr.bf16.mxu0 0
      %1654 = vmatpush1.bf16.xpose.msra.mxu0 0
      %1655 = vmatprep.subr.bf16.mxu0 0
      %1656 = vmatpush1.bf16.xpose.msra.mxu0 %v1639
      %1657 = vmatprep.subr.bf16.mxu0 0
      %1658 = vmatpush2.bf16.xpose.msra.mxu0 0
      %1659 = vmatprep.subr.bf16.mxu0 0
      %1660 = vmatpush2.bf16.xpose.msra.mxu0 0
      %1661 = vmatprep.subr.bf16.mxu0 0
      %1662 = vmatpush2.bf16.xpose.msra.mxu0 0
      %1663 = vmatprep.subr.bf16.mxu0 0
      %1664 = vmatpush2.bf16.xpose.msra.mxu0 0
      %1665 = vmatprep.subr.bf16.mxu0 0
      %1666 = vmatpush2.bf16.xpose.msra.mxu0 0
      %1667 = vmatprep.subr.bf16.mxu0 0
      %1668 = vmatpush2.bf16.xpose.msra.mxu0 0
      %1669 = vmatprep.subr.bf16.mxu0 0
      %1670 = vmatpush2.bf16.xpose.msra.mxu0 0
      %1671 = vmatprep.subr.bf16.mxu0 0
      %1672 = vmatpush2.bf16.xpose.msra.mxu0 0
      %1673 = vmatprep.mubr.bf16.mxu0 0
      %1674 = vmatmul.mubr.bf16.gmra.mxu0 %v1636
      %v1675 = vpop.f32.mrf.mxu0
      %v1676 = vadd.f32 0.0, %v1675
      %v1677 = vpop.f32.mrf.mxu0
      %v1678 = vpop.f32.mrf.mxu0
      %v1679 = vpop.f32.mrf.mxu0
      %1680 = vdwg.mxu0
      %v1681 = vsel %vm1155, %v1676, -inf
      %1682 = vmax.xlane.f32.xlu0 %v1681
      %v1683 = vpop.xlane.xlu0 %1682
      %v1684 = vsub.f32 %v1676, %v1683
      %v1685 = vmul.f32 %v1684, 1.442695
      %v1686 = vpow.pop %v1685
      %v1687 = vsel %vm1155, %v1686, 0.0
      %1688 = vadd.xlane.f32.xlu0 %v1687
      %v1689 = vpop.xlane.xlu0 %1688
      %v1690 = vrcp.pop %v1689
      %v1691 = vmul.f32 %v1686, %v1690
      %v1692 = vpack.c.bf16 %v1691, %v1691
      %1693 = vrot.lane.b32.xlu0 %v1154, 104
      %v1694 = vpop.permute.xlu0 %1693
      %v1696 = vsel %vm1155, %v1692, 0
      %v1699 = vsel %vm1217, %v1694, 0
      %1701 = vmatprep.subr.bf16.mxu0 0
      %1702 = vmatpush1.bf16.msra.mxu0 0
      %1703 = vmatprep.subr.bf16.mxu0 0
      %1704 = vmatpush1.bf16.msra.mxu0 0
      %1705 = vmatprep.subr.bf16.mxu0 0
      %1706 = vmatpush1.bf16.msra.mxu0 0
      %1707 = vmatprep.subr.bf16.mxu0 0
      %1708 = vmatpush1.bf16.msra.mxu0 0
      %1709 = vmatprep.subr.bf16.mxu0 0
      %1710 = vmatpush1.bf16.msra.mxu0 0
      %1711 = vmatprep.subr.bf16.mxu0 0
      %1712 = vmatpush1.bf16.msra.mxu0 0
      %1713 = vmatprep.subr.bf16.mxu0 0
      %1714 = vmatpush1.bf16.msra.mxu0 0
      %1715 = vmatprep.subr.bf16.mxu0 0
      %1716 = vmatpush1.bf16.msra.mxu0 %v1699
      %1717 = vmatprep.subr.bf16.mxu0 0
      %1718 = vmatpush2.bf16.msra.mxu0 0
      %1719 = vmatprep.subr.bf16.mxu0 0
      %1720 = vmatpush2.bf16.msra.mxu0 0
      %1721 = vmatprep.subr.bf16.mxu0 0
      %1722 = vmatpush2.bf16.msra.mxu0 0
      %1723 = vmatprep.subr.bf16.mxu0 0
      %1724 = vmatpush2.bf16.msra.mxu0 0
      %1725 = vmatprep.subr.bf16.mxu0 0
      %1726 = vmatpush2.bf16.msra.mxu0 0
      %1727 = vmatprep.subr.bf16.mxu0 0
      %1728 = vmatpush2.bf16.msra.mxu0 0
      %1729 = vmatprep.subr.bf16.mxu0 0
      %1730 = vmatpush2.bf16.msra.mxu0 0
      %1731 = vmatprep.subr.bf16.mxu0 0
      %1732 = vmatpush2.bf16.msra.mxu0 0
      %1733 = vmatprep.mubr.bf16.mxu0 0
      %1734 = vmatmul.mubr.bf16.gmra.mxu0 %v1696
      %v1735 = vpop.f32.mrf.mxu0
      %v1736 = vadd.f32 0.0, %v1735
      %v1737 = vpop.f32.mrf.mxu0
      %v1738 = vpop.f32.mrf.mxu0
      %v1739 = vpop.f32.mrf.mxu0
      %1740 = vdwg.mxu0
      %v1741 = vpack.c.bf16 %v1736, %v1736
      %s1742 = scalar_lea.vmem %s13, 12
      %v1743 = vld [vmem:[%s1742] sm:$0xf]
      %v1745 = vsel %vm1155, %v1741, 0
      %v1748 = vsel %vm1217, %v1743, 0
      %1750 = vmatprep.subr.bf16.mxu0 0
      %1751 = vmatpush1.bf16.msra.mxu0 0
      %1752 = vmatprep.subr.bf16.mxu0 0
      %1753 = vmatpush1.bf16.msra.mxu0 0
      %1754 = vmatprep.subr.bf16.mxu0 0
      %1755 = vmatpush1.bf16.msra.mxu0 0
      %1756 = vmatprep.subr.bf16.mxu0 0
      %1757 = vmatpush1.bf16.msra.mxu0 0
      %1758 = vmatprep.subr.bf16.mxu0 0
      %1759 = vmatpush1.bf16.msra.mxu0 0
      %1760 = vmatprep.subr.bf16.mxu0 0
      %1761 = vmatpush1.bf16.msra.mxu0 0
      %1762 = vmatprep.subr.bf16.mxu0 0
      %1763 = vmatpush1.bf16.msra.mxu0 0
      %1764 = vmatprep.subr.bf16.mxu0 0
      %1765 = vmatpush1.bf16.msra.mxu0 %v1748
      %1766 = vmatprep.subr.bf16.mxu0 0
      %1767 = vmatpush2.bf16.msra.mxu0 0
      %1768 = vmatprep.subr.bf16.mxu0 0
      %1769 = vmatpush2.bf16.msra.mxu0 0
      %1770 = vmatprep.subr.bf16.mxu0 0
      %1771 = vmatpush2.bf16.msra.mxu0 0
      %1772 = vmatprep.subr.bf16.mxu0 0
      %1773 = vmatpush2.bf16.msra.mxu0 0
      %1774 = vmatprep.subr.bf16.mxu0 0
      %1775 = vmatpush2.bf16.msra.mxu0 0
      %1776 = vmatprep.subr.bf16.mxu0 0
      %1777 = vmatpush2.bf16.msra.mxu0 0
      %1778 = vmatprep.subr.bf16.mxu0 0
      %1779 = vmatpush2.bf16.msra.mxu0 0
      %1780 = vmatprep.subr.bf16.mxu0 0
      %1781 = vmatpush2.bf16.msra.mxu0 0
      %1782 = vmatprep.mubr.bf16.mxu0 0
      %1783 = vmatmul.mubr.bf16.gmra.mxu0 %v1745
      %v1784 = vpop.f32.mrf.mxu0
      %v1785 = vadd.f32 0.0, %v1784
      %v1786 = vpop.f32.mrf.mxu0
      %v1787 = vpop.f32.mrf.mxu0
      %v1788 = vpop.f32.mrf.mxu0
      %1789 = vdwg.mxu0
      %v1790 = vadd.f32 %v1630, %v1785
      %v1791 = vld [vmem:[%s14] sm:$0x1]
      %v1793 = vlaneseq
      %v1794 = vshrl.u32 %v1793, 7
      %v1795 = vsub.s32 0, %v1794
      %v1796 = vrot.slane %v1791, %v1795
      %v1798 = vadd.f32 %v1790, %v1796
      %v1799 = vadd.f32 %v957, %v1798
      %v1800 = vld [vmem:[%s15] sm:$0x1]
      %v1801 = vld [vmem:[%s16] sm:$0x1]
      %v1802 = vsel %vm982, %v1799, 0.0
      %1803 = vadd.xlane.f32.xlu0 %v1802
      %v1804 = vpop.xlane.xlu0 %1803
      %v1805 = vrcp.pop 32.0
      %v1806 = vmul.f32 %v1804, %v1805
      %v1807 = vsub.f32 %v1799, %v1806
      %v1808 = vmul.f32 %v1807, %v1807
      %v1809 = vsel %vm982, %v1808, 0.0
      %1810 = vadd.xlane.f32.xlu0 %v1809
      %v1811 = vpop.xlane.xlu0 %1810
      %v1812 = vmul.f32 %v1811, %v1805
      %v1813 = vadd.f32 %v1812, 1e-05
      %v1814 = vrsqrt.pop %v1813
      %v1815 = vmul.f32 %v1807, %v1814
      %v1817 = vlaneseq
      %v1818 = vshrl.u32 %v1817, 7
      %v1819 = vsub.s32 0, %v1818
      %v1820 = vrot.slane %v1800, %v1819
      %v1822 = vmul.f32 %v1815, %v1820
      %v1824 = vlaneseq
      %v1825 = vshrl.u32 %v1824, 7
      %v1826 = vsub.s32 0, %v1825
      %v1827 = vrot.slane %v1801, %v1826
      %v1829 = vadd.f32 %v1822, %v1827
      %v1830 = vpack.c.bf16 %v1829, %v1829
      %v1831 = vld [vmem:[%s17] sm:$0xf]
      %v1832 = vld [vmem:[%s17 + $0x4] sm:$0xf]
      %v1833 = vld [vmem:[%s17 + $0x8] sm:$0xf]
      %v1834 = vld [vmem:[%s17 + $0xc] sm:$0xf]
      %v1835 = vld [vmem:[%s18] sm:$0x1]
      %v1837 = vlaneseq
      %v1838 = vshrl.u32 %v1837, 7
      %v1839 = vsub.s32 0, %v1838
      %v1840 = vrot.slane %v1835, %v1839
      %v1846 = vunpack.c.l.b16 %v1831
      %v1847 = vunpack.c.l.b16 %v1832
      %v1848 = vunpack.c.l.b16 %v1833
      %v1849 = vunpack.c.l.b16 %v1834
      %v1850 = vpack.c.b16 %v1847, %v1846
      %v1851 = vpack.c.b16 %v1849, %v1848
      %v1855 = vsel %vm982, %v1830, 0
      %1857 = vmatprep.subr.bf16.mxu0 0
      %1858 = vmatpush1.bf16.msra.mxu0 0
      %1859 = vmatprep.subr.bf16.mxu0 0
      %1860 = vmatpush1.bf16.msra.mxu0 0
      %1861 = vmatprep.subr.bf16.mxu0 0
      %1862 = vmatpush1.bf16.msra.mxu0 0
      %1863 = vmatprep.subr.bf16.mxu0 0
      %1864 = vmatpush1.bf16.msra.mxu0 0
      %1865 = vmatprep.subr.bf16.mxu0 0
      %1866 = vmatpush1.bf16.msra.mxu0 0
      %1867 = vmatprep.subr.bf16.mxu0 0
      %1868 = vmatpush1.bf16.msra.mxu0 0
      %1869 = vmatprep.subr.bf16.mxu0 0
      %1870 = vmatpush1.bf16.msra.mxu0 %v1851
      %1871 = vmatprep.subr.bf16.mxu0 0
      %1872 = vmatpush1.bf16.msra.mxu0 %v1850
      %1873 = vmatprep.subr.bf16.mxu0 0
      %1874 = vmatpush2.bf16.msra.mxu0 0
      %1875 = vmatprep.subr.bf16.mxu0 0
      %1876 = vmatpush2.bf16.msra.mxu0 0
      %1877 = vmatprep.subr.bf16.mxu0 0
      %1878 = vmatpush2.bf16.msra.mxu0 0
      %1879 = vmatprep.subr.bf16.mxu0 0
      %1880 = vmatpush2.bf16.msra.mxu0 0
      %1881 = vmatprep.subr.bf16.mxu0 0
      %1882 = vmatpush2.bf16.msra.mxu0 0
      %1883 = vmatprep.subr.bf16.mxu0 0
      %1884 = vmatpush2.bf16.msra.mxu0 0
      %1885 = vmatprep.subr.bf16.mxu0 0
      %1886 = vmatpush2.bf16.msra.mxu0 0
      %1887 = vmatprep.subr.bf16.mxu0 0
      %1888 = vmatpush2.bf16.msra.mxu0 0
      %1889 = vmatprep.mubr.bf16.mxu0 0
      %1890 = vmatmul.mubr.bf16.gmra.mxu0 %v1855
      %v1891 = vpop.f32.mrf.mxu0
      %v1892 = vadd.f32 %v1840, %v1891
      %v1893 = vpop.f32.mrf.mxu0
      %v1894 = vpop.f32.mrf.mxu0
      %v1895 = vpop.f32.mrf.mxu0
      %1896 = vdwg.mxu0
      %v1897 = vmax.f32 %v1892, 0.0
      %v1898 = vpack.c.bf16 %v1897, %v1897
      %v1899 = vld [vmem:[%s19] sm:$0xf]
      %v1900 = vld [vmem:[%s19 + $0x4] sm:$0xf]
      %v1901 = vld [vmem:[%s19 + $0x8] sm:$0xf]
      %v1902 = vld [vmem:[%s19 + $0xc] sm:$0xf]
      %v1903 = vld [vmem:[%s19 + $0x10] sm:$0xf]
      %v1904 = vld [vmem:[%s19 + $0x14] sm:$0xf]
      %v1905 = vld [vmem:[%s19 + $0x18] sm:$0xf]
      %v1906 = vld [vmem:[%s19 + $0x1c] sm:$0xf]
      %v1907 = vld [vmem:[%s20] sm:$0x1]
      %v1909 = vlaneseq
      %v1910 = vshrl.u32 %v1909, 7
      %v1911 = vsub.s32 0, %v1910
      %v1912 = vrot.slane %v1907, %v1911
      %v1922 = vunpack.c.l.b16 %v1899
      %v1923 = vunpack.c.l.b16 %v1900
      %v1924 = vunpack.c.l.b16 %v1901
      %v1925 = vunpack.c.l.b16 %v1902
      %v1926 = vunpack.c.l.b16 %v1903
      %v1927 = vunpack.c.l.b16 %v1904
      %v1928 = vunpack.c.l.b16 %v1905
      %v1929 = vunpack.c.l.b16 %v1906
      %v1930 = vpack.c.b16 %v1923, %v1922
      %v1931 = vpack.c.b16 %v1925, %v1924
      %v1932 = vpack.c.b16 %v1927, %v1926
      %v1933 = vpack.c.b16 %v1929, %v1928
      %vm1938 = vcmask 523264
      %v1940 = vsel %vm1938, %v1898, 0
      %1942 = vmatprep.subr.bf16.mxu0 0
      %1943 = vmatpush1.bf16.msra.mxu0 0
      %1944 = vmatprep.subr.bf16.mxu0 0
      %1945 = vmatpush1.bf16.msra.mxu0 0
      %1946 = vmatprep.subr.bf16.mxu0 0
      %1947 = vmatpush1.bf16.msra.mxu0 0
      %1948 = vmatprep.subr.bf16.mxu0 0
      %1949 = vmatpush1.bf16.msra.mxu0 0
      %1950 = vmatprep.subr.bf16.mxu0 0
      %1951 = vmatpush1.bf16.msra.mxu0 %v1933
      %1952 = vmatprep.subr.bf16.mxu0 0
      %1953 = vmatpush1.bf16.msra.mxu0 %v1932
      %1954 = vmatprep.subr.bf16.mxu0 0
      %1955 = vmatpush1.bf16.msra.mxu0 %v1931
      %1956 = vmatprep.subr.bf16.mxu0 0
      %1957 = vmatpush1.bf16.msra.mxu0 %v1930
      %1958 = vmatprep.subr.bf16.mxu0 0
      %1959 = vmatpush2.bf16.msra.mxu0 0
      %1960 = vmatprep.subr.bf16.mxu0 0
      %1961 = vmatpush2.bf16.msra.mxu0 0
      %1962 = vmatprep.subr.bf16.mxu0 0
      %1963 = vmatpush2.bf16.msra.mxu0 0
      %1964 = vmatprep.subr.bf16.mxu0 0
      %1965 = vmatpush2.bf16.msra.mxu0 0
      %1966 = vmatprep.subr.bf16.mxu0 0
      %1967 = vmatpush2.bf16.msra.mxu0 0
      %1968 = vmatprep.subr.bf16.mxu0 0
      %1969 = vmatpush2.bf16.msra.mxu0 0
      %1970 = vmatprep.subr.bf16.mxu0 0
      %1971 = vmatpush2.bf16.msra.mxu0 0
      %1972 = vmatprep.subr.bf16.mxu0 0
      %1973 = vmatpush2.bf16.msra.mxu0 0
      %1974 = vmatprep.mubr.bf16.mxu0 0
      %1975 = vmatmul.mubr.bf16.gmra.mxu0 %v1940
      %v1976 = vpop.f32.mrf.mxu0
      %v1977 = vadd.f32 %v1912, %v1976
      %v1978 = vpop.f32.mrf.mxu0
      %v1979 = vpop.f32.mrf.mxu0
      %v1980 = vpop.f32.mrf.mxu0
      %1981 = vdwg.mxu0
      %v1982 = vadd.f32 %v1829, %v1977
      %v1983 = vld [vmem:[%s21] sm:$0x1]
      %v1984 = vld [vmem:[%s22] sm:$0x1]
      %v1985 = vsel %vm982, %v1982, 0.0
      %1986 = vadd.xlane.f32.xlu0 %v1985
      %v1987 = vpop.xlane.xlu0 %1986
      %v1988 = vmul.f32 %v1987, %v1805
      %v1989 = vsub.f32 %v1982, %v1988
      %v1990 = vmul.f32 %v1989, %v1989
      %v1991 = vsel %vm982, %v1990, 0.0
      %1992 = vadd.xlane.f32.xlu0 %v1991
      %v1993 = vpop.xlane.xlu0 %1992
      %v1994 = vmul.f32 %v1993, %v1805
      %v1995 = vadd.f32 %v1994, 1e-05
      %v1996 = vrsqrt.pop %v1995
      %v1997 = vmul.f32 %v1989, %v1996
      %v1999 = vlaneseq
      %v2000 = vshrl.u32 %v1999, 7
      %v2001 = vsub.s32 0, %v2000
      %v2002 = vrot.slane %v1983, %v2001
      %v2004 = vmul.f32 %v1997, %v2002
      %v2006 = vlaneseq
      %v2007 = vshrl.u32 %v2006, 7
      %v2008 = vsub.s32 0, %v2007
      %v2009 = vrot.slane %v1984, %v2008
      %v2011 = vadd.f32 %v2004, %v2009
      %v2012 = vpack.c.bf16 %v2011, %v2011
      %s2013 = scalar_lea.vmem %s7, 16
      %v2014 = vld [vmem:[%s2013] sm:$0xf]
      %v2015 = vld [vmem:[%s2013 + $0x4] sm:$0xf]
      %v2016 = vld [vmem:[%s2013 + $0x8] sm:$0xf]
      %v2017 = vld [vmem:[%s2013 + $0xc] sm:$0xf]
      %s2018 = scalar_lea.vmem %s8, 1
      %v2019 = vld [vmem:[%s2018] sm:$0x1]
      %v2021 = vlaneseq
      %v2022 = vshrl.u32 %v2021, 7
      %v2023 = vsub.s32 0, %v2022
      %v2024 = vrot.slane %v2019, %v2023
      %v2030 = vunpack.c.l.b16 %v2014
      %v2031 = vunpack.c.l.b16 %v2015
      %v2032 = vunpack.c.l.b16 %v2016
      %v2033 = vunpack.c.l.b16 %v2017
      %v2034 = vpack.c.b16 %v2031, %v2030
      %v2035 = vpack.c.b16 %v2033, %v2032
      %v2039 = vsel %vm982, %v2012, 0
      %2041 = vmatprep.subr.bf16.mxu0 0
      %2042 = vmatpush1.bf16.msra.mxu0 0
      %2043 = vmatprep.subr.bf16.mxu0 0
      %2044 = vmatpush1.bf16.msra.mxu0 0
      %2045 = vmatprep.subr.bf16.mxu0 0
      %2046 = vmatpush1.bf16.msra.mxu0 0
      %2047 = vmatprep.subr.bf16.mxu0 0
      %2048 = vmatpush1.bf16.msra.mxu0 0
      %2049 = vmatprep.subr.bf16.mxu0 0
      %2050 = vmatpush1.bf16.msra.mxu0 0
      %2051 = vmatprep.subr.bf16.mxu0 0
      %2052 = vmatpush1.bf16.msra.mxu0 0
      %2053 = vmatprep.subr.bf16.mxu0 0
      %2054 = vmatpush1.bf16.msra.mxu0 %v2035
      %2055 = vmatprep.subr.bf16.mxu0 0
      %2056 = vmatpush1.bf16.msra.mxu0 %v2034
      %2057 = vmatprep.subr.bf16.mxu0 0
      %2058 = vmatpush2.bf16.msra.mxu0 0
      %2059 = vmatprep.subr.bf16.mxu0 0
      %2060 = vmatpush2.bf16.msra.mxu0 0
      %2061 = vmatprep.subr.bf16.mxu0 0
      %2062 = vmatpush2.bf16.msra.mxu0 0
      %2063 = vmatprep.subr.bf16.mxu0 0
      %2064 = vmatpush2.bf16.msra.mxu0 0
      %2065 = vmatprep.subr.bf16.mxu0 0
      %2066 = vmatpush2.bf16.msra.mxu0 0
      %2067 = vmatprep.subr.bf16.mxu0 0
      %2068 = vmatpush2.bf16.msra.mxu0 0
      %2069 = vmatprep.subr.bf16.mxu0 0
      %2070 = vmatpush2.bf16.msra.mxu0 0
      %2071 = vmatprep.subr.bf16.mxu0 0
      %2072 = vmatpush2.bf16.msra.mxu0 0
      %2073 = vmatprep.mubr.bf16.mxu0 0
      %2074 = vmatmul.mubr.bf16.gmra.mxu0 %v2039
      %v2075 = vpop.f32.mrf.mxu0
      %v2076 = vadd.f32 %v2024, %v2075
      %v2077 = vpop.f32.mrf.mxu0
      %v2078 = vpop.f32.mrf.mxu0
      %v2079 = vpop.f32.mrf.mxu0
      %2080 = vdwg.mxu0
      %s2081 = scalar_lea.vmem %s9, 16
      %v2082 = vld [vmem:[%s2081] sm:$0xf]
      %v2083 = vld [vmem:[%s2081 + $0x4] sm:$0xf]
      %v2084 = vld [vmem:[%s2081 + $0x8] sm:$0xf]
      %v2085 = vld [vmem:[%s2081 + $0xc] sm:$0xf]
      %s2086 = scalar_lea.vmem %s10, 1
      %v2087 = vld [vmem:[%s2086] sm:$0x1]
      %v2089 = vlaneseq
      %v2090 = vshrl.u32 %v2089, 7
      %v2091 = vsub.s32 0, %v2090
      %v2092 = vrot.slane %v2087, %v2091
      %v2098 = vunpack.c.l.b16 %v2082
      %v2099 = vunpack.c.l.b16 %v2083
      %v2100 = vunpack.c.l.b16 %v2084
      %v2101 = vunpack.c.l.b16 %v2085
      %v2102 = vpack.c.b16 %v2099, %v2098
      %v2103 = vpack.c.b16 %v2101, %v2100
      %2106 = vmatprep.subr.bf16.mxu0 0
      %2107 = vmatpush1.bf16.msra.mxu0 0
      %2108 = vmatprep.subr.bf16.mxu0 0
      %2109 = vmatpush1.bf16.msra.mxu0 0
      %2110 = vmatprep.subr.bf16.mxu0 0
      %2111 = vmatpush1.bf16.msra.mxu0 0
      %2112 = vmatprep.subr.bf16.mxu0 0
      %2113 = vmatpush1.bf16.msra.mxu0 0
      %2114 = vmatprep.subr.bf16.mxu0 0
      %2115 = vmatpush1.bf16.msra.mxu0 0
      %2116 = vmatprep.subr.bf16.mxu0 0
      %2117 = vmatpush1.bf16.msra.mxu0 0
      %2118 = vmatprep.subr.bf16.mxu0 0
      %2119 = vmatpush1.bf16.msra.mxu0 %v2103
      %2120 = vmatprep.subr.bf16.mxu0 0
      %2121 = vmatpush1.bf16.msra.mxu0 %v2102
      %2122 = vmatprep.subr.bf16.mxu0 0
      %2123 = vmatpush2.bf16.msra.mxu0 0
      %2124 = vmatprep.subr.bf16.mxu0 0
      %2125 = vmatpush2.bf16.msra.mxu0 0
      %2126 = vmatprep.subr.bf16.mxu0 0
      %2127 = vmatpush2.bf16.msra.mxu0 0
      %2128 = vmatprep.subr.bf16.mxu0 0
      %2129 = vmatpush2.bf16.msra.mxu0 0
      %2130 = vmatprep.subr.bf16.mxu0 0
      %2131 = vmatpush2.bf16.msra.mxu0 0
      %2132 = vmatprep.subr.bf16.mxu0 0
      %2133 = vmatpush2.bf16.msra.mxu0 0
      %2134 = vmatprep.subr.bf16.mxu0 0
      %2135 = vmatpush2.bf16.msra.mxu0 0
      %2136 = vmatprep.subr.bf16.mxu0 0
      %2137 = vmatpush2.bf16.msra.mxu0 0
      %2138 = vmatprep.mubr.bf16.mxu0 0
      %2139 = vmatmul.mubr.bf16.gmra.mxu0 %v2039
      %v2140 = vpop.f32.mrf.mxu0
      %v2141 = vadd.f32 %v2092, %v2140
      %v2142 = vpop.f32.mrf.mxu0
      %v2143 = vpop.f32.mrf.mxu0
      %v2144 = vpop.f32.mrf.mxu0
      %2145 = vdwg.mxu0
      %s2146 = scalar_lea.vmem %s11, 16
      %v2147 = vld [vmem:[%s2146] sm:$0xf]
      %v2148 = vld [vmem:[%s2146 + $0x4] sm:$0xf]
      %v2149 = vld [vmem:[%s2146 + $0x8] sm:$0xf]
      %v2150 = vld [vmem:[%s2146 + $0xc] sm:$0xf]
      %s2151 = scalar_lea.vmem %s12, 1
      %v2152 = vld [vmem:[%s2151] sm:$0x1]
      %v2154 = vlaneseq
      %v2155 = vshrl.u32 %v2154, 7
      %v2156 = vsub.s32 0, %v2155
      %v2157 = vrot.slane %v2152, %v2156
      %v2163 = vunpack.c.l.b16 %v2147
      %v2164 = vunpack.c.l.b16 %v2148
      %v2165 = vunpack.c.l.b16 %v2149
      %v2166 = vunpack.c.l.b16 %v2150
      %v2167 = vpack.c.b16 %v2164, %v2163
      %v2168 = vpack.c.b16 %v2166, %v2165
      %2171 = vmatprep.subr.bf16.mxu0 0
      %2172 = vmatpush1.bf16.msra.mxu0 0
      %2173 = vmatprep.subr.bf16.mxu0 0
      %2174 = vmatpush1.bf16.msra.mxu0 0
      %2175 = vmatprep.subr.bf16.mxu0 0
      %2176 = vmatpush1.bf16.msra.mxu0 0
      %2177 = vmatprep.subr.bf16.mxu0 0
      %2178 = vmatpush1.bf16.msra.mxu0 0
      %2179 = vmatprep.subr.bf16.mxu0 0
      %2180 = vmatpush1.bf16.msra.mxu0 0
      %2181 = vmatprep.subr.bf16.mxu0 0
      %2182 = vmatpush1.bf16.msra.mxu0 0
      %2183 = vmatprep.subr.bf16.mxu0 0
      %2184 = vmatpush1.bf16.msra.mxu0 %v2168
      %2185 = vmatprep.subr.bf16.mxu0 0
      %2186 = vmatpush1.bf16.msra.mxu0 %v2167
      %2187 = vmatprep.subr.bf16.mxu0 0
      %2188 = vmatpush2.bf16.msra.mxu0 0
      %2189 = vmatprep.subr.bf16.mxu0 0
      %2190 = vmatpush2.bf16.msra.mxu0 0
      %2191 = vmatprep.subr.bf16.mxu0 0
      %2192 = vmatpush2.bf16.msra.mxu0 0
      %2193 = vmatprep.subr.bf16.mxu0 0
      %2194 = vmatpush2.bf16.msra.mxu0 0
      %2195 = vmatprep.subr.bf16.mxu0 0
      %2196 = vmatpush2.bf16.msra.mxu0 0
      %2197 = vmatprep.subr.bf16.mxu0 0
      %2198 = vmatpush2.bf16.msra.mxu0 0
      %2199 = vmatprep.subr.bf16.mxu0 0
      %2200 = vmatpush2.bf16.msra.mxu0 0
      %2201 = vmatprep.subr.bf16.mxu0 0
      %2202 = vmatpush2.bf16.msra.mxu0 0
      %2203 = vmatprep.mubr.bf16.mxu0 0
      %2204 = vmatmul.mubr.bf16.gmra.mxu0 %v2039
      %v2205 = vpop.f32.mrf.mxu0
      %v2206 = vadd.f32 %v2157, %v2205
      %v2207 = vpop.f32.mrf.mxu0
      %v2208 = vpop.f32.mrf.mxu0
      %v2209 = vpop.f32.mrf.mxu0
      %2210 = vdwg.mxu0
      %v2211 = vpack.c.bf16 %v2076, %v2076
      %v2212 = vpack.c.bf16 %v2141, %v2141
      %v2213 = vpack.c.bf16 %v2206, %v2206
      %v2215 = vsel %vm1155, %v2211, 0
      %v2218 = vsel %vm1155, %v2212, 0
      %2220 = vmatprep.subr.bf16.mxu0 0
      %2221 = vmatpush1.bf16.xpose.msra.mxu0 0
      %2222 = vmatprep.subr.bf16.mxu0 0
      %2223 = vmatpush1.bf16.xpose.msra.mxu0 0
      %2224 = vmatprep.subr.bf16.mxu0 0
      %2225 = vmatpush1.bf16.xpose.msra.mxu0 0
      %2226 = vmatprep.subr.bf16.mxu0 0
      %2227 = vmatpush1.bf16.xpose.msra.mxu0 0
      %2228 = vmatprep.subr.bf16.mxu0 0
      %2229 = vmatpush1.bf16.xpose.msra.mxu0 0
      %2230 = vmatprep.subr.bf16.mxu0 0
      %2231 = vmatpush1.bf16.xpose.msra.mxu0 0
      %2232 = vmatprep.subr.bf16.mxu0 0
      %2233 = vmatpush1.bf16.xpose.msra.mxu0 0
      %2234 = vmatprep.subr.bf16.mxu0 0
      %2235 = vmatpush1.bf16.xpose.msra.mxu0 %v2218
      %2236 = vmatprep.subr.bf16.mxu0 0
      %2237 = vmatpush2.bf16.xpose.msra.mxu0 0
      %2238 = vmatprep.subr.bf16.mxu0 0
      %2239 = vmatpush2.bf16.xpose.msra.mxu0 0
      %2240 = vmatprep.subr.bf16.mxu0 0
      %2241 = vmatpush2.bf16.xpose.msra.mxu0 0
      %2242 = vmatprep.subr.bf16.mxu0 0
      %2243 = vmatpush2.bf16.xpose.msra.mxu0 0
      %2244 = vmatprep.subr.bf16.mxu0 0
      %2245 = vmatpush2.bf16.xpose.msra.mxu0 0
      %2246 = vmatprep.subr.bf16.mxu0 0
      %2247 = vmatpush2.bf16.xpose.msra.mxu0 0
      %2248 = vmatprep.subr.bf16.mxu0 0
      %2249 = vmatpush2.bf16.xpose.msra.mxu0 0
      %2250 = vmatprep.subr.bf16.mxu0 0
      %2251 = vmatpush2.bf16.xpose.msra.mxu0 0
      %2252 = vmatprep.mubr.bf16.mxu0 0
      %2253 = vmatmul.mubr.bf16.gmra.mxu0 %v2215
      %v2254 = vpop.f32.mrf.mxu0
      %v2255 = vadd.f32 0.0, %v2254
      %v2256 = vpop.f32.mrf.mxu0
      %v2257 = vpop.f32.mrf.mxu0
      %v2258 = vpop.f32.mrf.mxu0
      %2259 = vdwg.mxu0
      %v2260 = vsel %vm1155, %v2255, -inf
      %2261 = vmax.xlane.f32.xlu0 %v2260
      %v2262 = vpop.xlane.xlu0 %2261
      %v2263 = vsub.f32 %v2255, %v2262
      %v2264 = vmul.f32 %v2263, 1.442695
      %v2265 = vpow.pop %v2264
      %v2266 = vsel %vm1155, %v2265, 0.0
      %2267 = vadd.xlane.f32.xlu0 %v2266
      %v2268 = vpop.xlane.xlu0 %2267
      %v2269 = vrcp.pop %v2268
      %v2270 = vmul.f32 %v2265, %v2269
      %v2271 = vpack.c.bf16 %v2270, %v2270
      %v2273 = vsel %vm1155, %v2271, 0
      %v2276 = vsel %vm1217, %v2213, 0
      %2278 = vmatprep.subr.bf16.mxu0 0
      %2279 = vmatpush1.bf16.msra.mxu0 0
      %2280 = vmatprep.subr.bf16.mxu0 0
      %2281 = vmatpush1.bf16.msra.mxu0 0
      %2282 = vmatprep.subr.bf16.mxu0 0
      %2283 = vmatpush1.bf16.msra.mxu0 0
      %2284 = vmatprep.subr.bf16.mxu0 0
      %2285 = vmatpush1.bf16.msra.mxu0 0
      %2286 = vmatprep.subr.bf16.mxu0 0
      %2287 = vmatpush1.bf16.msra.mxu0 0
      %2288 = vmatprep.subr.bf16.mxu0 0
      %2289 = vmatpush1.bf16.msra.mxu0 0
      %2290 = vmatprep.subr.bf16.mxu0 0
      %2291 = vmatpush1.bf16.msra.mxu0 0
      %2292 = vmatprep.subr.bf16.mxu0 0
      %2293 = vmatpush1.bf16.msra.mxu0 %v2276
      %2294 = vmatprep.subr.bf16.mxu0 0
      %2295 = vmatpush2.bf16.msra.mxu0 0
      %2296 = vmatprep.subr.bf16.mxu0 0
      %2297 = vmatpush2.bf16.msra.mxu0 0
      %2298 = vmatprep.subr.bf16.mxu0 0
      %2299 = vmatpush2.bf16.msra.mxu0 0
      %2300 = vmatprep.subr.bf16.mxu0 0
      %2301 = vmatpush2.bf16.msra.mxu0 0
      %2302 = vmatprep.subr.bf16.mxu0 0
      %2303 = vmatpush2.bf16.msra.mxu0 0
      %2304 = vmatprep.subr.bf16.mxu0 0
      %2305 = vmatpush2.bf16.msra.mxu0 0
      %2306 = vmatprep.subr.bf16.mxu0 0
      %2307 = vmatpush2.bf16.msra.mxu0 0
      %2308 = vmatprep.subr.bf16.mxu0 0
      %2309 = vmatpush2.bf16.msra.mxu0 0
      %2310 = vmatprep.mubr.bf16.mxu0 0
      %2311 = vmatmul.mubr.bf16.gmra.mxu0 %v2273
      %v2312 = vpop.f32.mrf.mxu0
      %v2313 = vadd.f32 0.0, %v2312
      %v2314 = vpop.f32.mrf.mxu0
      %v2315 = vpop.f32.mrf.mxu0
      %v2316 = vpop.f32.mrf.mxu0
      %2317 = vdwg.mxu0
      %v2318 = vpack.c.bf16 %v2313, %v2313
      %s2319 = scalar_lea.vmem %s13, 16
      %v2320 = vld [vmem:[%s2319] sm:$0xf]
      %2322 = vrot.lane.b32.xlu0 %v2211, 120
      %v2323 = vpop.permute.xlu0 %2322
      %2325 = vrot.lane.b32.xlu0 %v2212, 120
      %v2326 = vpop.permute.xlu0 %2325
      %v2328 = vsel %vm1155, %v2323, 0
      %v2331 = vsel %vm1155, %v2326, 0
      %2333 = vmatprep.subr.bf16.mxu0 0
      %2334 = vmatpush1.bf16.xpose.msra.mxu0 0
      %2335 = vmatprep.subr.bf16.mxu0 0
      %2336 = vmatpush1.bf16.xpose.msra.mxu0 0
      %2337 = vmatprep.subr.bf16.mxu0 0
      %2338 = vmatpush1.bf16.xpose.msra.mxu0 0
      %2339 = vmatprep.subr.bf16.mxu0 0
      %2340 = vmatpush1.bf16.xpose.msra.mxu0 0
      %2341 = vmatprep.subr.bf16.mxu0 0
      %2342 = vmatpush1.bf16.xpose.msra.mxu0 0
      %2343 = vmatprep.subr.bf16.mxu0 0
      %2344 = vmatpush1.bf16.xpose.msra.mxu0 0
      %2345 = vmatprep.subr.bf16.mxu0 0
      %2346 = vmatpush1.bf16.xpose.msra.mxu0 0
      %2347 = vmatprep.subr.bf16.mxu0 0
      %2348 = vmatpush1.bf16.xpose.msra.mxu0 %v2331
      %2349 = vmatprep.subr.bf16.mxu0 0
      %2350 = vmatpush2.bf16.xpose.msra.mxu0 0
      %2351 = vmatprep.subr.bf16.mxu0 0
      %2352 = vmatpush2.bf16.xpose.msra.mxu0 0
      %2353 = vmatprep.subr.bf16.mxu0 0
      %2354 = vmatpush2.bf16.xpose.msra.mxu0 0
      %2355 = vmatprep.subr.bf16.mxu0 0
      %2356 = vmatpush2.bf16.xpose.msra.mxu0 0
      %2357 = vmatprep.subr.bf16.mxu0 0
      %2358 = vmatpush2.bf16.xpose.msra.mxu0 0
      %2359 = vmatprep.subr.bf16.mxu0 0
      %2360 = vmatpush2.bf16.xpose.msra.mxu0 0
      %2361 = vmatprep.subr.bf16.mxu0 0
      %2362 = vmatpush2.bf16.xpose.msra.mxu0 0
      %2363 = vmatprep.subr.bf16.mxu0 0
      %2364 = vmatpush2.bf16.xpose.msra.mxu0 0
      %2365 = vmatprep.mubr.bf16.mxu0 0
      %2366 = vmatmul.mubr.bf16.gmra.mxu0 %v2328
      %v2367 = vpop.f32.mrf.mxu0
      %v2368 = vadd.f32 0.0, %v2367
      %v2369 = vpop.f32.mrf.mxu0
      %v2370 = vpop.f32.mrf.mxu0
      %v2371 = vpop.f32.mrf.mxu0
      %2372 = vdwg.mxu0
      %v2373 = vsel %vm1155, %v2368, -inf
      %2374 = vmax.xlane.f32.xlu0 %v2373
      %v2375 = vpop.xlane.xlu0 %2374
      %v2376 = vsub.f32 %v2368, %v2375
      %v2377 = vmul.f32 %v2376, 1.442695
      %v2378 = vpow.pop %v2377
      %v2379 = vsel %vm1155, %v2378, 0.0
      %2380 = vadd.xlane.f32.xlu0 %v2379
      %v2381 = vpop.xlane.xlu0 %2380
      %v2382 = vrcp.pop %v2381
      %v2383 = vmul.f32 %v2378, %v2382
      %v2384 = vpack.c.bf16 %v2383, %v2383
      %2386 = vrot.lane.b32.xlu0 %v2213, 120
      %v2387 = vpop.permute.xlu0 %2386
      %v2389 = vsel %vm1155, %v2384, 0
      %v2392 = vsel %vm1217, %v2387, 0
      %2394 = vmatprep.subr.bf16.mxu0 0
      %2395 = vmatpush1.bf16.msra.mxu0 0
      %2396 = vmatprep.subr.bf16.mxu0 0
      %2397 = vmatpush1.bf16.msra.mxu0 0
      %2398 = vmatprep.subr.bf16.mxu0 0
      %2399 = vmatpush1.bf16.msra.mxu0 0
      %2400 = vmatprep.subr.bf16.mxu0 0
      %2401 = vmatpush1.bf16.msra.mxu0 0
      %2402 = vmatprep.subr.bf16.mxu0 0
      %2403 = vmatpush1.bf16.msra.mxu0 0
      %2404 = vmatprep.subr.bf16.mxu0 0
      %2405 = vmatpush1.bf16.msra.mxu0 0
      %2406 = vmatprep.subr.bf16.mxu0 0
      %2407 = vmatpush1.bf16.msra.mxu0 0
      %2408 = vmatprep.subr.bf16.mxu0 0
      %2409 = vmatpush1.bf16.msra.mxu0 %v2392
      %2410 = vmatprep.subr.bf16.mxu0 0
      %2411 = vmatpush2.bf16.msra.mxu0 0
      %2412 = vmatprep.subr.bf16.mxu0 0
      %2413 = vmatpush2.bf16.msra.mxu0 0
      %2414 = vmatprep.subr.bf16.mxu0 0
      %2415 = vmatpush2.bf16.msra.mxu0 0
      %2416 = vmatprep.subr.bf16.mxu0 0
      %2417 = vmatpush2.bf16.msra.mxu0 0
      %2418 = vmatprep.subr.bf16.mxu0 0
      %2419 = vmatpush2.bf16.msra.mxu0 0
      %2420 = vmatprep.subr.bf16.mxu0 0
      %2421 = vmatpush2.bf16.msra.mxu0 0
      %2422 = vmatprep.subr.bf16.mxu0 0
      %2423 = vmatpush2.bf16.msra.mxu0 0
      %2424 = vmatprep.subr.bf16.mxu0 0
      %2425 = vmatpush2.bf16.msra.mxu0 0
      %2426 = vmatprep.mubr.bf16.mxu0 0
      %2427 = vmatmul.mubr.bf16.gmra.mxu0 %v2389
      %v2428 = vpop.f32.mrf.mxu0
      %v2429 = vadd.f32 0.0, %v2428
      %v2430 = vpop.f32.mrf.mxu0
      %v2431 = vpop.f32.mrf.mxu0
      %v2432 = vpop.f32.mrf.mxu0
      %2433 = vdwg.mxu0
      %v2434 = vpack.c.bf16 %v2429, %v2429
      %s2435 = scalar_lea.vmem %s13, 20
      %v2436 = vld [vmem:[%s2435] sm:$0xf]
      %v2438 = vsel %vm1155, %v2434, 0
      %v2441 = vsel %vm1217, %v2436, 0
      %2443 = vmatprep.subr.bf16.mxu0 0
      %2444 = vmatpush1.bf16.msra.mxu0 0
      %2445 = vmatprep.subr.bf16.mxu0 0
      %2446 = vmatpush1.bf16.msra.mxu0 0
      %2447 = vmatprep.subr.bf16.mxu0 0
      %2448 = vmatpush1.bf16.msra.mxu0 0
      %2449 = vmatprep.subr.bf16.mxu0 0
      %2450 = vmatpush1.bf16.msra.mxu0 0
      %2451 = vmatprep.subr.bf16.mxu0 0
      %2452 = vmatpush1.bf16.msra.mxu0 0
      %2453 = vmatprep.subr.bf16.mxu0 0
      %2454 = vmatpush1.bf16.msra.mxu0 0
      %2455 = vmatprep.subr.bf16.mxu0 0
      %2456 = vmatpush1.bf16.msra.mxu0 0
      %2457 = vmatprep.subr.bf16.mxu0 0
      %2458 = vmatpush1.bf16.msra.mxu0 %v2441
      %2459 = vmatprep.subr.bf16.mxu0 0
      %2460 = vmatpush2.bf16.msra.mxu0 0
      %2461 = vmatprep.subr.bf16.mxu0 0
      %2462 = vmatpush2.bf16.msra.mxu0 0
      %2463 = vmatprep.subr.bf16.mxu0 0
      %2464 = vmatpush2.bf16.msra.mxu0 0
      %2465 = vmatprep.subr.bf16.mxu0 0
      %2466 = vmatpush2.bf16.msra.mxu0 0
      %2467 = vmatprep.subr.bf16.mxu0 0
      %2468 = vmatpush2.bf16.msra.mxu0 0
      %2469 = vmatprep.subr.bf16.mxu0 0
      %2470 = vmatpush2.bf16.msra.mxu0 0
      %2471 = vmatprep.subr.bf16.mxu0 0
      %2472 = vmatpush2.bf16.msra.mxu0 0
      %2473 = vmatprep.subr.bf16.mxu0 0
      %2474 = vmatpush2.bf16.msra.mxu0 0
      %2475 = vmatprep.mubr.bf16.mxu0 0
      %2476 = vmatmul.mubr.bf16.gmra.mxu0 %v2438
      %v2477 = vpop.f32.mrf.mxu0
      %v2478 = vadd.f32 0.0, %v2477
      %v2479 = vpop.f32.mrf.mxu0
      %v2480 = vpop.f32.mrf.mxu0
      %v2481 = vpop.f32.mrf.mxu0
      %2482 = vdwg.mxu0
      %v2484 = vsel %vm1155, %v2318, 0
      %v2487 = vsel %vm1217, %v2320, 0
      %2489 = vmatprep.subr.bf16.mxu0 0
      %2490 = vmatpush1.bf16.msra.mxu0 0
      %2491 = vmatprep.subr.bf16.mxu0 0
      %2492 = vmatpush1.bf16.msra.mxu0 0
      %2493 = vmatprep.subr.bf16.mxu0 0
      %2494 = vmatpush1.bf16.msra.mxu0 0
      %2495 = vmatprep.subr.bf16.mxu0 0
      %2496 = vmatpush1.bf16.msra.mxu0 0
      %2497 = vmatprep.subr.bf16.mxu0 0
      %2498 = vmatpush1.bf16.msra.mxu0 0
      %2499 = vmatprep.subr.bf16.mxu0 0
      %2500 = vmatpush1.bf16.msra.mxu0 0
      %2501 = vmatprep.subr.bf16.mxu0 0
      %2502 = vmatpush1.bf16.msra.mxu0 0
      %2503 = vmatprep.subr.bf16.mxu0 0
      %2504 = vmatpush1.bf16.msra.mxu0 %v2487
      %2505 = vmatprep.subr.bf16.mxu0 0
      %2506 = vmatpush2.bf16.msra.mxu0 0
      %2507 = vmatprep.subr.bf16.mxu0 0
      %2508 = vmatpush2.bf16.msra.mxu0 0
      %2509 = vmatprep.subr.bf16.mxu0 0
      %2510 = vmatpush2.bf16.msra.mxu0 0
      %2511 = vmatprep.subr.bf16.mxu0 0
      %2512 = vmatpush2.bf16.msra.mxu0 0
      %2513 = vmatprep.subr.bf16.mxu0 0
      %2514 = vmatpush2.bf16.msra.mxu0 0
      %2515 = vmatprep.subr.bf16.mxu0 0
      %2516 = vmatpush2.bf16.msra.mxu0 0
      %2517 = vmatprep.subr.bf16.mxu0 0
      %2518 = vmatpush2.bf16.msra.mxu0 0
      %2519 = vmatprep.subr.bf16.mxu0 0
      %2520 = vmatpush2.bf16.msra.mxu0 0
      %2521 = vmatprep.mubr.bf16.mxu0 0
      %2522 = vmatmul.mubr.bf16.gmra.mxu0 %v2484
      %v2523 = vpop.f32.mrf.mxu0
      %v2524 = vadd.f32 %v2478, %v2523
      %v2525 = vpop.f32.mrf.mxu0
      %v2526 = vpop.f32.mrf.mxu0
      %v2527 = vpop.f32.mrf.mxu0
      %2528 = vdwg.mxu0
      %2529 = vrot.lane.b32.xlu0 %v2211, 112
      %v2530 = vpop.permute.xlu0 %2529
      %2531 = vrot.lane.b32.xlu0 %v2212, 112
      %v2532 = vpop.permute.xlu0 %2531
      %v2534 = vsel %vm1155, %v2530, 0
      %v2537 = vsel %vm1155, %v2532, 0
      %2539 = vmatprep.subr.bf16.mxu0 0
      %2540 = vmatpush1.bf16.xpose.msra.mxu0 0
      %2541 = vmatprep.subr.bf16.mxu0 0
      %2542 = vmatpush1.bf16.xpose.msra.mxu0 0
      %2543 = vmatprep.subr.bf16.mxu0 0
      %2544 = vmatpush1.bf16.xpose.msra.mxu0 0
      %2545 = vmatprep.subr.bf16.mxu0 0
      %2546 = vmatpush1.bf16.xpose.msra.mxu0 0
      %2547 = vmatprep.subr.bf16.mxu0 0
      %2548 = vmatpush1.bf16.xpose.msra.mxu0 0
      %2549 = vmatprep.subr.bf16.mxu0 0
      %2550 = vmatpush1.bf16.xpose.msra.mxu0 0
      %2551 = vmatprep.subr.bf16.mxu0 0
      %2552 = vmatpush1.bf16.xpose.msra.mxu0 0
      %2553 = vmatprep.subr.bf16.mxu0 0
      %2554 = vmatpush1.bf16.xpose.msra.mxu0 %v2537
      %2555 = vmatprep.subr.bf16.mxu0 0
      %2556 = vmatpush2.bf16.xpose.msra.mxu0 0
      %2557 = vmatprep.subr.bf16.mxu0 0
      %2558 = vmatpush2.bf16.xpose.msra.mxu0 0
      %2559 = vmatprep.subr.bf16.mxu0 0
      %2560 = vmatpush2.bf16.xpose.msra.mxu0 0
      %2561 = vmatprep.subr.bf16.mxu0 0
      %2562 = vmatpush2.bf16.xpose.msra.mxu0 0
      %2563 = vmatprep.subr.bf16.mxu0 0
      %2564 = vmatpush2.bf16.xpose.msra.mxu0 0
      %2565 = vmatprep.subr.bf16.mxu0 0
      %2566 = vmatpush2.bf16.xpose.msra.mxu0 0
      %2567 = vmatprep.subr.bf16.mxu0 0
      %2568 = vmatpush2.bf16.xpose.msra.mxu0 0
      %2569 = vmatprep.subr.bf16.mxu0 0
      %2570 = vmatpush2.bf16.xpose.msra.mxu0 0
      %2571 = vmatprep.mubr.bf16.mxu0 0
      %2572 = vmatmul.mubr.bf16.gmra.mxu0 %v2534
      %v2573 = vpop.f32.mrf.mxu0
      %v2574 = vadd.f32 0.0, %v2573
      %v2575 = vpop.f32.mrf.mxu0
      %v2576 = vpop.f32.mrf.mxu0
      %v2577 = vpop.f32.mrf.mxu0
      %2578 = vdwg.mxu0
      %v2579 = vsel %vm1155, %v2574, -inf
      %2580 = vmax.xlane.f32.xlu0 %v2579
      %v2581 = vpop.xlane.xlu0 %2580
      %v2582 = vsub.f32 %v2574, %v2581
      %v2583 = vmul.f32 %v2582, 1.442695
      %v2584 = vpow.pop %v2583
      %v2585 = vsel %vm1155, %v2584, 0.0
      %2586 = vadd.xlane.f32.xlu0 %v2585
      %v2587 = vpop.xlane.xlu0 %2586
      %v2588 = vrcp.pop %v2587
      %v2589 = vmul.f32 %v2584, %v2588
      %v2590 = vpack.c.bf16 %v2589, %v2589
      %2591 = vrot.lane.b32.xlu0 %v2213, 112
      %v2592 = vpop.permute.xlu0 %2591
      %v2594 = vsel %vm1155, %v2590, 0
      %v2597 = vsel %vm1217, %v2592, 0
      %2599 = vmatprep.subr.bf16.mxu0 0
      %2600 = vmatpush1.bf16.msra.mxu0 0
      %2601 = vmatprep.subr.bf16.mxu0 0
      %2602 = vmatpush1.bf16.msra.mxu0 0
      %2603 = vmatprep.subr.bf16.mxu0 0
      %2604 = vmatpush1.bf16.msra.mxu0 0
      %2605 = vmatprep.subr.bf16.mxu0 0
      %2606 = vmatpush1.bf16.msra.mxu0 0
      %2607 = vmatprep.subr.bf16.mxu0 0
      %2608 = vmatpush1.bf16.msra.mxu0 0
      %2609 = vmatprep.subr.bf16.mxu0 0
      %2610 = vmatpush1.bf16.msra.mxu0 0
      %2611 = vmatprep.subr.bf16.mxu0 0
      %2612 = vmatpush1.bf16.msra.mxu0 0
      %2613 = vmatprep.subr.bf16.mxu0 0
      %2614 = vmatpush1.bf16.msra.mxu0 %v2597
      %2615 = vmatprep.subr.bf16.mxu0 0
      %2616 = vmatpush2.bf16.msra.mxu0 0
      %2617 = vmatprep.subr.bf16.mxu0 0
      %2618 = vmatpush2.bf16.msra.mxu0 0
      %2619 = vmatprep.subr.bf16.mxu0 0
      %2620 = vmatpush2.bf16.msra.mxu0 0
      %2621 = vmatprep.subr.bf16.mxu0 0
      %2622 = vmatpush2.bf16.msra.mxu0 0
      %2623 = vmatprep.subr.bf16.mxu0 0
      %2624 = vmatpush2.bf16.msra.mxu0 0
      %2625 = vmatprep.subr.bf16.mxu0 0
      %2626 = vmatpush2.bf16.msra.mxu0 0
      %2627 = vmatprep.subr.bf16.mxu0 0
      %2628 = vmatpush2.bf16.msra.mxu0 0
      %2629 = vmatprep.subr.bf16.mxu0 0
      %2630 = vmatpush2.bf16.msra.mxu0 0
      %2631 = vmatprep.mubr.bf16.mxu0 0
      %2632 = vmatmul.mubr.bf16.gmra.mxu0 %v2594
      %v2633 = vpop.f32.mrf.mxu0
      %v2634 = vadd.f32 0.0, %v2633
      %v2635 = vpop.f32.mrf.mxu0
      %v2636 = vpop.f32.mrf.mxu0
      %v2637 = vpop.f32.mrf.mxu0
      %2638 = vdwg.mxu0
      %v2639 = vpack.c.bf16 %v2634, %v2634
      %s2640 = scalar_lea.vmem %s13, 24
      %v2641 = vld [vmem:[%s2640] sm:$0xf]
      %v2643 = vsel %vm1155, %v2639, 0
      %v2646 = vsel %vm1217, %v2641, 0
      %2648 = vmatprep.subr.bf16.mxu0 0
      %2649 = vmatpush1.bf16.msra.mxu0 0
      %2650 = vmatprep.subr.bf16.mxu0 0
      %2651 = vmatpush1.bf16.msra.mxu0 0
      %2652 = vmatprep.subr.bf16.mxu0 0
      %2653 = vmatpush1.bf16.msra.mxu0 0
      %2654 = vmatprep.subr.bf16.mxu0 0
      %2655 = vmatpush1.bf16.msra.mxu0 0
      %2656 = vmatprep.subr.bf16.mxu0 0
      %2657 = vmatpush1.bf16.msra.mxu0 0
      %2658 = vmatprep.subr.bf16.mxu0 0
      %2659 = vmatpush1.bf16.msra.mxu0 0
      %2660 = vmatprep.subr.bf16.mxu0 0
      %2661 = vmatpush1.bf16.msra.mxu0 0
      %2662 = vmatprep.subr.bf16.mxu0 0
      %2663 = vmatpush1.bf16.msra.mxu0 %v2646
      %2664 = vmatprep.subr.bf16.mxu0 0
      %2665 = vmatpush2.bf16.msra.mxu0 0
      %2666 = vmatprep.subr.bf16.mxu0 0
      %2667 = vmatpush2.bf16.msra.mxu0 0
      %2668 = vmatprep.subr.bf16.mxu0 0
      %2669 = vmatpush2.bf16.msra.mxu0 0
      %2670 = vmatprep.subr.bf16.mxu0 0
      %2671 = vmatpush2.bf16.msra.mxu0 0
      %2672 = vmatprep.subr.bf16.mxu0 0
      %2673 = vmatpush2.bf16.msra.mxu0 0
      %2674 = vmatprep.subr.bf16.mxu0 0
      %2675 = vmatpush2.bf16.msra.mxu0 0
      %2676 = vmatprep.subr.bf16.mxu0 0
      %2677 = vmatpush2.bf16.msra.mxu0 0
      %2678 = vmatprep.subr.bf16.mxu0 0
      %2679 = vmatpush2.bf16.msra.mxu0 0
      %2680 = vmatprep.mubr.bf16.mxu0 0
      %2681 = vmatmul.mubr.bf16.gmra.mxu0 %v2643
      %v2682 = vpop.f32.mrf.mxu0
      %v2683 = vadd.f32 0.0, %v2682
      %v2684 = vpop.f32.mrf.mxu0
      %v2685 = vpop.f32.mrf.mxu0
      %v2686 = vpop.f32.mrf.mxu0
      %2687 = vdwg.mxu0
      %v2688 = vadd.f32 %v2524, %v2683
      %2689 = vrot.lane.b32.xlu0 %v2211, 104
      %v2690 = vpop.permute.xlu0 %2689
      %2691 = vrot.lane.b32.xlu0 %v2212, 104
      %v2692 = vpop.permute.xlu0 %2691
      %v2694 = vsel %vm1155, %v2690, 0
      %v2697 = vsel %vm1155, %v2692, 0
      %2699 = vmatprep.subr.bf16.mxu0 0
      %2700 = vmatpush1.bf16.xpose.msra.mxu0 0
      %2701 = vmatprep.subr.bf16.mxu0 0
      %2702 = vmatpush1.bf16.xpose.msra.mxu0 0
      %2703 = vmatprep.subr.bf16.mxu0 0
      %2704 = vmatpush1.bf16.xpose.msra.mxu0 0
      %2705 = vmatprep.subr.bf16.mxu0 0
      %2706 = vmatpush1.bf16.xpose.msra.mxu0 0
      %2707 = vmatprep.subr.bf16.mxu0 0
      %2708 = vmatpush1.bf16.xpose.msra.mxu0 0
      %2709 = vmatprep.subr.bf16.mxu0 0
      %2710 = vmatpush1.bf16.xpose.msra.mxu0 0
      %2711 = vmatprep.subr.bf16.mxu0 0
      %2712 = vmatpush1.bf16.xpose.msra.mxu0 0
      %2713 = vmatprep.subr.bf16.mxu0 0
      %2714 = vmatpush1.bf16.xpose.msra.mxu0 %v2697
      %2715 = vmatprep.subr.bf16.mxu0 0
      %2716 = vmatpush2.bf16.xpose.msra.mxu0 0
      %2717 = vmatprep.subr.bf16.mxu0 0
      %2718 = vmatpush2.bf16.xpose.msra.mxu0 0
      %2719 = vmatprep.subr.bf16.mxu0 0
      %2720 = vmatpush2.bf16.xpose.msra.mxu0 0
      %2721 = vmatprep.subr.bf16.mxu0 0
      %2722 = vmatpush2.bf16.xpose.msra.mxu0 0
      %2723 = vmatprep.subr.bf16.mxu0 0
      %2724 = vmatpush2.bf16.xpose.msra.mxu0 0
      %2725 = vmatprep.subr.bf16.mxu0 0
      %2726 = vmatpush2.bf16.xpose.msra.mxu0 0
      %2727 = vmatprep.subr.bf16.mxu0 0
      %2728 = vmatpush2.bf16.xpose.msra.mxu0 0
      %2729 = vmatprep.subr.bf16.mxu0 0
      %2730 = vmatpush2.bf16.xpose.msra.mxu0 0
      %2731 = vmatprep.mubr.bf16.mxu0 0
      %2732 = vmatmul.mubr.bf16.gmra.mxu0 %v2694
      %v2733 = vpop.f32.mrf.mxu0
      %v2734 = vadd.f32 0.0, %v2733
      %v2735 = vpop.f32.mrf.mxu0
      %v2736 = vpop.f32.mrf.mxu0
      %v2737 = vpop.f32.mrf.mxu0
      %2738 = vdwg.mxu0
      %v2739 = vsel %vm1155, %v2734, -inf
      %2740 = vmax.xlane.f32.xlu0 %v2739
      %v2741 = vpop.xlane.xlu0 %2740
      %v2742 = vsub.f32 %v2734, %v2741
      %v2743 = vmul.f32 %v2742, 1.442695
      %v2744 = vpow.pop %v2743
      %v2745 = vsel %vm1155, %v2744, 0.0
      %2746 = vadd.xlane.f32.xlu0 %v2745
      %v2747 = vpop.xlane.xlu0 %2746
      %v2748 = vrcp.pop %v2747
      %v2749 = vmul.f32 %v2744, %v2748
      %v2750 = vpack.c.bf16 %v2749, %v2749
      %2751 = vrot.lane.b32.xlu0 %v2213, 104
      %v2752 = vpop.permute.xlu0 %2751
      %v2754 = vsel %vm1155, %v2750, 0
      %v2757 = vsel %vm1217, %v2752, 0
      %2759 = vmatprep.subr.bf16.mxu0 0
      %2760 = vmatpush1.bf16.msra.mxu0 0
      %2761 = vmatprep.subr.bf16.mxu0 0
      %2762 = vmatpush1.bf16.msra.mxu0 0
      %2763 = vmatprep.subr.bf16.mxu0 0
      %2764 = vmatpush1.bf16.msra.mxu0 0
      %2765 = vmatprep.subr.bf16.mxu0 0
      %2766 = vmatpush1.bf16.msra.mxu0 0
      %2767 = vmatprep.subr.bf16.mxu0 0
      %2768 = vmatpush1.bf16.msra.mxu0 0
      %2769 = vmatprep.subr.bf16.mxu0 0
      %2770 = vmatpush1.bf16.msra.mxu0 0
      %2771 = vmatprep.subr.bf16.mxu0 0
      %2772 = vmatpush1.bf16.msra.mxu0 0
      %2773 = vmatprep.subr.bf16.mxu0 0
      %2774 = vmatpush1.bf16.msra.mxu0 %v2757
      %2775 = vmatprep.subr.bf16.mxu0 0
      %2776 = vmatpush2.bf16.msra.mxu0 0
      %2777 = vmatprep.subr.bf16.mxu0 0
      %2778 = vmatpush2.bf16.msra.mxu0 0
      %2779 = vmatprep.subr.bf16.mxu0 0
      %2780 = vmatpush2.bf16.msra.mxu0 0
      %2781 = vmatprep.subr.bf16.mxu0 0
      %2782 = vmatpush2.bf16.msra.mxu0 0
      %2783 = vmatprep.subr.bf16.mxu0 0
      %2784 = vmatpush2.bf16.msra.mxu0 0
      %2785 = vmatprep.subr.bf16.mxu0 0
      %2786 = vmatpush2.bf16.msra.mxu0 0
      %2787 = vmatprep.subr.bf16.mxu0 0
      %2788 = vmatpush2.bf16.msra.mxu0 0
      %2789 = vmatprep.subr.bf16.mxu0 0
      %2790 = vmatpush2.bf16.msra.mxu0 0
      %2791 = vmatprep.mubr.bf16.mxu0 0
      %2792 = vmatmul.mubr.bf16.gmra.mxu0 %v2754
      %v2793 = vpop.f32.mrf.mxu0
      %v2794 = vadd.f32 0.0, %v2793
      %v2795 = vpop.f32.mrf.mxu0
      %v2796 = vpop.f32.mrf.mxu0
      %v2797 = vpop.f32.mrf.mxu0
      %2798 = vdwg.mxu0
      %v2799 = vpack.c.bf16 %v2794, %v2794
      %s2800 = scalar_lea.vmem %s13, 28
      %v2801 = vld [vmem:[%s2800] sm:$0xf]
      %v2803 = vsel %vm1155, %v2799, 0
      %v2806 = vsel %vm1217, %v2801, 0
      %2808 = vmatprep.subr.bf16.mxu0 0
      %2809 = vmatpush1.bf16.msra.mxu0 0
      %2810 = vmatprep.subr.bf16.mxu0 0
      %2811 = vmatpush1.bf16.msra.mxu0 0
      %2812 = vmatprep.subr.bf16.mxu0 0
      %2813 = vmatpush1.bf16.msra.mxu0 0
      %2814 = vmatprep.subr.bf16.mxu0 0
      %2815 = vmatpush1.bf16.msra.mxu0 0
      %2816 = vmatprep.subr.bf16.mxu0 0
      %2817 = vmatpush1.bf16.msra.mxu0 0
      %2818 = vmatprep.subr.bf16.mxu0 0
      %2819 = vmatpush1.bf16.msra.mxu0 0
      %2820 = vmatprep.subr.bf16.mxu0 0
      %2821 = vmatpush1.bf16.msra.mxu0 0
      %2822 = vmatprep.subr.bf16.mxu0 0
      %2823 = vmatpush1.bf16.msra.mxu0 %v2806
      %2824 = vmatprep.subr.bf16.mxu0 0
      %2825 = vmatpush2.bf16.msra.mxu0 0
      %2826 = vmatprep.subr.bf16.mxu0 0
      %2827 = vmatpush2.bf16.msra.mxu0 0
      %2828 = vmatprep.subr.bf16.mxu0 0
      %2829 = vmatpush2.bf16.msra.mxu0 0
      %2830 = vmatprep.subr.bf16.mxu0 0
      %2831 = vmatpush2.bf16.msra.mxu0 0
      %2832 = vmatprep.subr.bf16.mxu0 0
      %2833 = vmatpush2.bf16.msra.mxu0 0
      %2834 = vmatprep.subr.bf16.mxu0 0
      %2835 = vmatpush2.bf16.msra.mxu0 0
      %2836 = vmatprep.subr.bf16.mxu0 0
      %2837 = vmatpush2.bf16.msra.mxu0 0
      %2838 = vmatprep.subr.bf16.mxu0 0
      %2839 = vmatpush2.bf16.msra.mxu0 0
      %2840 = vmatprep.mubr.bf16.mxu0 0
      %2841 = vmatmul.mubr.bf16.gmra.mxu0 %v2803
      %v2842 = vpop.f32.mrf.mxu0
      %v2843 = vadd.f32 0.0, %v2842
      %v2844 = vpop.f32.mrf.mxu0
      %v2845 = vpop.f32.mrf.mxu0
      %v2846 = vpop.f32.mrf.mxu0
      %2847 = vdwg.mxu0
      %v2848 = vadd.f32 %v2688, %v2843
      %s2849 = scalar_lea.vmem %s14, 1
      %v2850 = vld [vmem:[%s2849] sm:$0x1]
      %v2852 = vlaneseq
      %v2853 = vshrl.u32 %v2852, 7
      %v2854 = vsub.s32 0, %v2853
      %v2855 = vrot.slane %v2850, %v2854
      %v2857 = vadd.f32 %v2848, %v2855
      %v2858 = vadd.f32 %v2011, %v2857
      %s2859 = scalar_lea.vmem %s15, 1
      %v2860 = vld [vmem:[%s2859] sm:$0x1]
      %s2861 = scalar_lea.vmem %s16, 1
      %v2862 = vld [vmem:[%s2861] sm:$0x1]
      %v2863 = vsel %vm982, %v2858, 0.0
      %2864 = vadd.xlane.f32.xlu0 %v2863
      %v2865 = vpop.xlane.xlu0 %2864
      %v2866 = vmul.f32 %v2865, %v1805
      %v2867 = vsub.f32 %v2858, %v2866
      %v2868 = vmul.f32 %v2867, %v2867
      %v2869 = vsel %vm982, %v2868, 0.0
      %2870 = vadd.xlane.f32.xlu0 %v2869
      %v2871 = vpop.xlane.xlu0 %2870
      %v2872 = vmul.f32 %v2871, %v1805
      %v2873 = vadd.f32 %v2872, 1e-05
      %v2874 = vrsqrt.pop %v2873
      %v2875 = vmul.f32 %v2867, %v2874
      %v2877 = vlaneseq
      %v2878 = vshrl.u32 %v2877, 7
      %v2879 = vsub.s32 0, %v2878
      %v2880 = vrot.slane %v2860, %v2879
      %v2882 = vmul.f32 %v2875, %v2880
      %v2884 = vlaneseq
      %v2885 = vshrl.u32 %v2884, 7
      %v2886 = vsub.s32 0, %v2885
      %v2887 = vrot.slane %v2862, %v2886
      %v2889 = vadd.f32 %v2882, %v2887
      %v2890 = vpack.c.bf16 %v2889, %v2889
      %s2891 = scalar_lea.vmem %s17, 16
      %v2892 = vld [vmem:[%s2891] sm:$0xf]
      %v2893 = vld [vmem:[%s2891 + $0x4] sm:$0xf]
      %v2894 = vld [vmem:[%s2891 + $0x8] sm:$0xf]
      %v2895 = vld [vmem:[%s2891 + $0xc] sm:$0xf]
      %s2896 = scalar_lea.vmem %s18, 1
      %v2897 = vld [vmem:[%s2896] sm:$0x1]
      %v2899 = vlaneseq
      %v2900 = vshrl.u32 %v2899, 7
      %v2901 = vsub.s32 0, %v2900
      %v2902 = vrot.slane %v2897, %v2901
      %v2908 = vunpack.c.l.b16 %v2892
      %v2909 = vunpack.c.l.b16 %v2893
      %v2910 = vunpack.c.l.b16 %v2894
      %v2911 = vunpack.c.l.b16 %v2895
      %v2912 = vpack.c.b16 %v2909, %v2908
      %v2913 = vpack.c.b16 %v2911, %v2910
      %v2917 = vsel %vm982, %v2890, 0
      %2919 = vmatprep.subr.bf16.mxu0 0
      %2920 = vmatpush1.bf16.msra.mxu0 0
      %2921 = vmatprep.subr.bf16.mxu0 0
      %2922 = vmatpush1.bf16.msra.mxu0 0
      %2923 = vmatprep.subr.bf16.mxu0 0
      %2924 = vmatpush1.bf16.msra.mxu0 0
      %2925 = vmatprep.subr.bf16.mxu0 0
      %2926 = vmatpush1.bf16.msra.mxu0 0
      %2927 = vmatprep.subr.bf16.mxu0 0
      %2928 = vmatpush1.bf16.msra.mxu0 0
      %2929 = vmatprep.subr.bf16.mxu0 0
      %2930 = vmatpush1.bf16.msra.mxu0 0
      %2931 = vmatprep.subr.bf16.mxu0 0
      %2932 = vmatpush1.bf16.msra.mxu0 %v2913
      %2933 = vmatprep.subr.bf16.mxu0 0
      %2934 = vmatpush1.bf16.msra.mxu0 %v2912
      %2935 = vmatprep.subr.bf16.mxu0 0
      %2936 = vmatpush2.bf16.msra.mxu0 0
      %2937 = vmatprep.subr.bf16.mxu0 0
      %2938 = vmatpush2.bf16.msra.mxu0 0
      %2939 = vmatprep.subr.bf16.mxu0 0
      %2940 = vmatpush2.bf16.msra.mxu0 0
      %2941 = vmatprep.subr.bf16.mxu0 0
      %2942 = vmatpush2.bf16.msra.mxu0 0
      %2943 = vmatprep.subr.bf16.mxu0 0
      %2944 = vmatpush2.bf16.msra.mxu0 0
      %2945 = vmatprep.subr.bf16.mxu0 0
      %2946 = vmatpush2.bf16.msra.mxu0 0
      %2947 = vmatprep.subr.bf16.mxu0 0
      %2948 = vmatpush2.bf16.msra.mxu0 0
      %2949 = vmatprep.subr.bf16.mxu0 0
      %2950 = vmatpush2.bf16.msra.mxu0 0
      %2951 = vmatprep.mubr.bf16.mxu0 0
      %2952 = vmatmul.mubr.bf16.gmra.mxu0 %v2917
      %v2953 = vpop.f32.mrf.mxu0
      %v2954 = vadd.f32 %v2902, %v2953
      %v2955 = vpop.f32.mrf.mxu0
      %v2956 = vpop.f32.mrf.mxu0
      %v2957 = vpop.f32.mrf.mxu0
      %2958 = vdwg.mxu0
      %v2959 = vmax.f32 %v2954, 0.0
      %v2960 = vpack.c.bf16 %v2959, %v2959
      %s2961 = scalar_lea.vmem %s19, 32
      %v2962 = vld [vmem:[%s2961] sm:$0xf]
      %v2963 = vld [vmem:[%s2961 + $0x4] sm:$0xf]
      %v2964 = vld [vmem:[%s2961 + $0x8] sm:$0xf]
      %v2965 = vld [vmem:[%s2961 + $0xc] sm:$0xf]
      %v2966 = vld [vmem:[%s2961 + $0x10] sm:$0xf]
      %v2967 = vld [vmem:[%s2961 + $0x14] sm:$0xf]
      %v2968 = vld [vmem:[%s2961 + $0x18] sm:$0xf]
      %v2969 = vld [vmem:[%s2961 + $0x1c] sm:$0xf]
      %s2970 = scalar_lea.vmem %s20, 1
      %v2971 = vld [vmem:[%s2970] sm:$0x1]
      %v2973 = vlaneseq
      %v2974 = vshrl.u32 %v2973, 7
      %v2975 = vsub.s32 0, %v2974
      %v2976 = vrot.slane %v2971, %v2975
      %v2986 = vunpack.c.l.b16 %v2962
      %v2987 = vunpack.c.l.b16 %v2963
      %v2988 = vunpack.c.l.b16 %v2964
      %v2989 = vunpack.c.l.b16 %v2965
      %v2990 = vunpack.c.l.b16 %v2966
      %v2991 = vunpack.c.l.b16 %v2967
      %v2992 = vunpack.c.l.b16 %v2968
      %v2993 = vunpack.c.l.b16 %v2969
      %v2994 = vpack.c.b16 %v2987, %v2986
      %v2995 = vpack.c.b16 %v2989, %v2988
      %v2996 = vpack.c.b16 %v2991, %v2990
      %v2997 = vpack.c.b16 %v2993, %v2992
      %v3003 = vsel %vm1938, %v2960, 0
      %3005 = vmatprep.subr.bf16.mxu0 0
      %3006 = vmatpush1.bf16.msra.mxu0 0
      %3007 = vmatprep.subr.bf16.mxu0 0
      %3008 = vmatpush1.bf16.msra.mxu0 0
      %3009 = vmatprep.subr.bf16.mxu0 0
      %3010 = vmatpush1.bf16.msra.mxu0 0
      %3011 = vmatprep.subr.bf16.mxu0 0
      %3012 = vmatpush1.bf16.msra.mxu0 0
      %3013 = vmatprep.subr.bf16.mxu0 0
      %3014 = vmatpush1.bf16.msra.mxu0 %v2997
      %3015 = vmatprep.subr.bf16.mxu0 0
      %3016 = vmatpush1.bf16.msra.mxu0 %v2996
      %3017 = vmatprep.subr.bf16.mxu0 0
      %3018 = vmatpush1.bf16.msra.mxu0 %v2995
      %3019 = vmatprep.subr.bf16.mxu0 0
      %3020 = vmatpush1.bf16.msra.mxu0 %v2994
      %3021 = vmatprep.subr.bf16.mxu0 0
      %3022 = vmatpush2.bf16.msra.mxu0 0
      %3023 = vmatprep.subr.bf16.mxu0 0
      %3024 = vmatpush2.bf16.msra.mxu0 0
      %3025 = vmatprep.subr.bf16.mxu0 0
      %3026 = vmatpush2.bf16.msra.mxu0 0
      %3027 = vmatprep.subr.bf16.mxu0 0
      %3028 = vmatpush2.bf16.msra.mxu0 0
      %3029 = vmatprep.subr.bf16.mxu0 0
      %3030 = vmatpush2.bf16.msra.mxu0 0
      %3031 = vmatprep.subr.bf16.mxu0 0
      %3032 = vmatpush2.bf16.msra.mxu0 0
      %3033 = vmatprep.subr.bf16.mxu0 0
      %3034 = vmatpush2.bf16.msra.mxu0 0
      %3035 = vmatprep.subr.bf16.mxu0 0
      %3036 = vmatpush2.bf16.msra.mxu0 0
      %3037 = vmatprep.mubr.bf16.mxu0 0
      %3038 = vmatmul.mubr.bf16.gmra.mxu0 %v3003
      %v3039 = vpop.f32.mrf.mxu0
      %v3040 = vadd.f32 %v2976, %v3039
      %v3041 = vpop.f32.mrf.mxu0
      %v3042 = vpop.f32.mrf.mxu0
      %v3043 = vpop.f32.mrf.mxu0
      %3044 = vdwg.mxu0
      %v3045 = vadd.f32 %v2889, %v3040
      %s3046 = scalar_lea.vmem %s21, 1
      %v3047 = vld [vmem:[%s3046] sm:$0x1]
      %s3048 = scalar_lea.vmem %s22, 1
      %v3049 = vld [vmem:[%s3048] sm:$0x1]
      %v3050 = vsel %vm982, %v3045, 0.0
      %3051 = vadd.xlane.f32.xlu0 %v3050
      %v3052 = vpop.xlane.xlu0 %3051
      %v3053 = vmul.f32 %v3052, %v1805
      %v3054 = vsub.f32 %v3045, %v3053
      %v3055 = vmul.f32 %v3054, %v3054
      %v3056 = vsel %vm982, %v3055, 0.0
      %3057 = vadd.xlane.f32.xlu0 %v3056
      %v3058 = vpop.xlane.xlu0 %3057
      %v3059 = vmul.f32 %v3058, %v1805
      %v3060 = vadd.f32 %v3059, 1e-05
      %v3061 = vrsqrt.pop %v3060
      %v3062 = vmul.f32 %v3054, %v3061
      %v3064 = vlaneseq
      %v3065 = vshrl.u32 %v3064, 7
      %v3066 = vsub.s32 0, %v3065
      %v3067 = vrot.slane %v3047, %v3066
      %v3069 = vmul.f32 %v3062, %v3067
      %v3071 = vlaneseq
      %v3072 = vshrl.u32 %v3071, 7
      %v3073 = vsub.s32 0, %v3072
      %v3074 = vrot.slane %v3049, %v3073
      %v3076 = vadd.f32 %v3069, %v3074
      %v3077 = vpack.c.bf16 %v3076, %v3076
      %v3078 = vld [vmem:[%s23] sm:$0xf]
      %v3079 = vld [vmem:[%s23 + $0x4] sm:$0xf]
      %v3080 = vld [vmem:[%s23 + $0x8] sm:$0xf]
      %v3081 = vld [vmem:[%s23 + $0xc] sm:$0xf]
      %v3082 = vld [vmem:[%s24] sm:$0x1]
      %v3084 = vlaneseq
      %v3085 = vshrl.u32 %v3084, 7
      %v3086 = vsub.s32 0, %v3085
      %v3087 = vrot.slane %v3082, %v3086
      %v3093 = vunpack.c.l.b16 %v3078
      %v3094 = vunpack.c.l.b16 %v3079
      %v3095 = vunpack.c.l.b16 %v3080
      %v3096 = vunpack.c.l.b16 %v3081
      %v3097 = vpack.c.b16 %v3094, %v3093
      %v3098 = vpack.c.b16 %v3096, %v3095
      %v3102 = vsel %vm982, %v3077, 0
      %3104 = vmatprep.subr.bf16.mxu0 0
      %3105 = vmatpush1.bf16.msra.mxu0 0
      %3106 = vmatprep.subr.bf16.mxu0 0
      %3107 = vmatpush1.bf16.msra.mxu0 0
      %3108 = vmatprep.subr.bf16.mxu0 0
      %3109 = vmatpush1.bf16.msra.mxu0 0
      %3110 = vmatprep.subr.bf16.mxu0 0
      %3111 = vmatpush1.bf16.msra.mxu0 0
      %3112 = vmatprep.subr.bf16.mxu0 0
      %3113 = vmatpush1.bf16.msra.mxu0 0
      %3114 = vmatprep.subr.bf16.mxu0 0
      %3115 = vmatpush1.bf16.msra.mxu0 0
      %3116 = vmatprep.subr.bf16.mxu0 0
      %3117 = vmatpush1.bf16.msra.mxu0 %v3098
      %3118 = vmatprep.subr.bf16.mxu0 0
      %3119 = vmatpush1.bf16.msra.mxu0 %v3097
      %3120 = vmatprep.subr.bf16.mxu0 0
      %3121 = vmatpush2.bf16.msra.mxu0 0
      %3122 = vmatprep.subr.bf16.mxu0 0
      %3123 = vmatpush2.bf16.msra.mxu0 0
      %3124 = vmatprep.subr.bf16.mxu0 0
      %3125 = vmatpush2.bf16.msra.mxu0 0
      %3126 = vmatprep.subr.bf16.mxu0 0
      %3127 = vmatpush2.bf16.msra.mxu0 0
      %3128 = vmatprep.subr.bf16.mxu0 0
      %3129 = vmatpush2.bf16.msra.mxu0 0
      %3130 = vmatprep.subr.bf16.mxu0 0
      %3131 = vmatpush2.bf16.msra.mxu0 0
      %3132 = vmatprep.subr.bf16.mxu0 0
      %3133 = vmatpush2.bf16.msra.mxu0 0
      %3134 = vmatprep.subr.bf16.mxu0 0
      %3135 = vmatpush2.bf16.msra.mxu0 0
      %3136 = vmatprep.mubr.bf16.mxu0 0
      %3137 = vmatmul.mubr.bf16.gmra.mxu0 %v3102
      %v3138 = vpop.f32.mrf.mxu0
      %v3139 = vadd.f32 %v3087, %v3138
      %v3140 = vpop.f32.mrf.mxu0
      %v3141 = vpop.f32.mrf.mxu0
      %v3142 = vpop.f32.mrf.mxu0
      %3143 = vdwg.mxu0
      %v3144 = vlaneseq
      %v3145 = vand.u32 %v3144, 127
      %vm3146 = vcmp.lt.s32.totalorder %v3145, 5
      %v3147 = vsel %vm3146, %v3139, -inf
      %3148 = vmax.xlane.f32.xlu0 %v3147
      %v3149 = vpop.xlane.xlu0 %3148
      %v3150 = vsub.f32 %v3139, %v3149
      %v3151 = vmul.f32 %v3150, 1.442695
      %v3152 = vpow.pop %v3151
      %v3153 = vsel %vm3146, %v3152, 0.0
      %3154 = vadd.xlane.f32.xlu0 %v3153
      %v3155 = vpop.xlane.xlu0 %3154
      %v3156 = vrcp.pop %v3155
      %v3157 = vmul.f32 %v3153, %v3156
      %v3158 = vxor.u32 %v3139, 2147483648
      %v3159 = vmul.f32 %v3158, 1.442695
      %v3160 = vpow.pop %v3159
      %v3161 = vadd.f32 %v3160, 1.0
      %v3162 = vrcp.pop %v3161
      %v3163 = vmul.f32 1.0, %v3162
      %v3164 = vsel %vm3146, %v3157, %v3163
      %3165 = vst [vmem:[%s793] sm:$0xff] %v3164
      %p3166 = scmp.lt.s32.totalorder %s36, 1
      %s3167 = scalar_select %p3166, %s36, 1
      %s3168 = smul.addr %s3167, 8
      %s3169 = scalar_lea.vmem %s25, %s3168
      // Predicated region
      $region121: #{generator_forward.1} parent=119 // pred_check
        %p3170 = pneg %p594
      $region122: #{generator_forward.1} parent=119 // pred_check_branch
        %3172 = sbr.rel (%p3170) target = $region124
      $region123: #{generator_forward.1} parent=119 // pred_region
        _
      $region124: #{generator_forward.1} parent=119 // pred_fallthru
        _
    $region120: #{generator_forward.1} parent=5 // pred_fallthru
      _
    %p3173 = scmp.le.s32.totalorder 2, %s31
    // Predicated region
    $region125: #{generator_forward.1} parent=5 // pred_check
      %p3174 = pneg %p3173
    $region126: #{generator_forward.1} parent=5 // pred_check_branch
      %3176 = sbr.rel (%p3174) target = $region128
    $region127: #{generator_forward.1} parent=5 // pred_region
      %s3177 = ssub.s32 %s31, 2
      // Predicated region
      $region129: #{generator_forward.1} parent=127 // pred_check
        %p3178 = pneg %p600
      $region130: #{generator_forward.1} parent=127 // pred_check_branch
        %3180 = sbr.rel (%p3178) target = $region132
      $region131: #{generator_forward.1} parent=127 // pred_region
        %p3181 = scmp.lt.s32.totalorder %s37, 1
        %s3182 = scalar_select %p3181, %s37, 1
        %s3183 = smul.addr %s3182, 8
        %s3184 = scalar_lea.vmem %s25, %s3183
      $region132: #{generator_forward.1} parent=127 // pred_fallthru
        _
    $region128: #{generator_forward.1} parent=5 // pred_fallthru
      _
  $region6: #{generator_forward.1} parent=0 // loop_footer
    %s35 = sadd.s32 1, %s31
  $region7: #{generator_forward.1} parent=0 // loop_footer_branch
    %30 = sbr.rel target = $region3
  $region8: #{generator_forward.1} parent=0 // loop_exit
    _

</llo_original>
